<compile_context>
chip_gen: v5e
topology: v5e:2x2
jax: 0.10.0
libtpu: 0.0.40
codegen_flags: <defaults>
</compile_context>

<pallas_src>
import functools

import jax
import jax.numpy as jnp
from jax import lax
from jax.experimental import pallas as pl
from jax.experimental.pallas import tpu as pltpu


# ----------------------------- helpers --------------------------------------
def _layernorm(x, g, b, eps):
    mu = jnp.mean(x, axis=-1, keepdims=True)
    var = jnp.mean((x - mu) ** 2, axis=-1, keepdims=True)
    return (x - mu) * lax.rsqrt(var + eps) * g + b


def _gelu(x):
    # exact (erf-based) GELU, matching transformers' "gelu"
    return 0.5 * x * (1.0 + lax.erf(x * 0.7071067811865476))


def _vmem_spec():
    return pl.BlockSpec(memory_space=pltpu.MemorySpace.VMEM)


# --------------------------- fused forward kernel ----------------------------
def gruatt_kernel(emb_ref, cont_ref, mask_ref,
                  # cate / cont / comb projections
                  wc_ref, bc_ref, gc_ref, bgc_ref,
                  wn_ref, bn_ref, gn_ref, bgn_ref,
                  wm_ref, bm_ref, gm_ref, bgm_ref,
                  # GRU (fused gates [r|z|n] along lanes)
                  wih_ref, whh_ref, bih_ref, bhh_ref,
                  # Bert self-attention (fused [q|k|v] along lanes)
                  wqkv_ref, bqkv_ref, wao_ref, bao_ref, ga_ref, bga_ref,
                  # Bert FFN
                  wi_ref, bi_ref, wo_ref, bo_ref, go_ref, bgo_ref,
                  # final head
                  wf1_ref, bf1_ref, gf_ref, bgf_ref, wf2_ref, bf2_ref,
                  out_ref,
                  *, n_layers, n_heads):
    S, B, Dc = emb_ref.shape            # activations arrive time-major (S, B, feat)
    Dn = cont_ref.shape[-1]
    H = gm_ref.shape[-1]
    dh = H // n_heads
    bf16 = jnp.bfloat16

    # ---------------- projections (time-major rows: (S*B, feat)) -------------
    emb2 = emb_ref[...].reshape(S * B, Dc)
    cont2 = cont_ref[...].reshape(S * B, Dn)

    cate = jnp.dot(emb2.astype(bf16), wc_ref[...],
                   preferred_element_type=jnp.float32) + bc_ref[...]
    cate = _layernorm(cate, gc_ref[...], bgc_ref[...], 1e-5)

    cont = jnp.dot(cont2.astype(bf16), wn_ref[...],
                   preferred_element_type=jnp.float32) + bn_ref[...]
    cont = _layernorm(cont, gn_ref[...], bgn_ref[...], 1e-5)

    # nn.ReLU() first, then a single concatenated comb projection.
    comb = jnp.concatenate([jnp.maximum(cate, 0.0), jnp.maximum(cont, 0.0)], axis=-1)
    x = jnp.dot(comb.astype(bf16), wm_ref[...],
                preferred_element_type=jnp.float32) + bm_ref[...]
    x = _layernorm(x, gm_ref[...], bgm_ref[...], 1e-5)        # (S*B, H) time-major

    # ---------------- multi-layer GRU (fused [r|z|n] gates) ------------------
    hs = []
    for layer in range(n_layers):
        w_ih = wih_ref[layer]            # (H, 3H) bf16
        w_hh = whh_ref[layer]            # (H, 3H) bf16
        b_ih = bih_ref[layer]            # (1, 3H) f32
        b_hh = bhh_ref[layer]            # (1, 3H) f32

        # hoisted input-to-hidden gates for every timestep at once, time-major
        gi = (jnp.dot(x.astype(bf16), w_ih, preferred_element_type=jnp.float32)
              + b_ih).reshape(S, B, 3 * H)

        h = jnp.zeros((B, H), jnp.float32)
        hs = []
        for t in range(S):               # fully unrolled: S is static and small
            gh = jnp.dot(h.astype(bf16), w_hh,
                         preferred_element_type=jnp.float32) + b_hh
            g_t = gi[t]                                  # (B, 3H) leading-axis slice
            rz = jax.nn.sigmoid(g_t[:, :2 * H] + gh[:, :2 * H])   # one EUP launch
            r = rz[:, :H]
            z = rz[:, H:]
            n = jnp.tanh(g_t[:, 2 * H:] + r * gh[:, 2 * H:])
            h = (1.0 - z) * n + z * h
            hs.append(h)

        if layer + 1 < n_layers:
            # time-major input for the next layer, kept entirely in vregs
            x = jnp.stack(hs, axis=0).reshape(S * B, H)

    # batch-major rows for attention / head: (B*S, H)
    x2 = jnp.stack(hs, axis=1).reshape(B * S, H)

    # ---------------- Bert layer (1 layer MHA + FFN, eps=1e-12) --------------
    ext = ((1.0 - mask_ref[...]) * -10000.0)[:, None, :]      # (B, 1, S) additive mask
    scale = 1.0 / float(dh) ** 0.5

    qkv = jnp.dot(x2.astype(bf16), wqkv_ref[...],
                  preferred_element_type=jnp.float32) + bqkv_ref[...]   # (B*S, 3H)

    ctx_heads = []
    for hidx in range(n_heads):
        q_h = qkv[:, hidx * dh:(hidx + 1) * dh].reshape(B, S, dh)
        k_h = qkv[:, H + hidx * dh:H + (hidx + 1) * dh].reshape(B, S, dh)
        v_h = qkv[:, 2 * H + hidx * dh:2 * H + (hidx + 1) * dh].reshape(B, S, dh)
        s = jnp.einsum('bqd,bkd->bqk', q_h.astype(bf16), k_h.astype(bf16),
                       preferred_element_type=jnp.float32) * scale + ext
        s = s - jnp.max(s, axis=-1, keepdims=True)
        p = jnp.exp(s)
        p = p * pl.reciprocal(jnp.sum(p, axis=-1, keepdims=True), approx=True)
        ctx_h = jnp.einsum('bqk,bkd->bqd', p.astype(bf16), v_h.astype(bf16),
                           preferred_element_type=jnp.float32)
        ctx_heads.append(ctx_h.reshape(B * S, dh))
    ctx = jnp.concatenate(ctx_heads, axis=-1)                 # (B*S, H)

    # BertSelfOutput: dense + residual + LN(eps=1e-12)
    attn_lin = jnp.dot(ctx.astype(bf16), wao_ref[...],
                       preferred_element_type=jnp.float32) + bao_ref[...]
    attn_out = _layernorm(attn_lin + x2, ga_ref[...], bga_ref[...], 1e-12)

    # BertIntermediate (gelu) + BertOutput (dense + residual + LN)
    inter = _gelu(jnp.dot(attn_out.astype(bf16), wi_ref[...],
                          preferred_element_type=jnp.float32) + bi_ref[...])
    layer_out = jnp.dot(inter.astype(bf16), wo_ref[...],
                        preferred_element_type=jnp.float32) + bo_ref[...]
    layer_out = _layernorm(layer_out + attn_out, go_ref[...], bgo_ref[...], 1e-12)

    # final head: Linear -> LN -> (Dropout = identity) -> ReLU -> Linear(H, 1)
    f = jnp.dot(layer_out.astype(bf16), wf1_ref[...],
                preferred_element_type=jnp.float32) + bf1_ref[...]
    f = _layernorm(f, gf_ref[...], bgf_ref[...], 1e-5)
    f = jnp.maximum(f, 0.0)
    # H->1 projection as multiply + lane reduction, emitted as a (B, S) slab
    f3 = f.reshape(B, S, H)
    logits = jnp.sum(f3 * wf2_ref[...].reshape(1, 1, H), axis=-1) + bf2_ref[...]
    out_ref[...] = logits


# ------------------------------ wrapper ---------------------------------------
def gruatt_forward(params, cate_x, cont_x, mask, cfg):
    B, S, _ = cont_x.shape
    # TODO(synk): embedding gather stays as plain-JAX glue (an in-kernel gather
    # would need per-row DMA which is not worth it at these sizes).
    emb = params['emb'][cate_x]                                    # (B, S, cate_num, E)
    emb_flat = emb.reshape(B, S, cfg['cate_num'] * cfg['cate_emb_dim'])

    # time-major activations so per-step GRU reads are leading-axis slices
    emb_t = jnp.transpose(emb_flat, (1, 0, 2))                     # (S, B, Dc)
    cont_t = jnp.transpose(cont_x, (1, 0, 2))                      # (S, B, Dn)

    p = params
    args = (emb_t, cont_t, mask.astype(jnp.float32),
            p['w_cate'], p['b_cate'], p['g_cate'], p['bb_cate'],
            p['w_cont'], p['b_cont'], p['g_cont'], p['bb_cont'],
            p['w_comb'], p['b_comb'], p['g_comb'], p['bb_comb'],
            p['gru_wih'], p['gru_whh'], p['gru_bih'], p['gru_bhh'],
            p['wqkv'], p['bqkv'], p['wao'], p['bao'], p['g_a'], p['bb_a'],
            p['wi'], p['bi'], p['wo'], p['bo'], p['g_o'], p['bb_o'],
            p['wf1'], p['bf1'], p['g_f'], p['bb_f'], p['wf2'], p['bf2'])

    out = pl.pallas_call(
        functools.partial(gruatt_kernel,
                          n_layers=cfg['n_layers'], n_heads=cfg['n_heads']),
        out_shape=jax.ShapeDtypeStruct((B, S), jnp.float32),
        in_specs=[_vmem_spec() for _ in args],
        out_specs=_vmem_spec(),
        compiler_params=pltpu.CompilerParams(vmem_limit_bytes=32 * 1024 * 1024),
    )(*args)
    return out                                                     # (B, S)


# ------------------------------ params ---------------------------------------
def init_params(key, cfg):
    keys = iter(jax.random.split(key, 64))

    def nrm(shape, scale=0.1, dtype=jnp.float32):
        return (jax.random.normal(next(keys), shape, jnp.float32) * scale).astype(dtype)

    H = cfg['hidden_dim']
    Dc = cfg['cate_num'] * cfg['cate_emb_dim']
    Pc, Po = cfg['cate_proj_dim'], cfg['cont_proj_dim']
    L = cfg['n_layers']
    bf16 = jnp.bfloat16

    emb = nrm((cfg['offset'], cfg['cate_emb_dim'])).at[0].set(0.0)   # padding_idx=0

    ones = lambda s: jnp.ones(s, jnp.float32)
    zeros = lambda s: jnp.zeros(s, jnp.float32)

    p = dict(
        emb=emb,
        # cate projector
        w_cate=nrm((Dc, Pc), dtype=bf16), b_cate=nrm((1, Pc), 0.05),
        g_cate=ones((1, Pc)), bb_cate=zeros((1, Pc)),
        # cont projector
        w_cont=nrm((cfg['cont_num'], Po), dtype=bf16), b_cont=nrm((1, Po), 0.05),
        g_cont=ones((1, Po)), bb_cont=zeros((1, Po)),
        # comb projector (single dense on concat[cate|cont])
        w_comb=nrm((Pc + Po, H), dtype=bf16), b_comb=nrm((1, H), 0.05),
        g_comb=ones((1, H)), bb_comb=zeros((1, H)),
        # GRU: fused gates [r|z|n] along lanes, stored (in, 3H)
        gru_wih=nrm((L, H, 3 * H), dtype=bf16), gru_whh=nrm((L, H, 3 * H), dtype=bf16),
        gru_bih=nrm((L, 1, 3 * H), 0.05), gru_bhh=nrm((L, 1, 3 * H), 0.05),
        # Bert self-attention: fused [q|k|v] (heads contiguous within each block)
        wqkv=nrm((H, 3 * H), dtype=bf16), bqkv=nrm((1, 3 * H), 0.05),
        wao=nrm((H, H), dtype=bf16), bao=nrm((1, H), 0.05),
        g_a=ones((1, H)), bb_a=zeros((1, H)),
        # Bert FFN (intermediate_size = hidden_dim)
        wi=nrm((H, H), dtype=bf16), bi=nrm((1, H), 0.05),
        wo=nrm((H, H), dtype=bf16), bo=nrm((1, H), 0.05),
        g_o=ones((1, H)), bb_o=zeros((1, H)),
        # final head
        wf1=nrm((H, H), dtype=bf16), bf1=nrm((1, H), 0.05),
        g_f=ones((1, H)), bb_f=zeros((1, H)),
        wf2=nrm((1, H)), bf2=nrm((1, 1), 0.05),   # H->1 proj stays f32 (VPU reduce)
    )
    return p


# -------------------------------- main ----------------------------------------
if __name__ == "__main__":
    cfg = dict(offset=20, cate_emb_dim=8, cate_num=3, cate_proj_dim=16,
               cont_num=4, cont_proj_dim=16, hidden_dim=32, max_seq_len=8,
               n_layers=2, n_heads=4, drop_out=0.1)
    B, S = 2, cfg['max_seq_len']

    key = jax.random.PRNGKey(0)
    kp, kc, kn = jax.random.split(key, 3)
    params = init_params(kp, cfg)

    cate_x = jax.random.randint(kc, (B, S, cfg['cate_num']), 0, cfg['offset'])
    cont_x = jax.random.normal(kn, (B, S, cfg['cont_num']), jnp.float32)
    mask = jnp.ones((B, S), jnp.float32).at[1, -2:].set(0.0)   # pad last 2 of batch 1

    out = gruatt_forward(params, cate_x, cont_x, mask, cfg)
    out = jax.block_until_ready(out)

    assert out.shape == (B, S), out.shape
    assert bool(jnp.all(jnp.isfinite(out)))
    print("KERNEL_OK")
</pallas_src>

<mosaic_0001>
module attributes {stable_mosaic.version = 11 : i64} {
  func.func @gruatt_kernel(%arg0: memref<8x2x24xf32, #tpu.memory_space<vmem>>, %arg1: memref<8x2x4xf32, #tpu.memory_space<vmem>>, %arg2: memref<2x8xf32, #tpu.memory_space<vmem>>, %arg3: memref<24x16xbf16, #tpu.memory_space<vmem>>, %arg4: memref<1x16xf32, #tpu.memory_space<vmem>>, %arg5: memref<1x16xf32, #tpu.memory_space<vmem>>, %arg6: memref<1x16xf32, #tpu.memory_space<vmem>>, %arg7: memref<4x16xbf16, #tpu.memory_space<vmem>>, %arg8: memref<1x16xf32, #tpu.memory_space<vmem>>, %arg9: memref<1x16xf32, #tpu.memory_space<vmem>>, %arg10: memref<1x16xf32, #tpu.memory_space<vmem>>, %arg11: memref<32x32xbf16, #tpu.memory_space<vmem>>, %arg12: memref<1x32xf32, #tpu.memory_space<vmem>>, %arg13: memref<1x32xf32, #tpu.memory_space<vmem>>, %arg14: memref<1x32xf32, #tpu.memory_space<vmem>>, %arg15: memref<2x32x96xbf16, #tpu.memory_space<vmem>>, %arg16: memref<2x32x96xbf16, #tpu.memory_space<vmem>>, %arg17: memref<2x1x96xf32, #tpu.memory_space<vmem>>, %arg18: memref<2x1x96xf32, #tpu.memory_space<vmem>>, %arg19: memref<32x96xbf16, #tpu.memory_space<vmem>>, %arg20: memref<1x96xf32, #tpu.memory_space<vmem>>, %arg21: memref<32x32xbf16, #tpu.memory_space<vmem>>, %arg22: memref<1x32xf32, #tpu.memory_space<vmem>>, %arg23: memref<1x32xf32, #tpu.memory_space<vmem>>, %arg24: memref<1x32xf32, #tpu.memory_space<vmem>>, %arg25: memref<32x32xbf16, #tpu.memory_space<vmem>>, %arg26: memref<1x32xf32, #tpu.memory_space<vmem>>, %arg27: memref<32x32xbf16, #tpu.memory_space<vmem>>, %arg28: memref<1x32xf32, #tpu.memory_space<vmem>>, %arg29: memref<1x32xf32, #tpu.memory_space<vmem>>, %arg30: memref<1x32xf32, #tpu.memory_space<vmem>>, %arg31: memref<32x32xbf16, #tpu.memory_space<vmem>>, %arg32: memref<1x32xf32, #tpu.memory_space<vmem>>, %arg33: memref<1x32xf32, #tpu.memory_space<vmem>>, %arg34: memref<1x32xf32, #tpu.memory_space<vmem>>, %arg35: memref<1x32xf32, #tpu.memory_space<vmem>>, %arg36: memref<1x1xf32, #tpu.memory_space<vmem>>, %arg37: memref<2x8xf32, #tpu.memory_space<vmem>>) attributes {dimension_semantics = [], scalar_prefetch = 0 : i64, scratch_operands = 0 : i64, tpu.core_type = #tpu.core_type<tc>} {
    %c0 = arith.constant 0 : index
    %c0_0 = arith.constant 0 : index
    %c0_1 = arith.constant 0 : index
    %0 = vector.load %arg0[%c0, %c0_0, %c0_1] : memref<8x2x24xf32, #tpu.memory_space<vmem>>, vector<8x2x24xf32>
    %1 = vector.shape_cast %0 : vector<8x2x24xf32> to vector<16x24xf32>
    %c0_2 = arith.constant 0 : index
    %c0_3 = arith.constant 0 : index
    %c0_4 = arith.constant 0 : index
    %2 = vector.load %arg1[%c0_2, %c0_3, %c0_4] : memref<8x2x4xf32, #tpu.memory_space<vmem>>, vector<8x2x4xf32>
    %3 = vector.shape_cast %2 : vector<8x2x4xf32> to vector<16x4xf32>
    %4 = arith.truncf %1 : vector<16x24xf32> to vector<16x24xbf16>
    %c0_5 = arith.constant 0 : index
    %c0_6 = arith.constant 0 : index
    %5 = vector.load %arg3[%c0_5, %c0_6] : memref<24x16xbf16, #tpu.memory_space<vmem>>, vector<24x16xbf16>
    %cst = arith.constant dense<0.000000e+00> : vector<16x16xf32>
    %6 = tpu.matmul %4, %5, %cst {dimension_numbers = #tpu.dot_dimension_numbers<[1], [0], [0], [1], [0, 0, 1, 1], [], []>} : vector<16x24xbf16>, vector<24x16xbf16>, vector<16x16xf32> -> vector<16x16xf32>
    %c0_7 = arith.constant 0 : index
    %c0_8 = arith.constant 0 : index
    %7 = vector.load %arg4[%c0_7, %c0_8] : memref<1x16xf32, #tpu.memory_space<vmem>>, vector<1x16xf32>
    %8 = vector.broadcast %7 : vector<1x16xf32> to vector<16x16xf32>
    %9 = arith.addf %6, %8 : vector<16x16xf32>
    %c0_9 = arith.constant 0 : index
    %c0_10 = arith.constant 0 : index
    %10 = vector.load %arg5[%c0_9, %c0_10] : memref<1x16xf32, #tpu.memory_space<vmem>>, vector<1x16xf32>
    %c0_11 = arith.constant 0 : index
    %c0_12 = arith.constant 0 : index
    %11 = vector.load %arg6[%c0_11, %c0_12] : memref<1x16xf32, #tpu.memory_space<vmem>>, vector<1x16xf32>
    %cst_13 = arith.constant dense<0.000000e+00> : vector<16xf32>
    %12 = vector.multi_reduction <add>, %9, %cst_13 [1] : vector<16x16xf32> to vector<16xf32>
    %13 = vector.shape_cast %12 : vector<16xf32> to vector<16x1xf32>
    %cst_14 = arith.constant 1.600000e+01 : f32
    %14 = vector.broadcast %cst_14 : f32 to vector<16x1xf32>
    %15 = arith.divf %13, %14 : vector<16x1xf32>
    %16 = vector.broadcast %15 : vector<16x1xf32> to vector<16x16xf32>
    %17 = arith.subf %9, %16 : vector<16x16xf32>
    %18 = arith.mulf %17, %17 : vector<16x16xf32>
    %cst_15 = arith.constant dense<0.000000e+00> : vector<16xf32>
    %19 = vector.multi_reduction <add>, %18, %cst_15 [1] : vector<16x16xf32> to vector<16xf32>
    %20 = vector.shape_cast %19 : vector<16xf32> to vector<16x1xf32>
    %cst_16 = arith.constant 1.600000e+01 : f32
    %21 = vector.broadcast %cst_16 : f32 to vector<16x1xf32>
    %22 = arith.divf %20, %21 : vector<16x1xf32>
    %23 = vector.broadcast %15 : vector<16x1xf32> to vector<16x16xf32>
    %24 = arith.subf %9, %23 : vector<16x16xf32>
    %cst_17 = arith.constant 9.99999974E-6 : f32
    %25 = vector.broadcast %cst_17 : f32 to vector<16x1xf32>
    %26 = arith.addf %22, %25 : vector<16x1xf32>
    %27 = math.rsqrt %26 : vector<16x1xf32>
    %28 = vector.broadcast %27 : vector<16x1xf32> to vector<16x16xf32>
    %29 = arith.mulf %24, %28 : vector<16x16xf32>
    %30 = vector.broadcast %10 : vector<1x16xf32> to vector<16x16xf32>
    %31 = arith.mulf %29, %30 : vector<16x16xf32>
    %32 = vector.broadcast %11 : vector<1x16xf32> to vector<16x16xf32>
    %33 = arith.addf %31, %32 : vector<16x16xf32>
    %34 = arith.truncf %3 : vector<16x4xf32> to vector<16x4xbf16>
    %c0_18 = arith.constant 0 : index
    %c0_19 = arith.constant 0 : index
    %35 = vector.load %arg7[%c0_18, %c0_19] : memref<4x16xbf16, #tpu.memory_space<vmem>>, vector<4x16xbf16>
    %cst_20 = arith.constant dense<0.000000e+00> : vector<16x16xf32>
    %36 = tpu.matmul %34, %35, %cst_20 {dimension_numbers = #tpu.dot_dimension_numbers<[1], [0], [0], [1], [0, 0, 1, 1], [], []>} : vector<16x4xbf16>, vector<4x16xbf16>, vector<16x16xf32> -> vector<16x16xf32>
    %c0_21 = arith.constant 0 : index
    %c0_22 = arith.constant 0 : index
    %37 = vector.load %arg8[%c0_21, %c0_22] : memref<1x16xf32, #tpu.memory_space<vmem>>, vector<1x16xf32>
    %38 = vector.broadcast %37 : vector<1x16xf32> to vector<16x16xf32>
    %39 = arith.addf %36, %38 : vector<16x16xf32>
    %c0_23 = arith.constant 0 : index
    %c0_24 = arith.constant 0 : index
    %40 = vector.load %arg9[%c0_23, %c0_24] : memref<1x16xf32, #tpu.memory_space<vmem>>, vector<1x16xf32>
    %c0_25 = arith.constant 0 : index
    %c0_26 = arith.constant 0 : index
    %41 = vector.load %arg10[%c0_25, %c0_26] : memref<1x16xf32, #tpu.memory_space<vmem>>, vector<1x16xf32>
    %cst_27 = arith.constant dense<0.000000e+00> : vector<16xf32>
    %42 = vector.multi_reduction <add>, %39, %cst_27 [1] : vector<16x16xf32> to vector<16xf32>
    %43 = vector.shape_cast %42 : vector<16xf32> to vector<16x1xf32>
    %cst_28 = arith.constant 1.600000e+01 : f32
    %44 = vector.broadcast %cst_28 : f32 to vector<16x1xf32>
    %45 = arith.divf %43, %44 : vector<16x1xf32>
    %46 = vector.broadcast %45 : vector<16x1xf32> to vector<16x16xf32>
    %47 = arith.subf %39, %46 : vector<16x16xf32>
    %48 = arith.mulf %47, %47 : vector<16x16xf32>
    %cst_29 = arith.constant dense<0.000000e+00> : vector<16xf32>
    %49 = vector.multi_reduction <add>, %48, %cst_29 [1] : vector<16x16xf32> to vector<16xf32>
    %50 = vector.shape_cast %49 : vector<16xf32> to vector<16x1xf32>
    %cst_30 = arith.constant 1.600000e+01 : f32
    %51 = vector.broadcast %cst_30 : f32 to vector<16x1xf32>
    %52 = arith.divf %50, %51 : vector<16x1xf32>
    %53 = vector.broadcast %45 : vector<16x1xf32> to vector<16x16xf32>
    %54 = arith.subf %39, %53 : vector<16x16xf32>
    %cst_31 = arith.constant 9.99999974E-6 : f32
    %55 = vector.broadcast %cst_31 : f32 to vector<16x1xf32>
    %56 = arith.addf %52, %55 : vector<16x1xf32>
    %57 = math.rsqrt %56 : vector<16x1xf32>
    %58 = vector.broadcast %57 : vector<16x1xf32> to vector<16x16xf32>
    %59 = arith.mulf %54, %58 : vector<16x16xf32>
    %60 = vector.broadcast %40 : vector<1x16xf32> to vector<16x16xf32>
    %61 = arith.mulf %59, %60 : vector<16x16xf32>
    %62 = vector.broadcast %41 : vector<1x16xf32> to vector<16x16xf32>
    %63 = arith.addf %61, %62 : vector<16x16xf32>
    %cst_32 = arith.constant 0.000000e+00 : f32
    %64 = vector.broadcast %cst_32 : f32 to vector<16x16xf32>
    %65 = arith.maximumf %33, %64 : vector<16x16xf32>
    %cst_33 = arith.constant 0.000000e+00 : f32
    %66 = vector.broadcast %cst_33 : f32 to vector<16x16xf32>
    %67 = arith.maximumf %63, %66 : vector<16x16xf32>
    %68 = tpu.concatenate %65, %67 in 1 : vector<16x16xf32>, vector<16x16xf32> -> vector<16x32xf32>
    %69 = arith.truncf %68 : vector<16x32xf32> to vector<16x32xbf16>
    %c0_34 = arith.constant 0 : index
    %c0_35 = arith.constant 0 : index
    %70 = vector.load %arg11[%c0_34, %c0_35] : memref<32x32xbf16, #tpu.memory_space<vmem>>, vector<32x32xbf16>
    %cst_36 = arith.constant dense<0.000000e+00> : vector<16x32xf32>
    %71 = tpu.matmul %69, %70, %cst_36 {dimension_numbers = #tpu.dot_dimension_numbers<[1], [0], [0], [1], [0, 0, 1, 1], [], []>} : vector<16x32xbf16>, vector<32x32xbf16>, vector<16x32xf32> -> vector<16x32xf32>
    %c0_37 = arith.constant 0 : index
    %c0_38 = arith.constant 0 : index
    %72 = vector.load %arg12[%c0_37, %c0_38] : memref<1x32xf32, #tpu.memory_space<vmem>>, vector<1x32xf32>
    %73 = vector.broadcast %72 : vector<1x32xf32> to vector<16x32xf32>
    %74 = arith.addf %71, %73 : vector<16x32xf32>
    %c0_39 = arith.constant 0 : index
    %c0_40 = arith.constant 0 : index
    %75 = vector.load %arg13[%c0_39, %c0_40] : memref<1x32xf32, #tpu.memory_space<vmem>>, vector<1x32xf32>
    %c0_41 = arith.constant 0 : index
    %c0_42 = arith.constant 0 : index
    %76 = vector.load %arg14[%c0_41, %c0_42] : memref<1x32xf32, #tpu.memory_space<vmem>>, vector<1x32xf32>
    %cst_43 = arith.constant dense<0.000000e+00> : vector<16xf32>
    %77 = vector.multi_reduction <add>, %74, %cst_43 [1] : vector<16x32xf32> to vector<16xf32>
    %78 = vector.shape_cast %77 : vector<16xf32> to vector<16x1xf32>
    %cst_44 = arith.constant 3.200000e+01 : f32
    %79 = vector.broadcast %cst_44 : f32 to vector<16x1xf32>
    %80 = arith.divf %78, %79 : vector<16x1xf32>
    %81 = vector.broadcast %80 : vector<16x1xf32> to vector<16x32xf32>
    %82 = arith.subf %74, %81 : vector<16x32xf32>
    %83 = arith.mulf %82, %82 : vector<16x32xf32>
    %cst_45 = arith.constant dense<0.000000e+00> : vector<16xf32>
    %84 = vector.multi_reduction <add>, %83, %cst_45 [1] : vector<16x32xf32> to vector<16xf32>
    %85 = vector.shape_cast %84 : vector<16xf32> to vector<16x1xf32>
    %cst_46 = arith.constant 3.200000e+01 : f32
    %86 = vector.broadcast %cst_46 : f32 to vector<16x1xf32>
    %87 = arith.divf %85, %86 : vector<16x1xf32>
    %88 = vector.broadcast %80 : vector<16x1xf32> to vector<16x32xf32>
    %89 = arith.subf %74, %88 : vector<16x32xf32>
    %cst_47 = arith.constant 9.99999974E-6 : f32
    %90 = vector.broadcast %cst_47 : f32 to vector<16x1xf32>
    %91 = arith.addf %87, %90 : vector<16x1xf32>
    %92 = math.rsqrt %91 : vector<16x1xf32>
    %93 = vector.broadcast %92 : vector<16x1xf32> to vector<16x32xf32>
    %94 = arith.mulf %89, %93 : vector<16x32xf32>
    %95 = vector.broadcast %75 : vector<1x32xf32> to vector<16x32xf32>
    %96 = arith.mulf %94, %95 : vector<16x32xf32>
    %97 = vector.broadcast %76 : vector<1x32xf32> to vector<16x32xf32>
    %98 = arith.addf %96, %97 : vector<16x32xf32>
    %c0_48 = arith.constant 0 : index
    %c0_49 = arith.constant 0 : index
    %c0_50 = arith.constant 0 : index
    %99 = vector.load %arg15[%c0_48, %c0_49, %c0_50] : memref<2x32x96xbf16, #tpu.memory_space<vmem>>, vector<1x32x96xbf16>
    %100 = vector.shape_cast %99 : vector<1x32x96xbf16> to vector<32x96xbf16>
    %c0_51 = arith.constant 0 : index
    %c0_52 = arith.constant 0 : index
    %c0_53 = arith.constant 0 : index
    %101 = vector.load %arg16[%c0_51, %c0_52, %c0_53] : memref<2x32x96xbf16, #tpu.memory_space<vmem>>, vector<1x32x96xbf16>
    %102 = vector.shape_cast %101 : vector<1x32x96xbf16> to vector<32x96xbf16>
    %c0_54 = arith.constant 0 : index
    %c0_55 = arith.constant 0 : index
    %c0_56 = arith.constant 0 : index
    %103 = vector.load %arg17[%c0_54, %c0_55, %c0_56] : memref<2x1x96xf32, #tpu.memory_space<vmem>>, vector<1x1x96xf32>
    %104 = vector.shape_cast %103 : vector<1x1x96xf32> to vector<1x96xf32>
    %c0_57 = arith.constant 0 : index
    %c0_58 = arith.constant 0 : index
    %c0_59 = arith.constant 0 : index
    %105 = vector.load %arg18[%c0_57, %c0_58, %c0_59] : memref<2x1x96xf32, #tpu.memory_space<vmem>>, vector<1x1x96xf32>
    %106 = vector.shape_cast %105 : vector<1x1x96xf32> to vector<1x96xf32>
    %107 = arith.truncf %98 : vector<16x32xf32> to vector<16x32xbf16>
    %cst_60 = arith.constant dense<0.000000e+00> : vector<16x96xf32>
    %108 = tpu.matmul %107, %100, %cst_60 {dimension_numbers = #tpu.dot_dimension_numbers<[1], [0], [0], [1], [0, 0, 1, 1], [], []>} : vector<16x32xbf16>, vector<32x96xbf16>, vector<16x96xf32> -> vector<16x96xf32>
    %109 = vector.broadcast %104 : vector<1x96xf32> to vector<16x96xf32>
    %110 = arith.addf %108, %109 : vector<16x96xf32>
    %111 = vector.shape_cast %110 : vector<16x96xf32> to vector<8x2x96xf32>
    %cst_61 = arith.constant 0.000000e+00 : f32
    %112 = vector.broadcast %cst_61 : f32 to vector<2x32xf32>
    %113 = arith.truncf %112 : vector<2x32xf32> to vector<2x32xbf16>
    %cst_62 = arith.constant dense<0.000000e+00> : vector<2x96xf32>
    %114 = tpu.matmul %113, %102, %cst_62 {dimension_numbers = #tpu.dot_dimension_numbers<[1], [0], [0], [1], [0, 0, 1, 1], [], []>} : vector<2x32xbf16>, vector<32x96xbf16>, vector<2x96xf32> -> vector<2x96xf32>
    %115 = vector.broadcast %106 : vector<1x96xf32> to vector<2x96xf32>
    %116 = arith.addf %114, %115 : vector<2x96xf32>
    %117 = vector.extract_strided_slice %111 {offsets = [0, 0, 0], sizes = [1, 2, 96], strides = [1, 1, 1]} : vector<8x2x96xf32> to vector<1x2x96xf32>
    %118 = vector.shape_cast %117 : vector<1x2x96xf32> to vector<2x96xf32>
    %119 = vector.extract_strided_slice %118 {offsets = [0, 0], sizes = [2, 64], strides = [1, 1]} : vector<2x96xf32> to vector<2x64xf32>
    %120 = vector.extract_strided_slice %116 {offsets = [0, 0], sizes = [2, 64], strides = [1, 1]} : vector<2x96xf32> to vector<2x64xf32>
    %121 = arith.addf %119, %120 : vector<2x64xf32>
    %122 = arith.negf %121 : vector<2x64xf32>
    %123 = math.exp %122 : vector<2x64xf32>
    %cst_63 = arith.constant 1.000000e+00 : f32
    %124 = vector.broadcast %cst_63 : f32 to vector<2x64xf32>
    %125 = arith.addf %124, %123 : vector<2x64xf32>
    %126 = arith.divf %124, %125 : vector<2x64xf32>
    %127 = vector.extract_strided_slice %126 {offsets = [0, 0], sizes = [2, 32], strides = [1, 1]} : vector<2x64xf32> to vector<2x32xf32>
    %128 = vector.extract_strided_slice %126 {offsets = [0, 32], sizes = [2, 32], strides = [1, 1]} : vector<2x64xf32> to vector<2x32xf32>
    %129 = vector.extract_strided_slice %118 {offsets = [0, 64], sizes = [2, 32], strides = [1, 1]} : vector<2x96xf32> to vector<2x32xf32>
    %130 = vector.extract_strided_slice %116 {offsets = [0, 64], sizes = [2, 32], strides = [1, 1]} : vector<2x96xf32> to vector<2x32xf32>
    %131 = arith.mulf %127, %130 : vector<2x32xf32>
    %132 = arith.addf %129, %131 : vector<2x32xf32>
    %133 = math.tanh %132 : vector<2x32xf32>
    %cst_64 = arith.constant 1.000000e+00 : f32
    %134 = vector.broadcast %cst_64 : f32 to vector<2x32xf32>
    %135 = arith.subf %134, %128 : vector<2x32xf32>
    %136 = arith.mulf %135, %133 : vector<2x32xf32>
    %137 = arith.mulf %128, %112 : vector<2x32xf32>
    %138 = arith.addf %136, %137 : vector<2x32xf32>
    %139 = arith.truncf %138 : vector<2x32xf32> to vector<2x32xbf16>
    %cst_65 = arith.constant dense<0.000000e+00> : vector<2x96xf32>
    %140 = tpu.matmul %139, %102, %cst_65 {dimension_numbers = #tpu.dot_dimension_numbers<[1], [0], [0], [1], [0, 0, 1, 1], [], []>} : vector<2x32xbf16>, vector<32x96xbf16>, vector<2x96xf32> -> vector<2x96xf32>
    %141 = vector.broadcast %106 : vector<1x96xf32> to vector<2x96xf32>
    %142 = arith.addf %140, %141 : vector<2x96xf32>
    %143 = vector.extract_strided_slice %111 {offsets = [1, 0, 0], sizes = [1, 2, 96], strides = [1, 1, 1]} : vector<8x2x96xf32> to vector<1x2x96xf32>
    %144 = vector.shape_cast %143 : vector<1x2x96xf32> to vector<2x96xf32>
    %145 = vector.extract_strided_slice %144 {offsets = [0, 0], sizes = [2, 64], strides = [1, 1]} : vector<2x96xf32> to vector<2x64xf32>
    %146 = vector.extract_strided_slice %142 {offsets = [0, 0], sizes = [2, 64], strides = [1, 1]} : vector<2x96xf32> to vector<2x64xf32>
    %147 = arith.addf %145, %146 : vector<2x64xf32>
    %148 = arith.negf %147 : vector<2x64xf32>
    %149 = math.exp %148 : vector<2x64xf32>
    %cst_66 = arith.constant 1.000000e+00 : f32
    %150 = vector.broadcast %cst_66 : f32 to vector<2x64xf32>
    %151 = arith.addf %150, %149 : vector<2x64xf32>
    %152 = arith.divf %150, %151 : vector<2x64xf32>
    %153 = vector.extract_strided_slice %152 {offsets = [0, 0], sizes = [2, 32], strides = [1, 1]} : vector<2x64xf32> to vector<2x32xf32>
    %154 = vector.extract_strided_slice %152 {offsets = [0, 32], sizes = [2, 32], strides = [1, 1]} : vector<2x64xf32> to vector<2x32xf32>
    %155 = vector.extract_strided_slice %144 {offsets = [0, 64], sizes = [2, 32], strides = [1, 1]} : vector<2x96xf32> to vector<2x32xf32>
    %156 = vector.extract_strided_slice %142 {offsets = [0, 64], sizes = [2, 32], strides = [1, 1]} : vector<2x96xf32> to vector<2x32xf32>
    %157 = arith.mulf %153, %156 : vector<2x32xf32>
    %158 = arith.addf %155, %157 : vector<2x32xf32>
    %159 = math.tanh %158 : vector<2x32xf32>
    %cst_67 = arith.constant 1.000000e+00 : f32
    %160 = vector.broadcast %cst_67 : f32 to vector<2x32xf32>
    %161 = arith.subf %160, %154 : vector<2x32xf32>
    %162 = arith.mulf %161, %159 : vector<2x32xf32>
    %163 = arith.mulf %154, %138 : vector<2x32xf32>
    %164 = arith.addf %162, %163 : vector<2x32xf32>
    %165 = arith.truncf %164 : vector<2x32xf32> to vector<2x32xbf16>
    %cst_68 = arith.constant dense<0.000000e+00> : vector<2x96xf32>
    %166 = tpu.matmul %165, %102, %cst_68 {dimension_numbers = #tpu.dot_dimension_numbers<[1], [0], [0], [1], [0, 0, 1, 1], [], []>} : vector<2x32xbf16>, vector<32x96xbf16>, vector<2x96xf32> -> vector<2x96xf32>
    %167 = vector.broadcast %106 : vector<1x96xf32> to vector<2x96xf32>
    %168 = arith.addf %166, %167 : vector<2x96xf32>
    %169 = vector.extract_strided_slice %111 {offsets = [2, 0, 0], sizes = [1, 2, 96], strides = [1, 1, 1]} : vector<8x2x96xf32> to vector<1x2x96xf32>
    %170 = vector.shape_cast %169 : vector<1x2x96xf32> to vector<2x96xf32>
    %171 = vector.extract_strided_slice %170 {offsets = [0, 0], sizes = [2, 64], strides = [1, 1]} : vector<2x96xf32> to vector<2x64xf32>
    %172 = vector.extract_strided_slice %168 {offsets = [0, 0], sizes = [2, 64], strides = [1, 1]} : vector<2x96xf32> to vector<2x64xf32>
    %173 = arith.addf %171, %172 : vector<2x64xf32>
    %174 = arith.negf %173 : vector<2x64xf32>
    %175 = math.exp %174 : vector<2x64xf32>
    %cst_69 = arith.constant 1.000000e+00 : f32
    %176 = vector.broadcast %cst_69 : f32 to vector<2x64xf32>
    %177 = arith.addf %176, %175 : vector<2x64xf32>
    %178 = arith.divf %176, %177 : vector<2x64xf32>
    %179 = vector.extract_strided_slice %178 {offsets = [0, 0], sizes = [2, 32], strides = [1, 1]} : vector<2x64xf32> to vector<2x32xf32>
    %180 = vector.extract_strided_slice %178 {offsets = [0, 32], sizes = [2, 32], strides = [1, 1]} : vector<2x64xf32> to vector<2x32xf32>
    %181 = vector.extract_strided_slice %170 {offsets = [0, 64], sizes = [2, 32], strides = [1, 1]} : vector<2x96xf32> to vector<2x32xf32>
    %182 = vector.extract_strided_slice %168 {offsets = [0, 64], sizes = [2, 32], strides = [1, 1]} : vector<2x96xf32> to vector<2x32xf32>
    %183 = arith.mulf %179, %182 : vector<2x32xf32>
    %184 = arith.addf %181, %183 : vector<2x32xf32>
    %185 = math.tanh %184 : vector<2x32xf32>
    %cst_70 = arith.constant 1.000000e+00 : f32
    %186 = vector.broadcast %cst_70 : f32 to vector<2x32xf32>
    %187 = arith.subf %186, %180 : vector<2x32xf32>
    %188 = arith.mulf %187, %185 : vector<2x32xf32>
    %189 = arith.mulf %180, %164 : vector<2x32xf32>
    %190 = arith.addf %188, %189 : vector<2x32xf32>
    %191 = arith.truncf %190 : vector<2x32xf32> to vector<2x32xbf16>
    %cst_71 = arith.constant dense<0.000000e+00> : vector<2x96xf32>
    %192 = tpu.matmul %191, %102, %cst_71 {dimension_numbers = #tpu.dot_dimension_numbers<[1], [0], [0], [1], [0, 0, 1, 1], [], []>} : vector<2x32xbf16>, vector<32x96xbf16>, vector<2x96xf32> -> vector<2x96xf32>
    %193 = vector.broadcast %106 : vector<1x96xf32> to vector<2x96xf32>
    %194 = arith.addf %192, %193 : vector<2x96xf32>
    %195 = vector.extract_strided_slice %111 {offsets = [3, 0, 0], sizes = [1, 2, 96], strides = [1, 1, 1]} : vector<8x2x96xf32> to vector<1x2x96xf32>
    %196 = vector.shape_cast %195 : vector<1x2x96xf32> to vector<2x96xf32>
    %197 = vector.extract_strided_slice %196 {offsets = [0, 0], sizes = [2, 64], strides = [1, 1]} : vector<2x96xf32> to vector<2x64xf32>
    %198 = vector.extract_strided_slice %194 {offsets = [0, 0], sizes = [2, 64], strides = [1, 1]} : vector<2x96xf32> to vector<2x64xf32>
    %199 = arith.addf %197, %198 : vector<2x64xf32>
    %200 = arith.negf %199 : vector<2x64xf32>
    %201 = math.exp %200 : vector<2x64xf32>
    %cst_72 = arith.constant 1.000000e+00 : f32
    %202 = vector.broadcast %cst_72 : f32 to vector<2x64xf32>
    %203 = arith.addf %202, %201 : vector<2x64xf32>
    %204 = arith.divf %202, %203 : vector<2x64xf32>
    %205 = vector.extract_strided_slice %204 {offsets = [0, 0], sizes = [2, 32], strides = [1, 1]} : vector<2x64xf32> to vector<2x32xf32>
    %206 = vector.extract_strided_slice %204 {offsets = [0, 32], sizes = [2, 32], strides = [1, 1]} : vector<2x64xf32> to vector<2x32xf32>
    %207 = vector.extract_strided_slice %196 {offsets = [0, 64], sizes = [2, 32], strides = [1, 1]} : vector<2x96xf32> to vector<2x32xf32>
    %208 = vector.extract_strided_slice %194 {offsets = [0, 64], sizes = [2, 32], strides = [1, 1]} : vector<2x96xf32> to vector<2x32xf32>
    %209 = arith.mulf %205, %208 : vector<2x32xf32>
    %210 = arith.addf %207, %209 : vector<2x32xf32>
    %211 = math.tanh %210 : vector<2x32xf32>
    %cst_73 = arith.constant 1.000000e+00 : f32
    %212 = vector.broadcast %cst_73 : f32 to vector<2x32xf32>
    %213 = arith.subf %212, %206 : vector<2x32xf32>
    %214 = arith.mulf %213, %211 : vector<2x32xf32>
    %215 = arith.mulf %206, %190 : vector<2x32xf32>
    %216 = arith.addf %214, %215 : vector<2x32xf32>
    %217 = arith.truncf %216 : vector<2x32xf32> to vector<2x32xbf16>
    %cst_74 = arith.constant dense<0.000000e+00> : vector<2x96xf32>
    %218 = tpu.matmul %217, %102, %cst_74 {dimension_numbers = #tpu.dot_dimension_numbers<[1], [0], [0], [1], [0, 0, 1, 1], [], []>} : vector<2x32xbf16>, vector<32x96xbf16>, vector<2x96xf32> -> vector<2x96xf32>
    %219 = vector.broadcast %106 : vector<1x96xf32> to vector<2x96xf32>
    %220 = arith.addf %218, %219 : vector<2x96xf32>
    %221 = vector.extract_strided_slice %111 {offsets = [4, 0, 0], sizes = [1, 2, 96], strides = [1, 1, 1]} : vector<8x2x96xf32> to vector<1x2x96xf32>
    %222 = vector.shape_cast %221 : vector<1x2x96xf32> to vector<2x96xf32>
    %223 = vector.extract_strided_slice %222 {offsets = [0, 0], sizes = [2, 64], strides = [1, 1]} : vector<2x96xf32> to vector<2x64xf32>
    %224 = vector.extract_strided_slice %220 {offsets = [0, 0], sizes = [2, 64], strides = [1, 1]} : vector<2x96xf32> to vector<2x64xf32>
    %225 = arith.addf %223, %224 : vector<2x64xf32>
    %226 = arith.negf %225 : vector<2x64xf32>
    %227 = math.exp %226 : vector<2x64xf32>
    %cst_75 = arith.constant 1.000000e+00 : f32
    %228 = vector.broadcast %cst_75 : f32 to vector<2x64xf32>
    %229 = arith.addf %228, %227 : vector<2x64xf32>
    %230 = arith.divf %228, %229 : vector<2x64xf32>
    %231 = vector.extract_strided_slice %230 {offsets = [0, 0], sizes = [2, 32], strides = [1, 1]} : vector<2x64xf32> to vector<2x32xf32>
    %232 = vector.extract_strided_slice %230 {offsets = [0, 32], sizes = [2, 32], strides = [1, 1]} : vector<2x64xf32> to vector<2x32xf32>
    %233 = vector.extract_strided_slice %222 {offsets = [0, 64], sizes = [2, 32], strides = [1, 1]} : vector<2x96xf32> to vector<2x32xf32>
    %234 = vector.extract_strided_slice %220 {offsets = [0, 64], sizes = [2, 32], strides = [1, 1]} : vector<2x96xf32> to vector<2x32xf32>
    %235 = arith.mulf %231, %234 : vector<2x32xf32>
    %236 = arith.addf %233, %235 : vector<2x32xf32>
    %237 = math.tanh %236 : vector<2x32xf32>
    %cst_76 = arith.constant 1.000000e+00 : f32
    %238 = vector.broadcast %cst_76 : f32 to vector<2x32xf32>
    %239 = arith.subf %238, %232 : vector<2x32xf32>
    %240 = arith.mulf %239, %237 : vector<2x32xf32>
    %241 = arith.mulf %232, %216 : vector<2x32xf32>
    %242 = arith.addf %240, %241 : vector<2x32xf32>
    %243 = arith.truncf %242 : vector<2x32xf32> to vector<2x32xbf16>
    %cst_77 = arith.constant dense<0.000000e+00> : vector<2x96xf32>
    %244 = tpu.matmul %243, %102, %cst_77 {dimension_numbers = #tpu.dot_dimension_numbers<[1], [0], [0], [1], [0, 0, 1, 1], [], []>} : vector<2x32xbf16>, vector<32x96xbf16>, vector<2x96xf32> -> vector<2x96xf32>
    %245 = vector.broadcast %106 : vector<1x96xf32> to vector<2x96xf32>
    %246 = arith.addf %244, %245 : vector<2x96xf32>
    %247 = vector.extract_strided_slice %111 {offsets = [5, 0, 0], sizes = [1, 2, 96], strides = [1, 1, 1]} : vector<8x2x96xf32> to vector<1x2x96xf32>
    %248 = vector.shape_cast %247 : vector<1x2x96xf32> to vector<2x96xf32>
    %249 = vector.extract_strided_slice %248 {offsets = [0, 0], sizes = [2, 64], strides = [1, 1]} : vector<2x96xf32> to vector<2x64xf32>
    %250 = vector.extract_strided_slice %246 {offsets = [0, 0], sizes = [2, 64], strides = [1, 1]} : vector<2x96xf32> to vector<2x64xf32>
    %251 = arith.addf %249, %250 : vector<2x64xf32>
    %252 = arith.negf %251 : vector<2x64xf32>
    %253 = math.exp %252 : vector<2x64xf32>
    %cst_78 = arith.constant 1.000000e+00 : f32
    %254 = vector.broadcast %cst_78 : f32 to vector<2x64xf32>
    %255 = arith.addf %254, %253 : vector<2x64xf32>
    %256 = arith.divf %254, %255 : vector<2x64xf32>
    %257 = vector.extract_strided_slice %256 {offsets = [0, 0], sizes = [2, 32], strides = [1, 1]} : vector<2x64xf32> to vector<2x32xf32>
    %258 = vector.extract_strided_slice %256 {offsets = [0, 32], sizes = [2, 32], strides = [1, 1]} : vector<2x64xf32> to vector<2x32xf32>
    %259 = vector.extract_strided_slice %248 {offsets = [0, 64], sizes = [2, 32], strides = [1, 1]} : vector<2x96xf32> to vector<2x32xf32>
    %260 = vector.extract_strided_slice %246 {offsets = [0, 64], sizes = [2, 32], strides = [1, 1]} : vector<2x96xf32> to vector<2x32xf32>
    %261 = arith.mulf %257, %260 : vector<2x32xf32>
    %262 = arith.addf %259, %261 : vector<2x32xf32>
    %263 = math.tanh %262 : vector<2x32xf32>
    %cst_79 = arith.constant 1.000000e+00 : f32
    %264 = vector.broadcast %cst_79 : f32 to vector<2x32xf32>
    %265 = arith.subf %264, %258 : vector<2x32xf32>
    %266 = arith.mulf %265, %263 : vector<2x32xf32>
    %267 = arith.mulf %258, %242 : vector<2x32xf32>
    %268 = arith.addf %266, %267 : vector<2x32xf32>
    %269 = arith.truncf %268 : vector<2x32xf32> to vector<2x32xbf16>
    %cst_80 = arith.constant dense<0.000000e+00> : vector<2x96xf32>
    %270 = tpu.matmul %269, %102, %cst_80 {dimension_numbers = #tpu.dot_dimension_numbers<[1], [0], [0], [1], [0, 0, 1, 1], [], []>} : vector<2x32xbf16>, vector<32x96xbf16>, vector<2x96xf32> -> vector<2x96xf32>
    %271 = vector.broadcast %106 : vector<1x96xf32> to vector<2x96xf32>
    %272 = arith.addf %270, %271 : vector<2x96xf32>
    %273 = vector.extract_strided_slice %111 {offsets = [6, 0, 0], sizes = [1, 2, 96], strides = [1, 1, 1]} : vector<8x2x96xf32> to vector<1x2x96xf32>
    %274 = vector.shape_cast %273 : vector<1x2x96xf32> to vector<2x96xf32>
    %275 = vector.extract_strided_slice %274 {offsets = [0, 0], sizes = [2, 64], strides = [1, 1]} : vector<2x96xf32> to vector<2x64xf32>
    %276 = vector.extract_strided_slice %272 {offsets = [0, 0], sizes = [2, 64], strides = [1, 1]} : vector<2x96xf32> to vector<2x64xf32>
    %277 = arith.addf %275, %276 : vector<2x64xf32>
    %278 = arith.negf %277 : vector<2x64xf32>
    %279 = math.exp %278 : vector<2x64xf32>
    %cst_81 = arith.constant 1.000000e+00 : f32
    %280 = vector.broadcast %cst_81 : f32 to vector<2x64xf32>
    %281 = arith.addf %280, %279 : vector<2x64xf32>
    %282 = arith.divf %280, %281 : vector<2x64xf32>
    %283 = vector.extract_strided_slice %282 {offsets = [0, 0], sizes = [2, 32], strides = [1, 1]} : vector<2x64xf32> to vector<2x32xf32>
    %284 = vector.extract_strided_slice %282 {offsets = [0, 32], sizes = [2, 32], strides = [1, 1]} : vector<2x64xf32> to vector<2x32xf32>
    %285 = vector.extract_strided_slice %274 {offsets = [0, 64], sizes = [2, 32], strides = [1, 1]} : vector<2x96xf32> to vector<2x32xf32>
    %286 = vector.extract_strided_slice %272 {offsets = [0, 64], sizes = [2, 32], strides = [1, 1]} : vector<2x96xf32> to vector<2x32xf32>
    %287 = arith.mulf %283, %286 : vector<2x32xf32>
    %288 = arith.addf %285, %287 : vector<2x32xf32>
    %289 = math.tanh %288 : vector<2x32xf32>
    %cst_82 = arith.constant 1.000000e+00 : f32
    %290 = vector.broadcast %cst_82 : f32 to vector<2x32xf32>
    %291 = arith.subf %290, %284 : vector<2x32xf32>
    %292 = arith.mulf %291, %289 : vector<2x32xf32>
    %293 = arith.mulf %284, %268 : vector<2x32xf32>
    %294 = arith.addf %292, %293 : vector<2x32xf32>
    %295 = arith.truncf %294 : vector<2x32xf32> to vector<2x32xbf16>
    %cst_83 = arith.constant dense<0.000000e+00> : vector<2x96xf32>
    %296 = tpu.matmul %295, %102, %cst_83 {dimension_numbers = #tpu.dot_dimension_numbers<[1], [0], [0], [1], [0, 0, 1, 1], [], []>} : vector<2x32xbf16>, vector<32x96xbf16>, vector<2x96xf32> -> vector<2x96xf32>
    %297 = vector.broadcast %106 : vector<1x96xf32> to vector<2x96xf32>
    %298 = arith.addf %296, %297 : vector<2x96xf32>
    %299 = vector.extract_strided_slice %111 {offsets = [7, 0, 0], sizes = [1, 2, 96], strides = [1, 1, 1]} : vector<8x2x96xf32> to vector<1x2x96xf32>
    %300 = vector.shape_cast %299 : vector<1x2x96xf32> to vector<2x96xf32>
    %301 = vector.extract_strided_slice %300 {offsets = [0, 0], sizes = [2, 64], strides = [1, 1]} : vector<2x96xf32> to vector<2x64xf32>
    %302 = vector.extract_strided_slice %298 {offsets = [0, 0], sizes = [2, 64], strides = [1, 1]} : vector<2x96xf32> to vector<2x64xf32>
    %303 = arith.addf %301, %302 : vector<2x64xf32>
    %304 = arith.negf %303 : vector<2x64xf32>
    %305 = math.exp %304 : vector<2x64xf32>
    %cst_84 = arith.constant 1.000000e+00 : f32
    %306 = vector.broadcast %cst_84 : f32 to vector<2x64xf32>
    %307 = arith.addf %306, %305 : vector<2x64xf32>
    %308 = arith.divf %306, %307 : vector<2x64xf32>
    %309 = vector.extract_strided_slice %308 {offsets = [0, 0], sizes = [2, 32], strides = [1, 1]} : vector<2x64xf32> to vector<2x32xf32>
    %310 = vector.extract_strided_slice %308 {offsets = [0, 32], sizes = [2, 32], strides = [1, 1]} : vector<2x64xf32> to vector<2x32xf32>
    %311 = vector.extract_strided_slice %300 {offsets = [0, 64], sizes = [2, 32], strides = [1, 1]} : vector<2x96xf32> to vector<2x32xf32>
    %312 = vector.extract_strided_slice %298 {offsets = [0, 64], sizes = [2, 32], strides = [1, 1]} : vector<2x96xf32> to vector<2x32xf32>
    %313 = arith.mulf %309, %312 : vector<2x32xf32>
    %314 = arith.addf %311, %313 : vector<2x32xf32>
    %315 = math.tanh %314 : vector<2x32xf32>
    %cst_85 = arith.constant 1.000000e+00 : f32
    %316 = vector.broadcast %cst_85 : f32 to vector<2x32xf32>
    %317 = arith.subf %316, %310 : vector<2x32xf32>
    %318 = arith.mulf %317, %315 : vector<2x32xf32>
    %319 = arith.mulf %310, %294 : vector<2x32xf32>
    %320 = arith.addf %318, %319 : vector<2x32xf32>
    %321 = vector.shape_cast %138 : vector<2x32xf32> to vector<1x2x32xf32>
    %322 = vector.shape_cast %164 : vector<2x32xf32> to vector<1x2x32xf32>
    %323 = vector.shape_cast %190 : vector<2x32xf32> to vector<1x2x32xf32>
    %324 = vector.shape_cast %216 : vector<2x32xf32> to vector<1x2x32xf32>
    %325 = vector.shape_cast %242 : vector<2x32xf32> to vector<1x2x32xf32>
    %326 = vector.shape_cast %268 : vector<2x32xf32> to vector<1x2x32xf32>
    %327 = vector.shape_cast %294 : vector<2x32xf32> to vector<1x2x32xf32>
    %328 = vector.shape_cast %320 : vector<2x32xf32> to vector<1x2x32xf32>
    %329 = tpu.concatenate %321, %322, %323, %324, %325, %326, %327, %328 in 0 : vector<1x2x32xf32>, vector<1x2x32xf32>, vector<1x2x32xf32>, vector<1x2x32xf32>, vector<1x2x32xf32>, vector<1x2x32xf32>, vector<1x2x32xf32>, vector<1x2x32xf32> -> vector<8x2x32xf32>
    %330 = vector.shape_cast %329 : vector<8x2x32xf32> to vector<16x32xf32>
    %c1 = arith.constant 1 : index
    %c0_86 = arith.constant 0 : index
    %c0_87 = arith.constant 0 : index
    %331 = vector.load %arg15[%c1, %c0_86, %c0_87] : memref<2x32x96xbf16, #tpu.memory_space<vmem>>, vector<1x32x96xbf16>
    %332 = vector.shape_cast %331 : vector<1x32x96xbf16> to vector<32x96xbf16>
    %c1_88 = arith.constant 1 : index
    %c0_89 = arith.constant 0 : index
    %c0_90 = arith.constant 0 : index
    %333 = vector.load %arg16[%c1_88, %c0_89, %c0_90] : memref<2x32x96xbf16, #tpu.memory_space<vmem>>, vector<1x32x96xbf16>
    %334 = vector.shape_cast %333 : vector<1x32x96xbf16> to vector<32x96xbf16>
    %c1_91 = arith.constant 1 : index
    %c0_92 = arith.constant 0 : index
    %c0_93 = arith.constant 0 : index
    %335 = vector.load %arg17[%c1_91, %c0_92, %c0_93] : memref<2x1x96xf32, #tpu.memory_space<vmem>>, vector<1x1x96xf32>
    %336 = vector.shape_cast %335 : vector<1x1x96xf32> to vector<1x96xf32>
    %c1_94 = arith.constant 1 : index
    %c0_95 = arith.constant 0 : index
    %c0_96 = arith.constant 0 : index
    %337 = vector.load %arg18[%c1_94, %c0_95, %c0_96] : memref<2x1x96xf32, #tpu.memory_space<vmem>>, vector<1x1x96xf32>
    %338 = vector.shape_cast %337 : vector<1x1x96xf32> to vector<1x96xf32>
    %339 = arith.truncf %330 : vector<16x32xf32> to vector<16x32xbf16>
    %cst_97 = arith.constant dense<0.000000e+00> : vector<16x96xf32>
    %340 = tpu.matmul %339, %332, %cst_97 {dimension_numbers = #tpu.dot_dimension_numbers<[1], [0], [0], [1], [0, 0, 1, 1], [], []>} : vector<16x32xbf16>, vector<32x96xbf16>, vector<16x96xf32> -> vector<16x96xf32>
    %341 = vector.broadcast %336 : vector<1x96xf32> to vector<16x96xf32>
    %342 = arith.addf %340, %341 : vector<16x96xf32>
    %343 = vector.shape_cast %342 : vector<16x96xf32> to vector<8x2x96xf32>
    %cst_98 = arith.constant 0.000000e+00 : f32
    %344 = vector.broadcast %cst_98 : f32 to vector<2x32xf32>
    %345 = arith.truncf %344 : vector<2x32xf32> to vector<2x32xbf16>
    %cst_99 = arith.constant dense<0.000000e+00> : vector<2x96xf32>
    %346 = tpu.matmul %345, %334, %cst_99 {dimension_numbers = #tpu.dot_dimension_numbers<[1], [0], [0], [1], [0, 0, 1, 1], [], []>} : vector<2x32xbf16>, vector<32x96xbf16>, vector<2x96xf32> -> vector<2x96xf32>
    %347 = vector.broadcast %338 : vector<1x96xf32> to vector<2x96xf32>
    %348 = arith.addf %346, %347 : vector<2x96xf32>
    %349 = vector.extract_strided_slice %343 {offsets = [0, 0, 0], sizes = [1, 2, 96], strides = [1, 1, 1]} : vector<8x2x96xf32> to vector<1x2x96xf32>
    %350 = vector.shape_cast %349 : vector<1x2x96xf32> to vector<2x96xf32>
    %351 = vector.extract_strided_slice %350 {offsets = [0, 0], sizes = [2, 64], strides = [1, 1]} : vector<2x96xf32> to vector<2x64xf32>
    %352 = vector.extract_strided_slice %348 {offsets = [0, 0], sizes = [2, 64], strides = [1, 1]} : vector<2x96xf32> to vector<2x64xf32>
    %353 = arith.addf %351, %352 : vector<2x64xf32>
    %354 = arith.negf %353 : vector<2x64xf32>
    %355 = math.exp %354 : vector<2x64xf32>
    %cst_100 = arith.constant 1.000000e+00 : f32
    %356 = vector.broadcast %cst_100 : f32 to vector<2x64xf32>
    %357 = arith.addf %356, %355 : vector<2x64xf32>
    %358 = arith.divf %356, %357 : vector<2x64xf32>
    %359 = vector.extract_strided_slice %358 {offsets = [0, 0], sizes = [2, 32], strides = [1, 1]} : vector<2x64xf32> to vector<2x32xf32>
    %360 = vector.extract_strided_slice %358 {offsets = [0, 32], sizes = [2, 32], strides = [1, 1]} : vector<2x64xf32> to vector<2x32xf32>
    %361 = vector.extract_strided_slice %350 {offsets = [0, 64], sizes = [2, 32], strides = [1, 1]} : vector<2x96xf32> to vector<2x32xf32>
    %362 = vector.extract_strided_slice %348 {offsets = [0, 64], sizes = [2, 32], strides = [1, 1]} : vector<2x96xf32> to vector<2x32xf32>
    %363 = arith.mulf %359, %362 : vector<2x32xf32>
    %364 = arith.addf %361, %363 : vector<2x32xf32>
    %365 = math.tanh %364 : vector<2x32xf32>
    %cst_101 = arith.constant 1.000000e+00 : f32
    %366 = vector.broadcast %cst_101 : f32 to vector<2x32xf32>
    %367 = arith.subf %366, %360 : vector<2x32xf32>
    %368 = arith.mulf %367, %365 : vector<2x32xf32>
    %369 = arith.mulf %360, %344 : vector<2x32xf32>
    %370 = arith.addf %368, %369 : vector<2x32xf32>
    %371 = arith.truncf %370 : vector<2x32xf32> to vector<2x32xbf16>
    %cst_102 = arith.constant dense<0.000000e+00> : vector<2x96xf32>
    %372 = tpu.matmul %371, %334, %cst_102 {dimension_numbers = #tpu.dot_dimension_numbers<[1], [0], [0], [1], [0, 0, 1, 1], [], []>} : vector<2x32xbf16>, vector<32x96xbf16>, vector<2x96xf32> -> vector<2x96xf32>
    %373 = vector.broadcast %338 : vector<1x96xf32> to vector<2x96xf32>
    %374 = arith.addf %372, %373 : vector<2x96xf32>
    %375 = vector.extract_strided_slice %343 {offsets = [1, 0, 0], sizes = [1, 2, 96], strides = [1, 1, 1]} : vector<8x2x96xf32> to vector<1x2x96xf32>
    %376 = vector.shape_cast %375 : vector<1x2x96xf32> to vector<2x96xf32>
    %377 = vector.extract_strided_slice %376 {offsets = [0, 0], sizes = [2, 64], strides = [1, 1]} : vector<2x96xf32> to vector<2x64xf32>
    %378 = vector.extract_strided_slice %374 {offsets = [0, 0], sizes = [2, 64], strides = [1, 1]} : vector<2x96xf32> to vector<2x64xf32>
    %379 = arith.addf %377, %378 : vector<2x64xf32>
    %380 = arith.negf %379 : vector<2x64xf32>
    %381 = math.exp %380 : vector<2x64xf32>
    %cst_103 = arith.constant 1.000000e+00 : f32
    %382 = vector.broadcast %cst_103 : f32 to vector<2x64xf32>
    %383 = arith.addf %382, %381 : vector<2x64xf32>
    %384 = arith.divf %382, %383 : vector<2x64xf32>
    %385 = vector.extract_strided_slice %384 {offsets = [0, 0], sizes = [2, 32], strides = [1, 1]} : vector<2x64xf32> to vector<2x32xf32>
    %386 = vector.extract_strided_slice %384 {offsets = [0, 32], sizes = [2, 32], strides = [1, 1]} : vector<2x64xf32> to vector<2x32xf32>
    %387 = vector.extract_strided_slice %376 {offsets = [0, 64], sizes = [2, 32], strides = [1, 1]} : vector<2x96xf32> to vector<2x32xf32>
    %388 = vector.extract_strided_slice %374 {offsets = [0, 64], sizes = [2, 32], strides = [1, 1]} : vector<2x96xf32> to vector<2x32xf32>
    %389 = arith.mulf %385, %388 : vector<2x32xf32>
    %390 = arith.addf %387, %389 : vector<2x32xf32>
    %391 = math.tanh %390 : vector<2x32xf32>
    %cst_104 = arith.constant 1.000000e+00 : f32
    %392 = vector.broadcast %cst_104 : f32 to vector<2x32xf32>
    %393 = arith.subf %392, %386 : vector<2x32xf32>
    %394 = arith.mulf %393, %391 : vector<2x32xf32>
    %395 = arith.mulf %386, %370 : vector<2x32xf32>
    %396 = arith.addf %394, %395 : vector<2x32xf32>
    %397 = arith.truncf %396 : vector<2x32xf32> to vector<2x32xbf16>
    %cst_105 = arith.constant dense<0.000000e+00> : vector<2x96xf32>
    %398 = tpu.matmul %397, %334, %cst_105 {dimension_numbers = #tpu.dot_dimension_numbers<[1], [0], [0], [1], [0, 0, 1, 1], [], []>} : vector<2x32xbf16>, vector<32x96xbf16>, vector<2x96xf32> -> vector<2x96xf32>
    %399 = vector.broadcast %338 : vector<1x96xf32> to vector<2x96xf32>
    %400 = arith.addf %398, %399 : vector<2x96xf32>
    %401 = vector.extract_strided_slice %343 {offsets = [2, 0, 0], sizes = [1, 2, 96], strides = [1, 1, 1]} : vector<8x2x96xf32> to vector<1x2x96xf32>
    %402 = vector.shape_cast %401 : vector<1x2x96xf32> to vector<2x96xf32>
    %403 = vector.extract_strided_slice %402 {offsets = [0, 0], sizes = [2, 64], strides = [1, 1]} : vector<2x96xf32> to vector<2x64xf32>
    %404 = vector.extract_strided_slice %400 {offsets = [0, 0], sizes = [2, 64], strides = [1, 1]} : vector<2x96xf32> to vector<2x64xf32>
    %405 = arith.addf %403, %404 : vector<2x64xf32>
    %406 = arith.negf %405 : vector<2x64xf32>
    %407 = math.exp %406 : vector<2x64xf32>
    %cst_106 = arith.constant 1.000000e+00 : f32
    %408 = vector.broadcast %cst_106 : f32 to vector<2x64xf32>
    %409 = arith.addf %408, %407 : vector<2x64xf32>
    %410 = arith.divf %408, %409 : vector<2x64xf32>
    %411 = vector.extract_strided_slice %410 {offsets = [0, 0], sizes = [2, 32], strides = [1, 1]} : vector<2x64xf32> to vector<2x32xf32>
    %412 = vector.extract_strided_slice %410 {offsets = [0, 32], sizes = [2, 32], strides = [1, 1]} : vector<2x64xf32> to vector<2x32xf32>
    %413 = vector.extract_strided_slice %402 {offsets = [0, 64], sizes = [2, 32], strides = [1, 1]} : vector<2x96xf32> to vector<2x32xf32>
    %414 = vector.extract_strided_slice %400 {offsets = [0, 64], sizes = [2, 32], strides = [1, 1]} : vector<2x96xf32> to vector<2x32xf32>
    %415 = arith.mulf %411, %414 : vector<2x32xf32>
    %416 = arith.addf %413, %415 : vector<2x32xf32>
    %417 = math.tanh %416 : vector<2x32xf32>
    %cst_107 = arith.constant 1.000000e+00 : f32
    %418 = vector.broadcast %cst_107 : f32 to vector<2x32xf32>
    %419 = arith.subf %418, %412 : vector<2x32xf32>
    %420 = arith.mulf %419, %417 : vector<2x32xf32>
    %421 = arith.mulf %412, %396 : vector<2x32xf32>
    %422 = arith.addf %420, %421 : vector<2x32xf32>
    %423 = arith.truncf %422 : vector<2x32xf32> to vector<2x32xbf16>
    %cst_108 = arith.constant dense<0.000000e+00> : vector<2x96xf32>
    %424 = tpu.matmul %423, %334, %cst_108 {dimension_numbers = #tpu.dot_dimension_numbers<[1], [0], [0], [1], [0, 0, 1, 1], [], []>} : vector<2x32xbf16>, vector<32x96xbf16>, vector<2x96xf32> -> vector<2x96xf32>
    %425 = vector.broadcast %338 : vector<1x96xf32> to vector<2x96xf32>
    %426 = arith.addf %424, %425 : vector<2x96xf32>
    %427 = vector.extract_strided_slice %343 {offsets = [3, 0, 0], sizes = [1, 2, 96], strides = [1, 1, 1]} : vector<8x2x96xf32> to vector<1x2x96xf32>
    %428 = vector.shape_cast %427 : vector<1x2x96xf32> to vector<2x96xf32>
    %429 = vector.extract_strided_slice %428 {offsets = [0, 0], sizes = [2, 64], strides = [1, 1]} : vector<2x96xf32> to vector<2x64xf32>
    %430 = vector.extract_strided_slice %426 {offsets = [0, 0], sizes = [2, 64], strides = [1, 1]} : vector<2x96xf32> to vector<2x64xf32>
    %431 = arith.addf %429, %430 : vector<2x64xf32>
    %432 = arith.negf %431 : vector<2x64xf32>
    %433 = math.exp %432 : vector<2x64xf32>
    %cst_109 = arith.constant 1.000000e+00 : f32
    %434 = vector.broadcast %cst_109 : f32 to vector<2x64xf32>
    %435 = arith.addf %434, %433 : vector<2x64xf32>
    %436 = arith.divf %434, %435 : vector<2x64xf32>
    %437 = vector.extract_strided_slice %436 {offsets = [0, 0], sizes = [2, 32], strides = [1, 1]} : vector<2x64xf32> to vector<2x32xf32>
    %438 = vector.extract_strided_slice %436 {offsets = [0, 32], sizes = [2, 32], strides = [1, 1]} : vector<2x64xf32> to vector<2x32xf32>
    %439 = vector.extract_strided_slice %428 {offsets = [0, 64], sizes = [2, 32], strides = [1, 1]} : vector<2x96xf32> to vector<2x32xf32>
    %440 = vector.extract_strided_slice %426 {offsets = [0, 64], sizes = [2, 32], strides = [1, 1]} : vector<2x96xf32> to vector<2x32xf32>
    %441 = arith.mulf %437, %440 : vector<2x32xf32>
    %442 = arith.addf %439, %441 : vector<2x32xf32>
    %443 = math.tanh %442 : vector<2x32xf32>
    %cst_110 = arith.constant 1.000000e+00 : f32
    %444 = vector.broadcast %cst_110 : f32 to vector<2x32xf32>
    %445 = arith.subf %444, %438 : vector<2x32xf32>
    %446 = arith.mulf %445, %443 : vector<2x32xf32>
    %447 = arith.mulf %438, %422 : vector<2x32xf32>
    %448 = arith.addf %446, %447 : vector<2x32xf32>
    %449 = arith.truncf %448 : vector<2x32xf32> to vector<2x32xbf16>
    %cst_111 = arith.constant dense<0.000000e+00> : vector<2x96xf32>
    %450 = tpu.matmul %449, %334, %cst_111 {dimension_numbers = #tpu.dot_dimension_numbers<[1], [0], [0], [1], [0, 0, 1, 1], [], []>} : vector<2x32xbf16>, vector<32x96xbf16>, vector<2x96xf32> -> vector<2x96xf32>
    %451 = vector.broadcast %338 : vector<1x96xf32> to vector<2x96xf32>
    %452 = arith.addf %450, %451 : vector<2x96xf32>
    %453 = vector.extract_strided_slice %343 {offsets = [4, 0, 0], sizes = [1, 2, 96], strides = [1, 1, 1]} : vector<8x2x96xf32> to vector<1x2x96xf32>
    %454 = vector.shape_cast %453 : vector<1x2x96xf32> to vector<2x96xf32>
    %455 = vector.extract_strided_slice %454 {offsets = [0, 0], sizes = [2, 64], strides = [1, 1]} : vector<2x96xf32> to vector<2x64xf32>
    %456 = vector.extract_strided_slice %452 {offsets = [0, 0], sizes = [2, 64], strides = [1, 1]} : vector<2x96xf32> to vector<2x64xf32>
    %457 = arith.addf %455, %456 : vector<2x64xf32>
    %458 = arith.negf %457 : vector<2x64xf32>
    %459 = math.exp %458 : vector<2x64xf32>
    %cst_112 = arith.constant 1.000000e+00 : f32
    %460 = vector.broadcast %cst_112 : f32 to vector<2x64xf32>
    %461 = arith.addf %460, %459 : vector<2x64xf32>
    %462 = arith.divf %460, %461 : vector<2x64xf32>
    %463 = vector.extract_strided_slice %462 {offsets = [0, 0], sizes = [2, 32], strides = [1, 1]} : vector<2x64xf32> to vector<2x32xf32>
    %464 = vector.extract_strided_slice %462 {offsets = [0, 32], sizes = [2, 32], strides = [1, 1]} : vector<2x64xf32> to vector<2x32xf32>
    %465 = vector.extract_strided_slice %454 {offsets = [0, 64], sizes = [2, 32], strides = [1, 1]} : vector<2x96xf32> to vector<2x32xf32>
    %466 = vector.extract_strided_slice %452 {offsets = [0, 64], sizes = [2, 32], strides = [1, 1]} : vector<2x96xf32> to vector<2x32xf32>
    %467 = arith.mulf %463, %466 : vector<2x32xf32>
    %468 = arith.addf %465, %467 : vector<2x32xf32>
    %469 = math.tanh %468 : vector<2x32xf32>
    %cst_113 = arith.constant 1.000000e+00 : f32
    %470 = vector.broadcast %cst_113 : f32 to vector<2x32xf32>
    %471 = arith.subf %470, %464 : vector<2x32xf32>
    %472 = arith.mulf %471, %469 : vector<2x32xf32>
    %473 = arith.mulf %464, %448 : vector<2x32xf32>
    %474 = arith.addf %472, %473 : vector<2x32xf32>
    %475 = arith.truncf %474 : vector<2x32xf32> to vector<2x32xbf16>
    %cst_114 = arith.constant dense<0.000000e+00> : vector<2x96xf32>
    %476 = tpu.matmul %475, %334, %cst_114 {dimension_numbers = #tpu.dot_dimension_numbers<[1], [0], [0], [1], [0, 0, 1, 1], [], []>} : vector<2x32xbf16>, vector<32x96xbf16>, vector<2x96xf32> -> vector<2x96xf32>
    %477 = vector.broadcast %338 : vector<1x96xf32> to vector<2x96xf32>
    %478 = arith.addf %476, %477 : vector<2x96xf32>
    %479 = vector.extract_strided_slice %343 {offsets = [5, 0, 0], sizes = [1, 2, 96], strides = [1, 1, 1]} : vector<8x2x96xf32> to vector<1x2x96xf32>
    %480 = vector.shape_cast %479 : vector<1x2x96xf32> to vector<2x96xf32>
    %481 = vector.extract_strided_slice %480 {offsets = [0, 0], sizes = [2, 64], strides = [1, 1]} : vector<2x96xf32> to vector<2x64xf32>
    %482 = vector.extract_strided_slice %478 {offsets = [0, 0], sizes = [2, 64], strides = [1, 1]} : vector<2x96xf32> to vector<2x64xf32>
    %483 = arith.addf %481, %482 : vector<2x64xf32>
    %484 = arith.negf %483 : vector<2x64xf32>
    %485 = math.exp %484 : vector<2x64xf32>
    %cst_115 = arith.constant 1.000000e+00 : f32
    %486 = vector.broadcast %cst_115 : f32 to vector<2x64xf32>
    %487 = arith.addf %486, %485 : vector<2x64xf32>
    %488 = arith.divf %486, %487 : vector<2x64xf32>
    %489 = vector.extract_strided_slice %488 {offsets = [0, 0], sizes = [2, 32], strides = [1, 1]} : vector<2x64xf32> to vector<2x32xf32>
    %490 = vector.extract_strided_slice %488 {offsets = [0, 32], sizes = [2, 32], strides = [1, 1]} : vector<2x64xf32> to vector<2x32xf32>
    %491 = vector.extract_strided_slice %480 {offsets = [0, 64], sizes = [2, 32], strides = [1, 1]} : vector<2x96xf32> to vector<2x32xf32>
    %492 = vector.extract_strided_slice %478 {offsets = [0, 64], sizes = [2, 32], strides = [1, 1]} : vector<2x96xf32> to vector<2x32xf32>
    %493 = arith.mulf %489, %492 : vector<2x32xf32>
    %494 = arith.addf %491, %493 : vector<2x32xf32>
    %495 = math.tanh %494 : vector<2x32xf32>
    %cst_116 = arith.constant 1.000000e+00 : f32
    %496 = vector.broadcast %cst_116 : f32 to vector<2x32xf32>
    %497 = arith.subf %496, %490 : vector<2x32xf32>
    %498 = arith.mulf %497, %495 : vector<2x32xf32>
    %499 = arith.mulf %490, %474 : vector<2x32xf32>
    %500 = arith.addf %498, %499 : vector<2x32xf32>
    %501 = arith.truncf %500 : vector<2x32xf32> to vector<2x32xbf16>
    %cst_117 = arith.constant dense<0.000000e+00> : vector<2x96xf32>
    %502 = tpu.matmul %501, %334, %cst_117 {dimension_numbers = #tpu.dot_dimension_numbers<[1], [0], [0], [1], [0, 0, 1, 1], [], []>} : vector<2x32xbf16>, vector<32x96xbf16>, vector<2x96xf32> -> vector<2x96xf32>
    %503 = vector.broadcast %338 : vector<1x96xf32> to vector<2x96xf32>
    %504 = arith.addf %502, %503 : vector<2x96xf32>
    %505 = vector.extract_strided_slice %343 {offsets = [6, 0, 0], sizes = [1, 2, 96], strides = [1, 1, 1]} : vector<8x2x96xf32> to vector<1x2x96xf32>
    %506 = vector.shape_cast %505 : vector<1x2x96xf32> to vector<2x96xf32>
    %507 = vector.extract_strided_slice %506 {offsets = [0, 0], sizes = [2, 64], strides = [1, 1]} : vector<2x96xf32> to vector<2x64xf32>
    %508 = vector.extract_strided_slice %504 {offsets = [0, 0], sizes = [2, 64], strides = [1, 1]} : vector<2x96xf32> to vector<2x64xf32>
    %509 = arith.addf %507, %508 : vector<2x64xf32>
    %510 = arith.negf %509 : vector<2x64xf32>
    %511 = math.exp %510 : vector<2x64xf32>
    %cst_118 = arith.constant 1.000000e+00 : f32
    %512 = vector.broadcast %cst_118 : f32 to vector<2x64xf32>
    %513 = arith.addf %512, %511 : vector<2x64xf32>
    %514 = arith.divf %512, %513 : vector<2x64xf32>
    %515 = vector.extract_strided_slice %514 {offsets = [0, 0], sizes = [2, 32], strides = [1, 1]} : vector<2x64xf32> to vector<2x32xf32>
    %516 = vector.extract_strided_slice %514 {offsets = [0, 32], sizes = [2, 32], strides = [1, 1]} : vector<2x64xf32> to vector<2x32xf32>
    %517 = vector.extract_strided_slice %506 {offsets = [0, 64], sizes = [2, 32], strides = [1, 1]} : vector<2x96xf32> to vector<2x32xf32>
    %518 = vector.extract_strided_slice %504 {offsets = [0, 64], sizes = [2, 32], strides = [1, 1]} : vector<2x96xf32> to vector<2x32xf32>
    %519 = arith.mulf %515, %518 : vector<2x32xf32>
    %520 = arith.addf %517, %519 : vector<2x32xf32>
    %521 = math.tanh %520 : vector<2x32xf32>
    %cst_119 = arith.constant 1.000000e+00 : f32
    %522 = vector.broadcast %cst_119 : f32 to vector<2x32xf32>
    %523 = arith.subf %522, %516 : vector<2x32xf32>
    %524 = arith.mulf %523, %521 : vector<2x32xf32>
    %525 = arith.mulf %516, %500 : vector<2x32xf32>
    %526 = arith.addf %524, %525 : vector<2x32xf32>
    %527 = arith.truncf %526 : vector<2x32xf32> to vector<2x32xbf16>
    %cst_120 = arith.constant dense<0.000000e+00> : vector<2x96xf32>
    %528 = tpu.matmul %527, %334, %cst_120 {dimension_numbers = #tpu.dot_dimension_numbers<[1], [0], [0], [1], [0, 0, 1, 1], [], []>} : vector<2x32xbf16>, vector<32x96xbf16>, vector<2x96xf32> -> vector<2x96xf32>
    %529 = vector.broadcast %338 : vector<1x96xf32> to vector<2x96xf32>
    %530 = arith.addf %528, %529 : vector<2x96xf32>
    %531 = vector.extract_strided_slice %343 {offsets = [7, 0, 0], sizes = [1, 2, 96], strides = [1, 1, 1]} : vector<8x2x96xf32> to vector<1x2x96xf32>
    %532 = vector.shape_cast %531 : vector<1x2x96xf32> to vector<2x96xf32>
    %533 = vector.extract_strided_slice %532 {offsets = [0, 0], sizes = [2, 64], strides = [1, 1]} : vector<2x96xf32> to vector<2x64xf32>
    %534 = vector.extract_strided_slice %530 {offsets = [0, 0], sizes = [2, 64], strides = [1, 1]} : vector<2x96xf32> to vector<2x64xf32>
    %535 = arith.addf %533, %534 : vector<2x64xf32>
    %536 = arith.negf %535 : vector<2x64xf32>
    %537 = math.exp %536 : vector<2x64xf32>
    %cst_121 = arith.constant 1.000000e+00 : f32
    %538 = vector.broadcast %cst_121 : f32 to vector<2x64xf32>
    %539 = arith.addf %538, %537 : vector<2x64xf32>
    %540 = arith.divf %538, %539 : vector<2x64xf32>
    %541 = vector.extract_strided_slice %540 {offsets = [0, 0], sizes = [2, 32], strides = [1, 1]} : vector<2x64xf32> to vector<2x32xf32>
    %542 = vector.extract_strided_slice %540 {offsets = [0, 32], sizes = [2, 32], strides = [1, 1]} : vector<2x64xf32> to vector<2x32xf32>
    %543 = vector.extract_strided_slice %532 {offsets = [0, 64], sizes = [2, 32], strides = [1, 1]} : vector<2x96xf32> to vector<2x32xf32>
    %544 = vector.extract_strided_slice %530 {offsets = [0, 64], sizes = [2, 32], strides = [1, 1]} : vector<2x96xf32> to vector<2x32xf32>
    %545 = arith.mulf %541, %544 : vector<2x32xf32>
    %546 = arith.addf %543, %545 : vector<2x32xf32>
    %547 = math.tanh %546 : vector<2x32xf32>
    %cst_122 = arith.constant 1.000000e+00 : f32
    %548 = vector.broadcast %cst_122 : f32 to vector<2x32xf32>
    %549 = arith.subf %548, %542 : vector<2x32xf32>
    %550 = arith.mulf %549, %547 : vector<2x32xf32>
    %551 = arith.mulf %542, %526 : vector<2x32xf32>
    %552 = arith.addf %550, %551 : vector<2x32xf32>
    %553 = vector.shape_cast %370 : vector<2x32xf32> to vector<2x1x32xf32>
    %554 = vector.shape_cast %396 : vector<2x32xf32> to vector<2x1x32xf32>
    %555 = vector.shape_cast %422 : vector<2x32xf32> to vector<2x1x32xf32>
    %556 = vector.shape_cast %448 : vector<2x32xf32> to vector<2x1x32xf32>
    %557 = vector.shape_cast %474 : vector<2x32xf32> to vector<2x1x32xf32>
    %558 = vector.shape_cast %500 : vector<2x32xf32> to vector<2x1x32xf32>
    %559 = vector.shape_cast %526 : vector<2x32xf32> to vector<2x1x32xf32>
    %560 = vector.shape_cast %552 : vector<2x32xf32> to vector<2x1x32xf32>
    %561 = tpu.concatenate %553, %554, %555, %556, %557, %558, %559, %560 in 1 : vector<2x1x32xf32>, vector<2x1x32xf32>, vector<2x1x32xf32>, vector<2x1x32xf32>, vector<2x1x32xf32>, vector<2x1x32xf32>, vector<2x1x32xf32>, vector<2x1x32xf32> -> vector<2x8x32xf32>
    %562 = vector.shape_cast %561 : vector<2x8x32xf32> to vector<16x32xf32>
    %c0_123 = arith.constant 0 : index
    %c0_124 = arith.constant 0 : index
    %563 = vector.load %arg2[%c0_123, %c0_124] : memref<2x8xf32, #tpu.memory_space<vmem>>, vector<2x8xf32>
    %cst_125 = arith.constant 1.000000e+00 : f32
    %564 = vector.broadcast %cst_125 : f32 to vector<2x8xf32>
    %565 = arith.subf %564, %563 : vector<2x8xf32>
    %cst_126 = arith.constant -1.000000e+04 : f32
    %566 = vector.broadcast %cst_126 : f32 to vector<2x8xf32>
    %567 = arith.mulf %565, %566 : vector<2x8xf32>
    %568 = vector.shape_cast %567 : vector<2x8xf32> to vector<2x1x8xf32>
    %569 = arith.truncf %562 : vector<16x32xf32> to vector<16x32xbf16>
    %c0_127 = arith.constant 0 : index
    %c0_128 = arith.constant 0 : index
    %570 = vector.load %arg19[%c0_127, %c0_128] : memref<32x96xbf16, #tpu.memory_space<vmem>>, vector<32x96xbf16>
    %cst_129 = arith.constant dense<0.000000e+00> : vector<16x96xf32>
    %571 = tpu.matmul %569, %570, %cst_129 {dimension_numbers = #tpu.dot_dimension_numbers<[1], [0], [0], [1], [0, 0, 1, 1], [], []>} : vector<16x32xbf16>, vector<32x96xbf16>, vector<16x96xf32> -> vector<16x96xf32>
    %c0_130 = arith.constant 0 : index
    %c0_131 = arith.constant 0 : index
    %572 = vector.load %arg20[%c0_130, %c0_131] : memref<1x96xf32, #tpu.memory_space<vmem>>, vector<1x96xf32>
    %573 = vector.broadcast %572 : vector<1x96xf32> to vector<16x96xf32>
    %574 = arith.addf %571, %573 : vector<16x96xf32>
    %575 = vector.extract_strided_slice %574 {offsets = [0, 0], sizes = [16, 8], strides = [1, 1]} : vector<16x96xf32> to vector<16x8xf32>
    %576 = vector.shape_cast %575 : vector<16x8xf32> to vector<2x8x8xf32>
    %577 = vector.extract_strided_slice %574 {offsets = [0, 32], sizes = [16, 8], strides = [1, 1]} : vector<16x96xf32> to vector<16x8xf32>
    %578 = vector.shape_cast %577 : vector<16x8xf32> to vector<2x8x8xf32>
    %579 = vector.extract_strided_slice %574 {offsets = [0, 64], sizes = [16, 8], strides = [1, 1]} : vector<16x96xf32> to vector<16x8xf32>
    %580 = vector.shape_cast %579 : vector<16x8xf32> to vector<2x8x8xf32>
    %581 = arith.truncf %576 : vector<2x8x8xf32> to vector<2x8x8xbf16>
    %582 = arith.truncf %578 : vector<2x8x8xf32> to vector<2x8x8xbf16>
    "tpu.trace_start"() <{level = 10 : i32, message = "bqd,bkd->bqk"}> : () -> ()
    %cst_132 = arith.constant dense<0.000000e+00> : vector<2x8x8xf32>
    %583 = tpu.matmul %581, %582, %cst_132 {dimension_numbers = #tpu.dot_dimension_numbers<[2], [2], [1], [1], [0, 0, 0, 1, 1, 1], [0], [0]>} : vector<2x8x8xbf16>, vector<2x8x8xbf16>, vector<2x8x8xf32> -> vector<2x8x8xf32>
    "tpu.trace_stop"() : () -> ()
    %cst_133 = arith.constant 0.353553385 : f32
    %584 = vector.broadcast %cst_133 : f32 to vector<2x8x8xf32>
    %585 = arith.mulf %583, %584 : vector<2x8x8xf32>
    %586 = vector.broadcast %568 : vector<2x1x8xf32> to vector<2x8x8xf32>
    %587 = arith.addf %585, %586 : vector<2x8x8xf32>
    %cst_134 = arith.constant dense<0xFF800000> : vector<2x8xf32>
    %588 = vector.multi_reduction <maximumf>, %587, %cst_134 [2] : vector<2x8x8xf32> to vector<2x8xf32>
    %589 = vector.shape_cast %588 : vector<2x8xf32> to vector<2x8x1xf32>
    %590 = vector.broadcast %589 : vector<2x8x1xf32> to vector<2x8x8xf32>
    %591 = arith.subf %587, %590 : vector<2x8x8xf32>
    %592 = math.exp %591 : vector<2x8x8xf32>
    %cst_135 = arith.constant dense<0.000000e+00> : vector<2x8xf32>
    %593 = vector.multi_reduction <add>, %592, %cst_135 [2] : vector<2x8x8xf32> to vector<2x8xf32>
    %594 = vector.shape_cast %593 : vector<2x8xf32> to vector<2x8x1xf32>
    %595 = tpu.reciprocal %594 {approx = true} : vector<2x8x1xf32> -> vector<2x8x1xf32>
    %596 = vector.broadcast %595 : vector<2x8x1xf32> to vector<2x8x8xf32>
    %597 = arith.mulf %592, %596 : vector<2x8x8xf32>
    %598 = arith.truncf %597 : vector<2x8x8xf32> to vector<2x8x8xbf16>
    %599 = arith.truncf %580 : vector<2x8x8xf32> to vector<2x8x8xbf16>
    "tpu.trace_start"() <{level = 10 : i32, message = "bqk,bkd->bqd"}> : () -> ()
    %cst_136 = arith.constant dense<0.000000e+00> : vector<2x8x8xf32>
    %600 = tpu.matmul %598, %599, %cst_136 {dimension_numbers = #tpu.dot_dimension_numbers<[2], [1], [1], [2], [0, 0, 0, 1, 1, 2], [0], [0]>} : vector<2x8x8xbf16>, vector<2x8x8xbf16>, vector<2x8x8xf32> -> vector<2x8x8xf32>
    "tpu.trace_stop"() : () -> ()
    %601 = vector.shape_cast %600 : vector<2x8x8xf32> to vector<16x8xf32>
    %602 = vector.extract_strided_slice %574 {offsets = [0, 8], sizes = [16, 8], strides = [1, 1]} : vector<16x96xf32> to vector<16x8xf32>
    %603 = vector.shape_cast %602 : vector<16x8xf32> to vector<2x8x8xf32>
    %604 = vector.extract_strided_slice %574 {offsets = [0, 40], sizes = [16, 8], strides = [1, 1]} : vector<16x96xf32> to vector<16x8xf32>
    %605 = vector.shape_cast %604 : vector<16x8xf32> to vector<2x8x8xf32>
    %606 = vector.extract_strided_slice %574 {offsets = [0, 72], sizes = [16, 8], strides = [1, 1]} : vector<16x96xf32> to vector<16x8xf32>
    %607 = vector.shape_cast %606 : vector<16x8xf32> to vector<2x8x8xf32>
    %608 = arith.truncf %603 : vector<2x8x8xf32> to vector<2x8x8xbf16>
    %609 = arith.truncf %605 : vector<2x8x8xf32> to vector<2x8x8xbf16>
    "tpu.trace_start"() <{level = 10 : i32, message = "bqd,bkd->bqk"}> : () -> ()
    %cst_137 = arith.constant dense<0.000000e+00> : vector<2x8x8xf32>
    %610 = tpu.matmul %608, %609, %cst_137 {dimension_numbers = #tpu.dot_dimension_numbers<[2], [2], [1], [1], [0, 0, 0, 1, 1, 1], [0], [0]>} : vector<2x8x8xbf16>, vector<2x8x8xbf16>, vector<2x8x8xf32> -> vector<2x8x8xf32>
    "tpu.trace_stop"() : () -> ()
    %cst_138 = arith.constant 0.353553385 : f32
    %611 = vector.broadcast %cst_138 : f32 to vector<2x8x8xf32>
    %612 = arith.mulf %610, %611 : vector<2x8x8xf32>
    %613 = vector.broadcast %568 : vector<2x1x8xf32> to vector<2x8x8xf32>
    %614 = arith.addf %612, %613 : vector<2x8x8xf32>
    %cst_139 = arith.constant dense<0xFF800000> : vector<2x8xf32>
    %615 = vector.multi_reduction <maximumf>, %614, %cst_139 [2] : vector<2x8x8xf32> to vector<2x8xf32>
    %616 = vector.shape_cast %615 : vector<2x8xf32> to vector<2x8x1xf32>
    %617 = vector.broadcast %616 : vector<2x8x1xf32> to vector<2x8x8xf32>
    %618 = arith.subf %614, %617 : vector<2x8x8xf32>
    %619 = math.exp %618 : vector<2x8x8xf32>
    %cst_140 = arith.constant dense<0.000000e+00> : vector<2x8xf32>
    %620 = vector.multi_reduction <add>, %619, %cst_140 [2] : vector<2x8x8xf32> to vector<2x8xf32>
    %621 = vector.shape_cast %620 : vector<2x8xf32> to vector<2x8x1xf32>
    %622 = tpu.reciprocal %621 {approx = true} : vector<2x8x1xf32> -> vector<2x8x1xf32>
    %623 = vector.broadcast %622 : vector<2x8x1xf32> to vector<2x8x8xf32>
    %624 = arith.mulf %619, %623 : vector<2x8x8xf32>
    %625 = arith.truncf %624 : vector<2x8x8xf32> to vector<2x8x8xbf16>
    %626 = arith.truncf %607 : vector<2x8x8xf32> to vector<2x8x8xbf16>
    "tpu.trace_start"() <{level = 10 : i32, message = "bqk,bkd->bqd"}> : () -> ()
    %cst_141 = arith.constant dense<0.000000e+00> : vector<2x8x8xf32>
    %627 = tpu.matmul %625, %626, %cst_141 {dimension_numbers = #tpu.dot_dimension_numbers<[2], [1], [1], [2], [0, 0, 0, 1, 1, 2], [0], [0]>} : vector<2x8x8xbf16>, vector<2x8x8xbf16>, vector<2x8x8xf32> -> vector<2x8x8xf32>
    "tpu.trace_stop"() : () -> ()
    %628 = vector.shape_cast %627 : vector<2x8x8xf32> to vector<16x8xf32>
    %629 = vector.extract_strided_slice %574 {offsets = [0, 16], sizes = [16, 8], strides = [1, 1]} : vector<16x96xf32> to vector<16x8xf32>
    %630 = vector.shape_cast %629 : vector<16x8xf32> to vector<2x8x8xf32>
    %631 = vector.extract_strided_slice %574 {offsets = [0, 48], sizes = [16, 8], strides = [1, 1]} : vector<16x96xf32> to vector<16x8xf32>
    %632 = vector.shape_cast %631 : vector<16x8xf32> to vector<2x8x8xf32>
    %633 = vector.extract_strided_slice %574 {offsets = [0, 80], sizes = [16, 8], strides = [1, 1]} : vector<16x96xf32> to vector<16x8xf32>
    %634 = vector.shape_cast %633 : vector<16x8xf32> to vector<2x8x8xf32>
    %635 = arith.truncf %630 : vector<2x8x8xf32> to vector<2x8x8xbf16>
    %636 = arith.truncf %632 : vector<2x8x8xf32> to vector<2x8x8xbf16>
    "tpu.trace_start"() <{level = 10 : i32, message = "bqd,bkd->bqk"}> : () -> ()
    %cst_142 = arith.constant dense<0.000000e+00> : vector<2x8x8xf32>
    %637 = tpu.matmul %635, %636, %cst_142 {dimension_numbers = #tpu.dot_dimension_numbers<[2], [2], [1], [1], [0, 0, 0, 1, 1, 1], [0], [0]>} : vector<2x8x8xbf16>, vector<2x8x8xbf16>, vector<2x8x8xf32> -> vector<2x8x8xf32>
    "tpu.trace_stop"() : () -> ()
    %cst_143 = arith.constant 0.353553385 : f32
    %638 = vector.broadcast %cst_143 : f32 to vector<2x8x8xf32>
    %639 = arith.mulf %637, %638 : vector<2x8x8xf32>
    %640 = vector.broadcast %568 : vector<2x1x8xf32> to vector<2x8x8xf32>
    %641 = arith.addf %639, %640 : vector<2x8x8xf32>
    %cst_144 = arith.constant dense<0xFF800000> : vector<2x8xf32>
    %642 = vector.multi_reduction <maximumf>, %641, %cst_144 [2] : vector<2x8x8xf32> to vector<2x8xf32>
    %643 = vector.shape_cast %642 : vector<2x8xf32> to vector<2x8x1xf32>
    %644 = vector.broadcast %643 : vector<2x8x1xf32> to vector<2x8x8xf32>
    %645 = arith.subf %641, %644 : vector<2x8x8xf32>
    %646 = math.exp %645 : vector<2x8x8xf32>
    %cst_145 = arith.constant dense<0.000000e+00> : vector<2x8xf32>
    %647 = vector.multi_reduction <add>, %646, %cst_145 [2] : vector<2x8x8xf32> to vector<2x8xf32>
    %648 = vector.shape_cast %647 : vector<2x8xf32> to vector<2x8x1xf32>
    %649 = tpu.reciprocal %648 {approx = true} : vector<2x8x1xf32> -> vector<2x8x1xf32>
    %650 = vector.broadcast %649 : vector<2x8x1xf32> to vector<2x8x8xf32>
    %651 = arith.mulf %646, %650 : vector<2x8x8xf32>
    %652 = arith.truncf %651 : vector<2x8x8xf32> to vector<2x8x8xbf16>
    %653 = arith.truncf %634 : vector<2x8x8xf32> to vector<2x8x8xbf16>
    "tpu.trace_start"() <{level = 10 : i32, message = "bqk,bkd->bqd"}> : () -> ()
    %cst_146 = arith.constant dense<0.000000e+00> : vector<2x8x8xf32>
    %654 = tpu.matmul %652, %653, %cst_146 {dimension_numbers = #tpu.dot_dimension_numbers<[2], [1], [1], [2], [0, 0, 0, 1, 1, 2], [0], [0]>} : vector<2x8x8xbf16>, vector<2x8x8xbf16>, vector<2x8x8xf32> -> vector<2x8x8xf32>
    "tpu.trace_stop"() : () -> ()
    %655 = vector.shape_cast %654 : vector<2x8x8xf32> to vector<16x8xf32>
    %656 = vector.extract_strided_slice %574 {offsets = [0, 24], sizes = [16, 8], strides = [1, 1]} : vector<16x96xf32> to vector<16x8xf32>
    %657 = vector.shape_cast %656 : vector<16x8xf32> to vector<2x8x8xf32>
    %658 = vector.extract_strided_slice %574 {offsets = [0, 56], sizes = [16, 8], strides = [1, 1]} : vector<16x96xf32> to vector<16x8xf32>
    %659 = vector.shape_cast %658 : vector<16x8xf32> to vector<2x8x8xf32>
    %660 = vector.extract_strided_slice %574 {offsets = [0, 88], sizes = [16, 8], strides = [1, 1]} : vector<16x96xf32> to vector<16x8xf32>
    %661 = vector.shape_cast %660 : vector<16x8xf32> to vector<2x8x8xf32>
    %662 = arith.truncf %657 : vector<2x8x8xf32> to vector<2x8x8xbf16>
    %663 = arith.truncf %659 : vector<2x8x8xf32> to vector<2x8x8xbf16>
    "tpu.trace_start"() <{level = 10 : i32, message = "bqd,bkd->bqk"}> : () -> ()
    %cst_147 = arith.constant dense<0.000000e+00> : vector<2x8x8xf32>
    %664 = tpu.matmul %662, %663, %cst_147 {dimension_numbers = #tpu.dot_dimension_numbers<[2], [2], [1], [1], [0, 0, 0, 1, 1, 1], [0], [0]>} : vector<2x8x8xbf16>, vector<2x8x8xbf16>, vector<2x8x8xf32> -> vector<2x8x8xf32>
    "tpu.trace_stop"() : () -> ()
    %cst_148 = arith.constant 0.353553385 : f32
    %665 = vector.broadcast %cst_148 : f32 to vector<2x8x8xf32>
    %666 = arith.mulf %664, %665 : vector<2x8x8xf32>
    %667 = vector.broadcast %568 : vector<2x1x8xf32> to vector<2x8x8xf32>
    %668 = arith.addf %666, %667 : vector<2x8x8xf32>
    %cst_149 = arith.constant dense<0xFF800000> : vector<2x8xf32>
    %669 = vector.multi_reduction <maximumf>, %668, %cst_149 [2] : vector<2x8x8xf32> to vector<2x8xf32>
    %670 = vector.shape_cast %669 : vector<2x8xf32> to vector<2x8x1xf32>
    %671 = vector.broadcast %670 : vector<2x8x1xf32> to vector<2x8x8xf32>
    %672 = arith.subf %668, %671 : vector<2x8x8xf32>
    %673 = math.exp %672 : vector<2x8x8xf32>
    %cst_150 = arith.constant dense<0.000000e+00> : vector<2x8xf32>
    %674 = vector.multi_reduction <add>, %673, %cst_150 [2] : vector<2x8x8xf32> to vector<2x8xf32>
    %675 = vector.shape_cast %674 : vector<2x8xf32> to vector<2x8x1xf32>
    %676 = tpu.reciprocal %675 {approx = true} : vector<2x8x1xf32> -> vector<2x8x1xf32>
    %677 = vector.broadcast %676 : vector<2x8x1xf32> to vector<2x8x8xf32>
    %678 = arith.mulf %673, %677 : vector<2x8x8xf32>
    %679 = arith.truncf %678 : vector<2x8x8xf32> to vector<2x8x8xbf16>
    %680 = arith.truncf %661 : vector<2x8x8xf32> to vector<2x8x8xbf16>
    "tpu.trace_start"() <{level = 10 : i32, message = "bqk,bkd->bqd"}> : () -> ()
    %cst_151 = arith.constant dense<0.000000e+00> : vector<2x8x8xf32>
    %681 = tpu.matmul %679, %680, %cst_151 {dimension_numbers = #tpu.dot_dimension_numbers<[2], [1], [1], [2], [0, 0, 0, 1, 1, 2], [0], [0]>} : vector<2x8x8xbf16>, vector<2x8x8xbf16>, vector<2x8x8xf32> -> vector<2x8x8xf32>
    "tpu.trace_stop"() : () -> ()
    %682 = vector.shape_cast %681 : vector<2x8x8xf32> to vector<16x8xf32>
    %683 = tpu.concatenate %601, %628, %655, %682 in 1 : vector<16x8xf32>, vector<16x8xf32>, vector<16x8xf32>, vector<16x8xf32> -> vector<16x32xf32>
    %684 = arith.truncf %683 : vector<16x32xf32> to vector<16x32xbf16>
    %c0_152 = arith.constant 0 : index
    %c0_153 = arith.constant 0 : index
    %685 = vector.load %arg21[%c0_152, %c0_153] : memref<32x32xbf16, #tpu.memory_space<vmem>>, vector<32x32xbf16>
    %cst_154 = arith.constant dense<0.000000e+00> : vector<16x32xf32>
    %686 = tpu.matmul %684, %685, %cst_154 {dimension_numbers = #tpu.dot_dimension_numbers<[1], [0], [0], [1], [0, 0, 1, 1], [], []>} : vector<16x32xbf16>, vector<32x32xbf16>, vector<16x32xf32> -> vector<16x32xf32>
    %c0_155 = arith.constant 0 : index
    %c0_156 = arith.constant 0 : index
    %687 = vector.load %arg22[%c0_155, %c0_156] : memref<1x32xf32, #tpu.memory_space<vmem>>, vector<1x32xf32>
    %688 = vector.broadcast %687 : vector<1x32xf32> to vector<16x32xf32>
    %689 = arith.addf %686, %688 : vector<16x32xf32>
    %690 = arith.addf %689, %562 : vector<16x32xf32>
    %c0_157 = arith.constant 0 : index
    %c0_158 = arith.constant 0 : index
    %691 = vector.load %arg23[%c0_157, %c0_158] : memref<1x32xf32, #tpu.memory_space<vmem>>, vector<1x32xf32>
    %c0_159 = arith.constant 0 : index
    %c0_160 = arith.constant 0 : index
    %692 = vector.load %arg24[%c0_159, %c0_160] : memref<1x32xf32, #tpu.memory_space<vmem>>, vector<1x32xf32>
    %cst_161 = arith.constant dense<0.000000e+00> : vector<16xf32>
    %693 = vector.multi_reduction <add>, %690, %cst_161 [1] : vector<16x32xf32> to vector<16xf32>
    %694 = vector.shape_cast %693 : vector<16xf32> to vector<16x1xf32>
    %cst_162 = arith.constant 3.200000e+01 : f32
    %695 = vector.broadcast %cst_162 : f32 to vector<16x1xf32>
    %696 = arith.divf %694, %695 : vector<16x1xf32>
    %697 = vector.broadcast %696 : vector<16x1xf32> to vector<16x32xf32>
    %698 = arith.subf %690, %697 : vector<16x32xf32>
    %699 = arith.mulf %698, %698 : vector<16x32xf32>
    %cst_163 = arith.constant dense<0.000000e+00> : vector<16xf32>
    %700 = vector.multi_reduction <add>, %699, %cst_163 [1] : vector<16x32xf32> to vector<16xf32>
    %701 = vector.shape_cast %700 : vector<16xf32> to vector<16x1xf32>
    %cst_164 = arith.constant 3.200000e+01 : f32
    %702 = vector.broadcast %cst_164 : f32 to vector<16x1xf32>
    %703 = arith.divf %701, %702 : vector<16x1xf32>
    %704 = vector.broadcast %696 : vector<16x1xf32> to vector<16x32xf32>
    %705 = arith.subf %690, %704 : vector<16x32xf32>
    %cst_165 = arith.constant 9.99999996E-13 : f32
    %706 = vector.broadcast %cst_165 : f32 to vector<16x1xf32>
    %707 = arith.addf %703, %706 : vector<16x1xf32>
    %708 = math.rsqrt %707 : vector<16x1xf32>
    %709 = vector.broadcast %708 : vector<16x1xf32> to vector<16x32xf32>
    %710 = arith.mulf %705, %709 : vector<16x32xf32>
    %711 = vector.broadcast %691 : vector<1x32xf32> to vector<16x32xf32>
    %712 = arith.mulf %710, %711 : vector<16x32xf32>
    %713 = vector.broadcast %692 : vector<1x32xf32> to vector<16x32xf32>
    %714 = arith.addf %712, %713 : vector<16x32xf32>
    %715 = arith.truncf %714 : vector<16x32xf32> to vector<16x32xbf16>
    %c0_166 = arith.constant 0 : index
    %c0_167 = arith.constant 0 : index
    %716 = vector.load %arg25[%c0_166, %c0_167] : memref<32x32xbf16, #tpu.memory_space<vmem>>, vector<32x32xbf16>
    %cst_168 = arith.constant dense<0.000000e+00> : vector<16x32xf32>
    %717 = tpu.matmul %715, %716, %cst_168 {dimension_numbers = #tpu.dot_dimension_numbers<[1], [0], [0], [1], [0, 0, 1, 1], [], []>} : vector<16x32xbf16>, vector<32x32xbf16>, vector<16x32xf32> -> vector<16x32xf32>
    %c0_169 = arith.constant 0 : index
    %c0_170 = arith.constant 0 : index
    %718 = vector.load %arg26[%c0_169, %c0_170] : memref<1x32xf32, #tpu.memory_space<vmem>>, vector<1x32xf32>
    %719 = vector.broadcast %718 : vector<1x32xf32> to vector<16x32xf32>
    %720 = arith.addf %717, %719 : vector<16x32xf32>
    %cst_171 = arith.constant 5.000000e-01 : f32
    %721 = vector.broadcast %cst_171 : f32 to vector<16x32xf32>
    %722 = arith.mulf %721, %720 : vector<16x32xf32>
    %cst_172 = arith.constant 0.707106769 : f32
    %723 = vector.broadcast %cst_172 : f32 to vector<16x32xf32>
    %724 = arith.mulf %720, %723 : vector<16x32xf32>
    %725 = math.erf %724 : vector<16x32xf32>
    %cst_173 = arith.constant 1.000000e+00 : f32
    %726 = vector.broadcast %cst_173 : f32 to vector<16x32xf32>
    %727 = arith.addf %726, %725 : vector<16x32xf32>
    %728 = arith.mulf %722, %727 : vector<16x32xf32>
    %729 = arith.truncf %728 : vector<16x32xf32> to vector<16x32xbf16>
    %c0_174 = arith.constant 0 : index
    %c0_175 = arith.constant 0 : index
    %730 = vector.load %arg27[%c0_174, %c0_175] : memref<32x32xbf16, #tpu.memory_space<vmem>>, vector<32x32xbf16>
    %cst_176 = arith.constant dense<0.000000e+00> : vector<16x32xf32>
    %731 = tpu.matmul %729, %730, %cst_176 {dimension_numbers = #tpu.dot_dimension_numbers<[1], [0], [0], [1], [0, 0, 1, 1], [], []>} : vector<16x32xbf16>, vector<32x32xbf16>, vector<16x32xf32> -> vector<16x32xf32>
    %c0_177 = arith.constant 0 : index
    %c0_178 = arith.constant 0 : index
    %732 = vector.load %arg28[%c0_177, %c0_178] : memref<1x32xf32, #tpu.memory_space<vmem>>, vector<1x32xf32>
    %733 = vector.broadcast %732 : vector<1x32xf32> to vector<16x32xf32>
    %734 = arith.addf %731, %733 : vector<16x32xf32>
    %735 = arith.addf %734, %714 : vector<16x32xf32>
    %c0_179 = arith.constant 0 : index
    %c0_180 = arith.constant 0 : index
    %736 = vector.load %arg29[%c0_179, %c0_180] : memref<1x32xf32, #tpu.memory_space<vmem>>, vector<1x32xf32>
    %c0_181 = arith.constant 0 : index
    %c0_182 = arith.constant 0 : index
    %737 = vector.load %arg30[%c0_181, %c0_182] : memref<1x32xf32, #tpu.memory_space<vmem>>, vector<1x32xf32>
    %cst_183 = arith.constant dense<0.000000e+00> : vector<16xf32>
    %738 = vector.multi_reduction <add>, %735, %cst_183 [1] : vector<16x32xf32> to vector<16xf32>
    %739 = vector.shape_cast %738 : vector<16xf32> to vector<16x1xf32>
    %cst_184 = arith.constant 3.200000e+01 : f32
    %740 = vector.broadcast %cst_184 : f32 to vector<16x1xf32>
    %741 = arith.divf %739, %740 : vector<16x1xf32>
    %742 = vector.broadcast %741 : vector<16x1xf32> to vector<16x32xf32>
    %743 = arith.subf %735, %742 : vector<16x32xf32>
    %744 = arith.mulf %743, %743 : vector<16x32xf32>
    %cst_185 = arith.constant dense<0.000000e+00> : vector<16xf32>
    %745 = vector.multi_reduction <add>, %744, %cst_185 [1] : vector<16x32xf32> to vector<16xf32>
    %746 = vector.shape_cast %745 : vector<16xf32> to vector<16x1xf32>
    %cst_186 = arith.constant 3.200000e+01 : f32
    %747 = vector.broadcast %cst_186 : f32 to vector<16x1xf32>
    %748 = arith.divf %746, %747 : vector<16x1xf32>
    %749 = vector.broadcast %741 : vector<16x1xf32> to vector<16x32xf32>
    %750 = arith.subf %735, %749 : vector<16x32xf32>
    %cst_187 = arith.constant 9.99999996E-13 : f32
    %751 = vector.broadcast %cst_187 : f32 to vector<16x1xf32>
    %752 = arith.addf %748, %751 : vector<16x1xf32>
    %753 = math.rsqrt %752 : vector<16x1xf32>
    %754 = vector.broadcast %753 : vector<16x1xf32> to vector<16x32xf32>
    %755 = arith.mulf %750, %754 : vector<16x32xf32>
    %756 = vector.broadcast %736 : vector<1x32xf32> to vector<16x32xf32>
    %757 = arith.mulf %755, %756 : vector<16x32xf32>
    %758 = vector.broadcast %737 : vector<1x32xf32> to vector<16x32xf32>
    %759 = arith.addf %757, %758 : vector<16x32xf32>
    %760 = arith.truncf %759 : vector<16x32xf32> to vector<16x32xbf16>
    %c0_188 = arith.constant 0 : index
    %c0_189 = arith.constant 0 : index
    %761 = vector.load %arg31[%c0_188, %c0_189] : memref<32x32xbf16, #tpu.memory_space<vmem>>, vector<32x32xbf16>
    %cst_190 = arith.constant dense<0.000000e+00> : vector<16x32xf32>
    %762 = tpu.matmul %760, %761, %cst_190 {dimension_numbers = #tpu.dot_dimension_numbers<[1], [0], [0], [1], [0, 0, 1, 1], [], []>} : vector<16x32xbf16>, vector<32x32xbf16>, vector<16x32xf32> -> vector<16x32xf32>
    %c0_191 = arith.constant 0 : index
    %c0_192 = arith.constant 0 : index
    %763 = vector.load %arg32[%c0_191, %c0_192] : memref<1x32xf32, #tpu.memory_space<vmem>>, vector<1x32xf32>
    %764 = vector.broadcast %763 : vector<1x32xf32> to vector<16x32xf32>
    %765 = arith.addf %762, %764 : vector<16x32xf32>
    %c0_193 = arith.constant 0 : index
    %c0_194 = arith.constant 0 : index
    %766 = vector.load %arg33[%c0_193, %c0_194] : memref<1x32xf32, #tpu.memory_space<vmem>>, vector<1x32xf32>
    %c0_195 = arith.constant 0 : index
    %c0_196 = arith.constant 0 : index
    %767 = vector.load %arg34[%c0_195, %c0_196] : memref<1x32xf32, #tpu.memory_space<vmem>>, vector<1x32xf32>
    %cst_197 = arith.constant dense<0.000000e+00> : vector<16xf32>
    %768 = vector.multi_reduction <add>, %765, %cst_197 [1] : vector<16x32xf32> to vector<16xf32>
    %769 = vector.shape_cast %768 : vector<16xf32> to vector<16x1xf32>
    %cst_198 = arith.constant 3.200000e+01 : f32
    %770 = vector.broadcast %cst_198 : f32 to vector<16x1xf32>
    %771 = arith.divf %769, %770 : vector<16x1xf32>
    %772 = vector.broadcast %771 : vector<16x1xf32> to vector<16x32xf32>
    %773 = arith.subf %765, %772 : vector<16x32xf32>
    %774 = arith.mulf %773, %773 : vector<16x32xf32>
    %cst_199 = arith.constant dense<0.000000e+00> : vector<16xf32>
    %775 = vector.multi_reduction <add>, %774, %cst_199 [1] : vector<16x32xf32> to vector<16xf32>
    %776 = vector.shape_cast %775 : vector<16xf32> to vector<16x1xf32>
    %cst_200 = arith.constant 3.200000e+01 : f32
    %777 = vector.broadcast %cst_200 : f32 to vector<16x1xf32>
    %778 = arith.divf %776, %777 : vector<16x1xf32>
    %779 = vector.broadcast %771 : vector<16x1xf32> to vector<16x32xf32>
    %780 = arith.subf %765, %779 : vector<16x32xf32>
    %cst_201 = arith.constant 9.99999974E-6 : f32
    %781 = vector.broadcast %cst_201 : f32 to vector<16x1xf32>
    %782 = arith.addf %778, %781 : vector<16x1xf32>
    %783 = math.rsqrt %782 : vector<16x1xf32>
    %784 = vector.broadcast %783 : vector<16x1xf32> to vector<16x32xf32>
    %785 = arith.mulf %780, %784 : vector<16x32xf32>
    %786 = vector.broadcast %766 : vector<1x32xf32> to vector<16x32xf32>
    %787 = arith.mulf %785, %786 : vector<16x32xf32>
    %788 = vector.broadcast %767 : vector<1x32xf32> to vector<16x32xf32>
    %789 = arith.addf %787, %788 : vector<16x32xf32>
    %cst_202 = arith.constant 0.000000e+00 : f32
    %790 = vector.broadcast %cst_202 : f32 to vector<16x32xf32>
    %791 = arith.maximumf %789, %790 : vector<16x32xf32>
    %792 = vector.shape_cast %791 : vector<16x32xf32> to vector<2x8x32xf32>
    %c0_203 = arith.constant 0 : index
    %c0_204 = arith.constant 0 : index
    %793 = vector.load %arg35[%c0_203, %c0_204] : memref<1x32xf32, #tpu.memory_space<vmem>>, vector<1x32xf32>
    %794 = vector.shape_cast %793 : vector<1x32xf32> to vector<1x1x32xf32>
    %795 = vector.broadcast %794 : vector<1x1x32xf32> to vector<2x8x32xf32>
    %796 = arith.mulf %792, %795 : vector<2x8x32xf32>
    %cst_205 = arith.constant dense<0.000000e+00> : vector<2x8xf32>
    %797 = vector.multi_reduction <add>, %796, %cst_205 [2] : vector<2x8x32xf32> to vector<2x8xf32>
    %c0_206 = arith.constant 0 : index
    %c0_207 = arith.constant 0 : index
    %798 = vector.load %arg36[%c0_206, %c0_207] : memref<1x1xf32, #tpu.memory_space<vmem>>, vector<1x1xf32>
    %799 = vector.broadcast %798 : vector<1x1xf32> to vector<2x8xf32>
    %800 = arith.addf %797, %799 : vector<2x8xf32>
    %c0_208 = arith.constant 0 : index
    %c0_209 = arith.constant 0 : index
    %801 = vector.load %arg37[%c0_208, %c0_209] : memref<2x8xf32, #tpu.memory_space<vmem>>, vector<2x8xf32>
    tpu.vector_store %arg37[%c0_208, %c0_209], %800 {strides = array<i32>} : memref<2x8xf32, #tpu.memory_space<vmem>>, vector<2x8xf32>,
    return
  }
}

</mosaic_0001>

<llo_original>
// kernel: tpu_custom_call.1
$region0: #{tpu_custom_call.1}
  #allocation0 [shape = 'u32[]', space=smem, size = 0x4, offset = 0x4, fixed_abs, tag = 'smem constant byte address 0x4 - core index']
  #allocation1 [shape = 'u32[72,128]{1,0:T(1,128)}', space=vmem, size = 0x9000, scoped, tag = 'internal scratch']
  #allocation2 [shape = 'f32[1,1]{1,0:T(1,128)S(1)}', space=vmem, size = 0x200, scoped, tag = 'scoped memory for tpu_custom_call.1']
  %s0 = inlined_call_operand.smem [shape: u32[38], index: -1, kind: input, shape index: {}]
  %s1 = sld [smem:[%s0]]
  %s2 = scalar_lea.smem %s0, 1
  %s3 = sld [smem:[%s2]]
  %s4 = scalar_lea.smem %s0, 2
  %s5 = sld [smem:[%s4]]
  %s6 = scalar_lea.smem %s0, 3
  %s7 = sld [smem:[%s6]]
  %s8 = scalar_lea.smem %s0, 4
  %s9 = sld [smem:[%s8]]
  %s10 = scalar_lea.smem %s0, 5
  %s11 = sld [smem:[%s10]]
  %s12 = scalar_lea.smem %s0, 6
  %s13 = sld [smem:[%s12]]
  %s14 = scalar_lea.smem %s0, 7
  %s15 = sld [smem:[%s14]]
  %s16 = scalar_lea.smem %s0, 8
  %s17 = sld [smem:[%s16]]
  %s18 = scalar_lea.smem %s0, 9
  %s19 = sld [smem:[%s18]]
  %s20 = scalar_lea.smem %s0, 10
  %s21 = sld [smem:[%s20]]
  %s22 = scalar_lea.smem %s0, 11
  %s23 = sld [smem:[%s22]]
  %s24 = scalar_lea.smem %s0, 12
  %s25 = sld [smem:[%s24]]
  %s26 = scalar_lea.smem %s0, 13
  %s27 = sld [smem:[%s26]]
  %s28 = scalar_lea.smem %s0, 14
  %s29 = sld [smem:[%s28]]
  %s30 = scalar_lea.smem %s0, 15
  %s31 = sld [smem:[%s30]]
  %s32 = scalar_lea.smem %s0, 16
  %s33 = sld [smem:[%s32]]
  %s34 = scalar_lea.smem %s0, 17
  %s35 = sld [smem:[%s34]]
  %s36 = scalar_lea.smem %s0, 18
  %s37 = sld [smem:[%s36]]
  %s38 = scalar_lea.smem %s0, 19
  %s39 = sld [smem:[%s38]]
  %s40 = scalar_lea.smem %s0, 20
  %s41 = sld [smem:[%s40]]
  %s42 = scalar_lea.smem %s0, 21
  %s43 = sld [smem:[%s42]]
  %s44 = scalar_lea.smem %s0, 22
  %s45 = sld [smem:[%s44]]
  %s46 = scalar_lea.smem %s0, 23
  %s47 = sld [smem:[%s46]]
  %s48 = scalar_lea.smem %s0, 24
  %s49 = sld [smem:[%s48]]
  %s50 = scalar_lea.smem %s0, 25
  %s51 = sld [smem:[%s50]]
  %s52 = scalar_lea.smem %s0, 26
  %s53 = sld [smem:[%s52]]
  %s54 = scalar_lea.smem %s0, 27
  %s55 = sld [smem:[%s54]]
  %s56 = scalar_lea.smem %s0, 28
  %s57 = sld [smem:[%s56]]
  %s58 = scalar_lea.smem %s0, 29
  %s59 = sld [smem:[%s58]]
  %s60 = scalar_lea.smem %s0, 30
  %s61 = sld [smem:[%s60]]
  %s62 = scalar_lea.smem %s0, 31
  %s63 = sld [smem:[%s62]]
  %s64 = scalar_lea.smem %s0, 32
  %s65 = sld [smem:[%s64]]
  %s66 = scalar_lea.smem %s0, 33
  %s67 = sld [smem:[%s66]]
  %s68 = scalar_lea.smem %s0, 34
  %s69 = sld [smem:[%s68]]
  %s70 = scalar_lea.smem %s0, 35
  %s71 = sld [smem:[%s70]]
  %s72 = scalar_lea.smem %s0, 36
  %s73 = sld [smem:[%s72]]
  %s74 = scalar_lea.smem %s0, 37
  %s75 = sld [smem:[%s74]]
  %s76 = sld [smem:[#allocation0]]
  $region258: #{tpu_custom_call.1} parent=0
    _
  %s78 = ssub.s32 1, %s76
  %s79 = scalar_select 0, %s78, %s76
  %v80 = vstv %s73
  %81 = vst [vmem:[#allocation2] sm:$0x1] %v80
  $region1: #{tpu_custom_call.1} parent=0
    #allocation3 [shape = 'u8[8192]{0}', space=vmem, size = 0x2000, scoped, tag = 'input window, operand 0, single buffered']
    #allocation4 [shape = 's32[1]{0}', space=sflag, size = 0x4, scoped, tag = 'scoped memory for tpu_custom_call.1']
    #allocation5 [shape = 's32[1]{0}', space=sflag, size = 0x4, scoped, tag = 'scoped memory for tpu_custom_call.1']
    #allocation6 [shape = 'u8[1024]{0}', space=vmem, size = 0x400, scoped, tag = 'input window, operand 2, single buffered']
    #allocation7 [shape = 's32[1]{0}', space=sflag, size = 0x4, scoped, tag = 'scoped memory for tpu_custom_call.1']
    #allocation8 [shape = 'u8[512]{0}', space=vmem, size = 0x400, scoped, tag = 'input window, operand 4, single buffered']
    #allocation9 [shape = 'u8[512]{0}', space=vmem, size = 0x400, scoped, tag = 'input window, operand 5, single buffered']
    #allocation10 [shape = 's32[1]{0}', space=sflag, size = 0x4, scoped, tag = 'scoped memory for tpu_custom_call.1']
    #allocation11 [shape = 'u8[512]{0}', space=vmem, size = 0x400, scoped, tag = 'input window, operand 6, single buffered']
    #allocation12 [shape = 'u8[1024]{0}', space=vmem, size = 0x400, scoped, tag = 'input window, operand 7, single buffered']
    #allocation13 [shape = 's32[1]{0}', space=sflag, size = 0x4, scoped, tag = 'scoped memory for tpu_custom_call.1']
    #allocation14 [shape = 'u8[512]{0}', space=vmem, size = 0x400, scoped, tag = 'input window, operand 8, single buffered']
    #allocation15 [shape = 'u8[512]{0}', space=vmem, size = 0x400, scoped, tag = 'input window, operand 9, single buffered']
    #allocation16 [shape = 's32[1]{0}', space=sflag, size = 0x4, scoped, tag = 'scoped memory for tpu_custom_call.1']
    #allocation17 [shape = 'u8[512]{0}', space=vmem, size = 0x400, scoped, tag = 'input window, operand 10, single buffered']
    #allocation18 [shape = 'u8[512]{0}', space=vmem, size = 0x400, scoped, tag = 'input window, operand 12, single buffered']
    #allocation19 [shape = 's32[1]{0}', space=sflag, size = 0x4, scoped, tag = 'scoped memory for tpu_custom_call.1']
    #allocation20 [shape = 'u8[512]{0}', space=vmem, size = 0x400, scoped, tag = 'input window, operand 13, single buffered']
    #allocation21 [shape = 'u8[512]{0}', space=vmem, size = 0x400, scoped, tag = 'input window, operand 14, single buffered']
    #allocation22 [shape = 's32[1]{0}', space=sflag, size = 0x4, scoped, tag = 'scoped memory for tpu_custom_call.1']
    #allocation23 [shape = 'u8[16384]{0}', space=vmem, size = 0x4000, scoped, tag = 'input window, operand 16, single buffered']
    #allocation24 [shape = 'u8[1024]{0}', space=vmem, size = 0x400, scoped, tag = 'input window, operand 17, single buffered']
    #allocation25 [shape = 's32[1]{0}', space=sflag, size = 0x4, scoped, tag = 'scoped memory for tpu_custom_call.1']
    #allocation26 [shape = 'u8[1024]{0}', space=vmem, size = 0x400, scoped, tag = 'input window, operand 18, single buffered']
    #allocation27 [shape = 'u8[8192]{0}', space=vmem, size = 0x2000, scoped, tag = 'input window, operand 19, single buffered']
    #allocation28 [shape = 's32[1]{0}', space=sflag, size = 0x4, scoped, tag = 'scoped memory for tpu_custom_call.1']
    #allocation29 [shape = 'u8[512]{0}', space=vmem, size = 0x400, scoped, tag = 'input window, operand 20, single buffered']
    #allocation30 [shape = 'u8[8192]{0}', space=vmem, size = 0x2000, scoped, tag = 'input window, operand 21, single buffered']
    #allocation31 [shape = 's32[1]{0}', space=sflag, size = 0x4, scoped, tag = 'scoped memory for tpu_custom_call.1']
    #allocation32 [shape = 'u8[512]{0}', space=vmem, size = 0x400, scoped, tag = 'input window, operand 22, single buffered']
    #allocation33 [shape = 'u8[512]{0}', space=vmem, size = 0x400, scoped, tag = 'input window, operand 23, single buffered']
    #allocation34 [shape = 's32[1]{0}', space=sflag, size = 0x4, scoped, tag = 'scoped memory for tpu_custom_call.1']
    #allocation35 [shape = 'u8[512]{0}', space=vmem, size = 0x400, scoped, tag = 'input window, operand 24, single buffered']
    #allocation36 [shape = 'u8[8192]{0}', space=vmem, size = 0x2000, scoped, tag = 'input window, operand 25, single buffered']
    #allocation37 [shape = 's32[1]{0}', space=sflag, size = 0x4, scoped, tag = 'scoped memory for tpu_custom_call.1']
    #allocation38 [shape = 'u8[512]{0}', space=vmem, size = 0x400, scoped, tag = 'input window, operand 26, single buffered']
    #allocation39 [shape = 'u8[8192]{0}', space=vmem, size = 0x2000, scoped, tag = 'input window, operand 27, single buffered']
    #allocation40 [shape = 's32[1]{0}', space=sflag, size = 0x4, scoped, tag = 'scoped memory for tpu_custom_call.1']
    #allocation41 [shape = 'u8[512]{0}', space=vmem, size = 0x400, scoped, tag = 'input window, operand 28, single buffered']
    #allocation42 [shape = 'u8[1024]{0}', space=vmem, size = 0x400, scoped, tag = 'output window, operand 0, single buffered']
    %82 = vsyncpa [#allocation4], 0
    %83 = vsyncpa [#allocation7], 0
    %84 = vsyncpa [#allocation10], 0
    %85 = vsyncpa [#allocation13], 0
    %86 = vsyncpa [#allocation16], 0
    %87 = vsyncpa [#allocation19], 0
    %88 = vsyncpa [#allocation22], 0
    %89 = vsyncpa [#allocation25], 0
    %90 = vsyncpa [#allocation28], 0
    %91 = vsyncpa [#allocation31], 0
    %92 = vsyncpa [#allocation34], 0
    %93 = vsyncpa [#allocation37], 0
    %94 = vsyncpa [#allocation40], 0
    %95 = vsyncpa [#allocation5], 0
    // Predicated region
    $region2: #{tpu_custom_call.1} parent=1 // pred_check
      _
    $region3: #{tpu_custom_call.1} parent=1 // pred_check_branch
      %97 = sbr.rel (0) target = $region5
    $region4: #{tpu_custom_call.1} parent=1 // pred_region
      %99 = vsyncadd [#allocation4], 0
      %s100 = sshll.u32 %s1, 4
      %s101 = int_to_ptr.hbm [resolvable:$true] %s100
      %s102 = sshll.u32 [#allocation3], 4
      %s103 = int_to_ptr.vmem [resolvable:$true] %s102
      %108 = dma.hbm_to_vmem [thread:$0]  %s101, 256, %s103, [#allocation4], 32, 32, 2
    $region5: #{tpu_custom_call.1} parent=1 // pred_fallthru
      _
    // Predicated region
    $region6: #{tpu_custom_call.1} parent=1 // pred_check
      _
    $region7: #{tpu_custom_call.1} parent=1 // pred_check_branch
      %110 = sbr.rel (0) target = $region9
    $region8: #{tpu_custom_call.1} parent=1 // pred_region
      _
    $region9: #{tpu_custom_call.1} parent=1 // pred_fallthru
      _
    // Predicated region
    $region10: #{tpu_custom_call.1} parent=1 // pred_check
      _
    $region11: #{tpu_custom_call.1} parent=1 // pred_check_branch
      %112 = sbr.rel (0) target = $region13
    $region12: #{tpu_custom_call.1} parent=1 // pred_region
      %114 = vsyncadd [#allocation7], 0
      %s116 = sshll.u32 %s5, 4
      %s117 = int_to_ptr.hbm [resolvable:$true] %s116
      %s118 = sshll.u32 [#allocation6], 4
      %s119 = int_to_ptr.vmem [resolvable:$true] %s118
      %121 = dma.hbm_to_vmem [thread:$0]  %s117, 32, %s119, [#allocation7]
    $region13: #{tpu_custom_call.1} parent=1 // pred_fallthru
      _
    // Predicated region
    $region14: #{tpu_custom_call.1} parent=1 // pred_check
      _
    $region15: #{tpu_custom_call.1} parent=1 // pred_check_branch
      %123 = sbr.rel (0) target = $region17
    $region16: #{tpu_custom_call.1} parent=1 // pred_region
      _
    $region17: #{tpu_custom_call.1} parent=1 // pred_fallthru
      _
    // Predicated region
    $region18: #{tpu_custom_call.1} parent=1 // pred_check
      _
    $region19: #{tpu_custom_call.1} parent=1 // pred_check_branch
      %125 = sbr.rel (0) target = $region21
    $region20: #{tpu_custom_call.1} parent=1 // pred_region
      %127 = vsyncadd [#allocation7], 0
      %s129 = sshll.u32 %s9, 4
      %s130 = int_to_ptr.hbm [resolvable:$true] %s129
      %s131 = sshll.u32 [#allocation8], 4
      %s132 = int_to_ptr.vmem [resolvable:$true] %s131
      %134 = dma.hbm_to_vmem [thread:$0]  %s130, 16, %s132, [#allocation7]
    $region21: #{tpu_custom_call.1} parent=1 // pred_fallthru
      _
    // Predicated region
    $region22: #{tpu_custom_call.1} parent=1 // pred_check
      _
    $region23: #{tpu_custom_call.1} parent=1 // pred_check_branch
      %136 = sbr.rel (0) target = $region25
    $region24: #{tpu_custom_call.1} parent=1 // pred_region
      %138 = vsyncadd [#allocation10], 0
      %s140 = sshll.u32 %s11, 4
      %s141 = int_to_ptr.hbm [resolvable:$true] %s140
      %s142 = sshll.u32 [#allocation9], 4
      %s143 = int_to_ptr.vmem [resolvable:$true] %s142
      %145 = dma.hbm_to_vmem [thread:$0]  %s141, 16, %s143, [#allocation10]
    $region25: #{tpu_custom_call.1} parent=1 // pred_fallthru
      _
    // Predicated region
    $region26: #{tpu_custom_call.1} parent=1 // pred_check
      _
    $region27: #{tpu_custom_call.1} parent=1 // pred_check_branch
      %147 = sbr.rel (0) target = $region29
    $region28: #{tpu_custom_call.1} parent=1 // pred_region
      %149 = vsyncadd [#allocation10], 0
      %s151 = sshll.u32 %s13, 4
      %s152 = int_to_ptr.hbm [resolvable:$true] %s151
      %s153 = sshll.u32 [#allocation11], 4
      %s154 = int_to_ptr.vmem [resolvable:$true] %s153
      %156 = dma.hbm_to_vmem [thread:$0]  %s152, 16, %s154, [#allocation10]
    $region29: #{tpu_custom_call.1} parent=1 // pred_fallthru
      _
    // Predicated region
    $region30: #{tpu_custom_call.1} parent=1 // pred_check
      _
    $region31: #{tpu_custom_call.1} parent=1 // pred_check_branch
      %158 = sbr.rel (0) target = $region33
    $region32: #{tpu_custom_call.1} parent=1 // pred_region
      %160 = vsyncadd [#allocation13], 0
      %s162 = sshll.u32 %s15, 4
      %s163 = int_to_ptr.hbm [resolvable:$true] %s162
      %s164 = sshll.u32 [#allocation12], 4
      %s165 = int_to_ptr.vmem [resolvable:$true] %s164
      %167 = dma.hbm_to_vmem [thread:$0]  %s163, 32, %s165, [#allocation13]
    $region33: #{tpu_custom_call.1} parent=1 // pred_fallthru
      _
    // Predicated region
    $region34: #{tpu_custom_call.1} parent=1 // pred_check
      _
    $region35: #{tpu_custom_call.1} parent=1 // pred_check_branch
      %169 = sbr.rel (0) target = $region37
    $region36: #{tpu_custom_call.1} parent=1 // pred_region
      %171 = vsyncadd [#allocation13], 0
      %s173 = sshll.u32 %s17, 4
      %s174 = int_to_ptr.hbm [resolvable:$true] %s173
      %s175 = sshll.u32 [#allocation14], 4
      %s176 = int_to_ptr.vmem [resolvable:$true] %s175
      %178 = dma.hbm_to_vmem [thread:$0]  %s174, 16, %s176, [#allocation13]
    $region37: #{tpu_custom_call.1} parent=1 // pred_fallthru
      _
    // Predicated region
    $region38: #{tpu_custom_call.1} parent=1 // pred_check
      _
    $region39: #{tpu_custom_call.1} parent=1 // pred_check_branch
      %180 = sbr.rel (0) target = $region41
    $region40: #{tpu_custom_call.1} parent=1 // pred_region
      %182 = vsyncadd [#allocation16], 0
      %s184 = sshll.u32 %s19, 4
      %s185 = int_to_ptr.hbm [resolvable:$true] %s184
      %s186 = sshll.u32 [#allocation15], 4
      %s187 = int_to_ptr.vmem [resolvable:$true] %s186
      %189 = dma.hbm_to_vmem [thread:$0]  %s185, 16, %s187, [#allocation16]
    $region41: #{tpu_custom_call.1} parent=1 // pred_fallthru
      _
    // Predicated region
    $region42: #{tpu_custom_call.1} parent=1 // pred_check
      _
    $region43: #{tpu_custom_call.1} parent=1 // pred_check_branch
      %191 = sbr.rel (0) target = $region45
    $region44: #{tpu_custom_call.1} parent=1 // pred_region
      %193 = vsyncadd [#allocation16], 0
      %s195 = sshll.u32 %s21, 4
      %s196 = int_to_ptr.hbm [resolvable:$true] %s195
      %s197 = sshll.u32 [#allocation17], 4
      %s198 = int_to_ptr.vmem [resolvable:$true] %s197
      %200 = dma.hbm_to_vmem [thread:$0]  %s196, 16, %s198, [#allocation16]
    $region45: #{tpu_custom_call.1} parent=1 // pred_fallthru
      _
    // Predicated region
    $region46: #{tpu_custom_call.1} parent=1 // pred_check
      _
    $region47: #{tpu_custom_call.1} parent=1 // pred_check_branch
      %202 = sbr.rel (0) target = $region49
    $region48: #{tpu_custom_call.1} parent=1 // pred_region
      _
    $region49: #{tpu_custom_call.1} parent=1 // pred_fallthru
      _
    // Predicated region
    $region50: #{tpu_custom_call.1} parent=1 // pred_check
      _
    $region51: #{tpu_custom_call.1} parent=1 // pred_check_branch
      %204 = sbr.rel (0) target = $region53
    $region52: #{tpu_custom_call.1} parent=1 // pred_region
      %206 = vsyncadd [#allocation19], 0
      %s208 = sshll.u32 %s25, 4
      %s209 = int_to_ptr.hbm [resolvable:$true] %s208
      %s210 = sshll.u32 [#allocation18], 4
      %s211 = int_to_ptr.vmem [resolvable:$true] %s210
      %213 = dma.hbm_to_vmem [thread:$0]  %s209, 16, %s211, [#allocation19]
    $region53: #{tpu_custom_call.1} parent=1 // pred_fallthru
      _
    // Predicated region
    $region54: #{tpu_custom_call.1} parent=1 // pred_check
      _
    $region55: #{tpu_custom_call.1} parent=1 // pred_check_branch
      %215 = sbr.rel (0) target = $region57
    $region56: #{tpu_custom_call.1} parent=1 // pred_region
      %217 = vsyncadd [#allocation19], 0
      %s219 = sshll.u32 %s27, 4
      %s220 = int_to_ptr.hbm [resolvable:$true] %s219
      %s221 = sshll.u32 [#allocation20], 4
      %s222 = int_to_ptr.vmem [resolvable:$true] %s221
      %224 = dma.hbm_to_vmem [thread:$0]  %s220, 16, %s222, [#allocation19]
    $region57: #{tpu_custom_call.1} parent=1 // pred_fallthru
      _
    // Predicated region
    $region58: #{tpu_custom_call.1} parent=1 // pred_check
      _
    $region59: #{tpu_custom_call.1} parent=1 // pred_check_branch
      %226 = sbr.rel (0) target = $region61
    $region60: #{tpu_custom_call.1} parent=1 // pred_region
      %228 = vsyncadd [#allocation22], 0
      %s230 = sshll.u32 %s29, 4
      %s231 = int_to_ptr.hbm [resolvable:$true] %s230
      %s232 = sshll.u32 [#allocation21], 4
      %s233 = int_to_ptr.vmem [resolvable:$true] %s232
      %235 = dma.hbm_to_vmem [thread:$0]  %s231, 16, %s233, [#allocation22]
    $region61: #{tpu_custom_call.1} parent=1 // pred_fallthru
      _
    // Predicated region
    $region62: #{tpu_custom_call.1} parent=1 // pred_check
      _
    $region63: #{tpu_custom_call.1} parent=1 // pred_check_branch
      %237 = sbr.rel (0) target = $region65
    $region64: #{tpu_custom_call.1} parent=1 // pred_region
      _
    $region65: #{tpu_custom_call.1} parent=1 // pred_fallthru
      _
    // Predicated region
    $region66: #{tpu_custom_call.1} parent=1 // pred_check
      _
    $region67: #{tpu_custom_call.1} parent=1 // pred_check_branch
      %239 = sbr.rel (0) target = $region69
    $region68: #{tpu_custom_call.1} parent=1 // pred_region
      %241 = vsyncadd [#allocation22], 0
      %s242 = sshll.u32 %s33, 4
      %s243 = int_to_ptr.hbm [resolvable:$true] %s242
      %s244 = sshll.u32 [#allocation23], 4
      %s245 = int_to_ptr.vmem [resolvable:$true] %s244
      %250 = dma.hbm_to_vmem [thread:$0]  %s243, 512, %s245, [#allocation22], 64, 64, 4
    $region69: #{tpu_custom_call.1} parent=1 // pred_fallthru
      _
    // Predicated region
    $region70: #{tpu_custom_call.1} parent=1 // pred_check
      _
    $region71: #{tpu_custom_call.1} parent=1 // pred_check_branch
      %252 = sbr.rel (0) target = $region73
    $region72: #{tpu_custom_call.1} parent=1 // pred_region
      %254 = vsyncadd [#allocation25], 0
      %s255 = sshll.u32 %s35, 4
      %s256 = int_to_ptr.hbm [resolvable:$true] %s255
      %s257 = sshll.u32 [#allocation24], 4
      %s258 = int_to_ptr.vmem [resolvable:$true] %s257
      %263 = dma.hbm_to_vmem [thread:$0]  %s256, 32, %s258, [#allocation25], 16, 16, 1
    $region73: #{tpu_custom_call.1} parent=1 // pred_fallthru
      _
    // Predicated region
    $region74: #{tpu_custom_call.1} parent=1 // pred_check
      _
    $region75: #{tpu_custom_call.1} parent=1 // pred_check_branch
      %265 = sbr.rel (0) target = $region77
    $region76: #{tpu_custom_call.1} parent=1 // pred_region
      %267 = vsyncadd [#allocation25], 0
      %s268 = sshll.u32 %s37, 4
      %s269 = int_to_ptr.hbm [resolvable:$true] %s268
      %s270 = sshll.u32 [#allocation26], 4
      %s271 = int_to_ptr.vmem [resolvable:$true] %s270
      %276 = dma.hbm_to_vmem [thread:$0]  %s269, 32, %s271, [#allocation25], 16, 16, 1
    $region77: #{tpu_custom_call.1} parent=1 // pred_fallthru
      _
    // Predicated region
    $region78: #{tpu_custom_call.1} parent=1 // pred_check
      _
    $region79: #{tpu_custom_call.1} parent=1 // pred_check_branch
      %278 = sbr.rel (0) target = $region81
    $region80: #{tpu_custom_call.1} parent=1 // pred_region
      %280 = vsyncadd [#allocation28], 0
      %s281 = sshll.u32 %s39, 4
      %s282 = int_to_ptr.hbm [resolvable:$true] %s281
      %s283 = sshll.u32 [#allocation27], 4
      %s284 = int_to_ptr.vmem [resolvable:$true] %s283
      %289 = dma.hbm_to_vmem [thread:$0]  %s282, 256, %s284, [#allocation28], 64, 64, 4
    $region81: #{tpu_custom_call.1} parent=1 // pred_fallthru
      _
    // Predicated region
    $region82: #{tpu_custom_call.1} parent=1 // pred_check
      _
    $region83: #{tpu_custom_call.1} parent=1 // pred_check_branch
      %291 = sbr.rel (0) target = $region85
    $region84: #{tpu_custom_call.1} parent=1 // pred_region
      %293 = vsyncadd [#allocation28], 0
      %s295 = sshll.u32 %s41, 4
      %s296 = int_to_ptr.hbm [resolvable:$true] %s295
      %s297 = sshll.u32 [#allocation29], 4
      %s298 = int_to_ptr.vmem [resolvable:$true] %s297
      %300 = dma.hbm_to_vmem [thread:$0]  %s296, 16, %s298, [#allocation28]
    $region85: #{tpu_custom_call.1} parent=1 // pred_fallthru
      _
    // Predicated region
    $region86: #{tpu_custom_call.1} parent=1 // pred_check
      _
    $region87: #{tpu_custom_call.1} parent=1 // pred_check_branch
      %302 = sbr.rel (0) target = $region89
    $region88: #{tpu_custom_call.1} parent=1 // pred_region
      %304 = vsyncadd [#allocation31], 0
      %s305 = sshll.u32 %s43, 4
      %s306 = int_to_ptr.hbm [resolvable:$true] %s305
      %s307 = sshll.u32 [#allocation30], 4
      %s308 = int_to_ptr.vmem [resolvable:$true] %s307
      %313 = dma.hbm_to_vmem [thread:$0]  %s306, 256, %s308, [#allocation31], 64, 64, 4
    $region89: #{tpu_custom_call.1} parent=1 // pred_fallthru
      _
    // Predicated region
    $region90: #{tpu_custom_call.1} parent=1 // pred_check
      _
    $region91: #{tpu_custom_call.1} parent=1 // pred_check_branch
      %315 = sbr.rel (0) target = $region93
    $region92: #{tpu_custom_call.1} parent=1 // pred_region
      %317 = vsyncadd [#allocation31], 0
      %s319 = sshll.u32 %s45, 4
      %s320 = int_to_ptr.hbm [resolvable:$true] %s319
      %s321 = sshll.u32 [#allocation32], 4
      %s322 = int_to_ptr.vmem [resolvable:$true] %s321
      %324 = dma.hbm_to_vmem [thread:$0]  %s320, 16, %s322, [#allocation31]
    $region93: #{tpu_custom_call.1} parent=1 // pred_fallthru
      _
    // Predicated region
    $region94: #{tpu_custom_call.1} parent=1 // pred_check
      _
    $region95: #{tpu_custom_call.1} parent=1 // pred_check_branch
      %326 = sbr.rel (0) target = $region97
    $region96: #{tpu_custom_call.1} parent=1 // pred_region
      %328 = vsyncadd [#allocation34], 0
      %s330 = sshll.u32 %s47, 4
      %s331 = int_to_ptr.hbm [resolvable:$true] %s330
      %s332 = sshll.u32 [#allocation33], 4
      %s333 = int_to_ptr.vmem [resolvable:$true] %s332
      %335 = dma.hbm_to_vmem [thread:$0]  %s331, 16, %s333, [#allocation34]
    $region97: #{tpu_custom_call.1} parent=1 // pred_fallthru
      _
    // Predicated region
    $region98: #{tpu_custom_call.1} parent=1 // pred_check
      _
    $region99: #{tpu_custom_call.1} parent=1 // pred_check_branch
      %337 = sbr.rel (0) target = $region101
    $region100: #{tpu_custom_call.1} parent=1 // pred_region
      %339 = vsyncadd [#allocation34], 0
      %s341 = sshll.u32 %s49, 4
      %s342 = int_to_ptr.hbm [resolvable:$true] %s341
      %s343 = sshll.u32 [#allocation35], 4
      %s344 = int_to_ptr.vmem [resolvable:$true] %s343
      %346 = dma.hbm_to_vmem [thread:$0]  %s342, 16, %s344, [#allocation34]
    $region101: #{tpu_custom_call.1} parent=1 // pred_fallthru
      _
    // Predicated region
    $region102: #{tpu_custom_call.1} parent=1 // pred_check
      _
    $region103: #{tpu_custom_call.1} parent=1 // pred_check_branch
      %348 = sbr.rel (0) target = $region105
    $region104: #{tpu_custom_call.1} parent=1 // pred_region
      %350 = vsyncadd [#allocation37], 0
      %s351 = sshll.u32 %s51, 4
      %s352 = int_to_ptr.hbm [resolvable:$true] %s351
      %s353 = sshll.u32 [#allocation36], 4
      %s354 = int_to_ptr.vmem [resolvable:$true] %s353
      %359 = dma.hbm_to_vmem [thread:$0]  %s352, 256, %s354, [#allocation37], 64, 64, 4
    $region105: #{tpu_custom_call.1} parent=1 // pred_fallthru
      _
    // Predicated region
    $region106: #{tpu_custom_call.1} parent=1 // pred_check
      _
    $region107: #{tpu_custom_call.1} parent=1 // pred_check_branch
      %361 = sbr.rel (0) target = $region109
    $region108: #{tpu_custom_call.1} parent=1 // pred_region
      %363 = vsyncadd [#allocation37], 0
      %s365 = sshll.u32 %s53, 4
      %s366 = int_to_ptr.hbm [resolvable:$true] %s365
      %s367 = sshll.u32 [#allocation38], 4
      %s368 = int_to_ptr.vmem [resolvable:$true] %s367
      %370 = dma.hbm_to_vmem [thread:$0]  %s366, 16, %s368, [#allocation37]
    $region109: #{tpu_custom_call.1} parent=1 // pred_fallthru
      _
    // Predicated region
    $region110: #{tpu_custom_call.1} parent=1 // pred_check
      _
    $region111: #{tpu_custom_call.1} parent=1 // pred_check_branch
      %372 = sbr.rel (0) target = $region113
    $region112: #{tpu_custom_call.1} parent=1 // pred_region
      %374 = vsyncadd [#allocation40], 0
      %s375 = sshll.u32 %s55, 4
      %s376 = int_to_ptr.hbm [resolvable:$true] %s375
      %s377 = sshll.u32 [#allocation39], 4
      %s378 = int_to_ptr.vmem [resolvable:$true] %s377
      %383 = dma.hbm_to_vmem [thread:$0]  %s376, 256, %s378, [#allocation40], 64, 64, 4
    $region113: #{tpu_custom_call.1} parent=1 // pred_fallthru
      _
    // Predicated region
    $region114: #{tpu_custom_call.1} parent=1 // pred_check
      _
    $region115: #{tpu_custom_call.1} parent=1 // pred_check_branch
      %385 = sbr.rel (0) target = $region117
    $region116: #{tpu_custom_call.1} parent=1 // pred_region
      %387 = vsyncadd [#allocation40], 0
      %s389 = sshll.u32 %s57, 4
      %s390 = int_to_ptr.hbm [resolvable:$true] %s389
      %s391 = sshll.u32 [#allocation41], 4
      %s392 = int_to_ptr.vmem [resolvable:$true] %s391
      %394 = dma.hbm_to_vmem [thread:$0]  %s390, 16, %s392, [#allocation40]
    $region117: #{tpu_custom_call.1} parent=1 // pred_fallthru
      _
    // Predicated region
    $region118: #{tpu_custom_call.1} parent=1 // pred_check
      _
    $region119: #{tpu_custom_call.1} parent=1 // pred_check_branch
      %396 = sbr.rel (0) target = $region121
    $region120: #{tpu_custom_call.1} parent=1 // pred_region
      _
    $region121: #{tpu_custom_call.1} parent=1 // pred_fallthru
      _
    // Predicated region
    $region122: #{tpu_custom_call.1} parent=1 // pred_check
      _
    $region123: #{tpu_custom_call.1} parent=1 // pred_check_branch
      %398 = sbr.rel (0) target = $region125
    $region124: #{tpu_custom_call.1} parent=1 // pred_region
      _
    $region125: #{tpu_custom_call.1} parent=1 // pred_fallthru
      _
    // Predicated region
    $region126: #{tpu_custom_call.1} parent=1 // pred_check
      _
    $region127: #{tpu_custom_call.1} parent=1 // pred_check_branch
      %400 = sbr.rel (0) target = $region129
    $region128: #{tpu_custom_call.1} parent=1 // pred_region
      _
    $region129: #{tpu_custom_call.1} parent=1 // pred_fallthru
      _
    // Predicated region
    $region130: #{tpu_custom_call.1} parent=1 // pred_check
      _
    $region131: #{tpu_custom_call.1} parent=1 // pred_check_branch
      %402 = sbr.rel (0) target = $region133
    $region132: #{tpu_custom_call.1} parent=1 // pred_region
      _
    $region133: #{tpu_custom_call.1} parent=1 // pred_fallthru
      _
    // Predicated region
    $region134: #{tpu_custom_call.1} parent=1 // pred_check
      _
    $region135: #{tpu_custom_call.1} parent=1 // pred_check_branch
      %404 = sbr.rel (0) target = $region137
    $region136: #{tpu_custom_call.1} parent=1 // pred_region
      _
    $region137: #{tpu_custom_call.1} parent=1 // pred_fallthru
      _
    // Predicated region
    $region138: #{tpu_custom_call.1} parent=1 // pred_check
      _
    $region139: #{tpu_custom_call.1} parent=1 // pred_check_branch
      %406 = sbr.rel (0) target = $region141
    $region140: #{tpu_custom_call.1} parent=1 // pred_region
      _
    $region141: #{tpu_custom_call.1} parent=1 // pred_fallthru
      _
    // Predicated region
    $region142: #{tpu_custom_call.1} parent=1 // pred_check
      _
    $region143: #{tpu_custom_call.1} parent=1 // pred_check_branch
      %408 = sbr.rel (0) target = $region145
    $region144: #{tpu_custom_call.1} parent=1 // pred_region
      _
    $region145: #{tpu_custom_call.1} parent=1 // pred_fallthru
      _
    // Predicated region
    $region146: #{tpu_custom_call.1} parent=1 // pred_check
      _
    $region147: #{tpu_custom_call.1} parent=1 // pred_check_branch
      %410 = sbr.rel (0) target = $region149
    $region148: #{tpu_custom_call.1} parent=1 // pred_region
      _
    $region149: #{tpu_custom_call.1} parent=1 // pred_fallthru
      _
    // Predicated region
    $region150: #{tpu_custom_call.1} parent=1 // pred_check
      _
    $region151: #{tpu_custom_call.1} parent=1 // pred_check_branch
      %412 = sbr.rel (0) target = $region153
    $region152: #{tpu_custom_call.1} parent=1 // pred_region
      %414 = dma.done [#allocation4], 256
    $region153: #{tpu_custom_call.1} parent=1 // pred_fallthru
      _
    // Predicated region
    $region154: #{tpu_custom_call.1} parent=1 // pred_check
      _
    $region155: #{tpu_custom_call.1} parent=1 // pred_check_branch
      %416 = sbr.rel (0) target = $region157
    $region156: #{tpu_custom_call.1} parent=1 // pred_region
      %418 = dma.done [#allocation7], 32
    $region157: #{tpu_custom_call.1} parent=1 // pred_fallthru
      _
    // Predicated region
    $region158: #{tpu_custom_call.1} parent=1 // pred_check
      _
    $region159: #{tpu_custom_call.1} parent=1 // pred_check_branch
      %420 = sbr.rel (0) target = $region161
    $region160: #{tpu_custom_call.1} parent=1 // pred_region
      %422 = dma.done [#allocation7], 16
    $region161: #{tpu_custom_call.1} parent=1 // pred_fallthru
      _
    // Predicated region
    $region162: #{tpu_custom_call.1} parent=1 // pred_check
      _
    $region163: #{tpu_custom_call.1} parent=1 // pred_check_branch
      %424 = sbr.rel (0) target = $region165
    $region164: #{tpu_custom_call.1} parent=1 // pred_region
      %426 = dma.done [#allocation10], 16
    $region165: #{tpu_custom_call.1} parent=1 // pred_fallthru
      _
    // Predicated region
    $region166: #{tpu_custom_call.1} parent=1 // pred_check
      _
    $region167: #{tpu_custom_call.1} parent=1 // pred_check_branch
      %428 = sbr.rel (0) target = $region169
    $region168: #{tpu_custom_call.1} parent=1 // pred_region
      %430 = dma.done [#allocation10], 16
    $region169: #{tpu_custom_call.1} parent=1 // pred_fallthru
      _
    // Predicated region
    $region170: #{tpu_custom_call.1} parent=1 // pred_check
      _
    $region171: #{tpu_custom_call.1} parent=1 // pred_check_branch
      %432 = sbr.rel (0) target = $region173
    $region172: #{tpu_custom_call.1} parent=1 // pred_region
      %434 = dma.done [#allocation13], 32
    $region173: #{tpu_custom_call.1} parent=1 // pred_fallthru
      _
    // Predicated region
    $region174: #{tpu_custom_call.1} parent=1 // pred_check
      _
    $region175: #{tpu_custom_call.1} parent=1 // pred_check_branch
      %436 = sbr.rel (0) target = $region177
    $region176: #{tpu_custom_call.1} parent=1 // pred_region
      %438 = dma.done [#allocation13], 16
    $region177: #{tpu_custom_call.1} parent=1 // pred_fallthru
      _
    // Predicated region
    $region178: #{tpu_custom_call.1} parent=1 // pred_check
      _
    $region179: #{tpu_custom_call.1} parent=1 // pred_check_branch
      %440 = sbr.rel (0) target = $region181
    $region180: #{tpu_custom_call.1} parent=1 // pred_region
      %442 = dma.done [#allocation16], 16
    $region181: #{tpu_custom_call.1} parent=1 // pred_fallthru
      _
    // Predicated region
    $region182: #{tpu_custom_call.1} parent=1 // pred_check
      _
    $region183: #{tpu_custom_call.1} parent=1 // pred_check_branch
      %444 = sbr.rel (0) target = $region185
    $region184: #{tpu_custom_call.1} parent=1 // pred_region
      %446 = dma.done [#allocation16], 16
    $region185: #{tpu_custom_call.1} parent=1 // pred_fallthru
      _
    // Predicated region
    $region186: #{tpu_custom_call.1} parent=1 // pred_check
      _
    $region187: #{tpu_custom_call.1} parent=1 // pred_check_branch
      %448 = sbr.rel (0) target = $region189
    $region188: #{tpu_custom_call.1} parent=1 // pred_region
      %450 = dma.done [#allocation19], 16
    $region189: #{tpu_custom_call.1} parent=1 // pred_fallthru
      _
    // Predicated region
    $region190: #{tpu_custom_call.1} parent=1 // pred_check
      _
    $region191: #{tpu_custom_call.1} parent=1 // pred_check_branch
      %452 = sbr.rel (0) target = $region193
    $region192: #{tpu_custom_call.1} parent=1 // pred_region
      %454 = dma.done [#allocation19], 16
    $region193: #{tpu_custom_call.1} parent=1 // pred_fallthru
      _
    // Predicated region
    $region194: #{tpu_custom_call.1} parent=1 // pred_check
      _
    $region195: #{tpu_custom_call.1} parent=1 // pred_check_branch
      %456 = sbr.rel (0) target = $region197
    $region196: #{tpu_custom_call.1} parent=1 // pred_region
      %458 = dma.done [#allocation22], 16
    $region197: #{tpu_custom_call.1} parent=1 // pred_fallthru
      _
    // Predicated region
    $region198: #{tpu_custom_call.1} parent=1 // pred_check
      _
    $region199: #{tpu_custom_call.1} parent=1 // pred_check_branch
      %460 = sbr.rel (0) target = $region201
    $region200: #{tpu_custom_call.1} parent=1 // pred_region
      %462 = dma.done [#allocation22], 512
    $region201: #{tpu_custom_call.1} parent=1 // pred_fallthru
      _
    // Predicated region
    $region202: #{tpu_custom_call.1} parent=1 // pred_check
      _
    $region203: #{tpu_custom_call.1} parent=1 // pred_check_branch
      %464 = sbr.rel (0) target = $region205
    $region204: #{tpu_custom_call.1} parent=1 // pred_region
      %466 = dma.done [#allocation25], 32
    $region205: #{tpu_custom_call.1} parent=1 // pred_fallthru
      _
    // Predicated region
    $region206: #{tpu_custom_call.1} parent=1 // pred_check
      _
    $region207: #{tpu_custom_call.1} parent=1 // pred_check_branch
      %468 = sbr.rel (0) target = $region209
    $region208: #{tpu_custom_call.1} parent=1 // pred_region
      %470 = dma.done [#allocation25], 32
    $region209: #{tpu_custom_call.1} parent=1 // pred_fallthru
      _
    // Predicated region
    $region210: #{tpu_custom_call.1} parent=1 // pred_check
      _
    $region211: #{tpu_custom_call.1} parent=1 // pred_check_branch
      %472 = sbr.rel (0) target = $region213
    $region212: #{tpu_custom_call.1} parent=1 // pred_region
      %474 = dma.done [#allocation28], 256
    $region213: #{tpu_custom_call.1} parent=1 // pred_fallthru
      _
    // Predicated region
    $region214: #{tpu_custom_call.1} parent=1 // pred_check
      _
    $region215: #{tpu_custom_call.1} parent=1 // pred_check_branch
      %476 = sbr.rel (0) target = $region217
    $region216: #{tpu_custom_call.1} parent=1 // pred_region
      %478 = dma.done [#allocation28], 16
    $region217: #{tpu_custom_call.1} parent=1 // pred_fallthru
      _
    // Predicated region
    $region218: #{tpu_custom_call.1} parent=1 // pred_check
      _
    $region219: #{tpu_custom_call.1} parent=1 // pred_check_branch
      %480 = sbr.rel (0) target = $region221
    $region220: #{tpu_custom_call.1} parent=1 // pred_region
      %482 = dma.done [#allocation31], 256
    $region221: #{tpu_custom_call.1} parent=1 // pred_fallthru
      _
    // Predicated region
    $region222: #{tpu_custom_call.1} parent=1 // pred_check
      _
    $region223: #{tpu_custom_call.1} parent=1 // pred_check_branch
      %484 = sbr.rel (0) target = $region225
    $region224: #{tpu_custom_call.1} parent=1 // pred_region
      %486 = dma.done [#allocation31], 16
    $region225: #{tpu_custom_call.1} parent=1 // pred_fallthru
      _
    // Predicated region
    $region226: #{tpu_custom_call.1} parent=1 // pred_check
      _
    $region227: #{tpu_custom_call.1} parent=1 // pred_check_branch
      %488 = sbr.rel (0) target = $region229
    $region228: #{tpu_custom_call.1} parent=1 // pred_region
      %490 = dma.done [#allocation34], 16
    $region229: #{tpu_custom_call.1} parent=1 // pred_fallthru
      _
    // Predicated region
    $region230: #{tpu_custom_call.1} parent=1 // pred_check
      _
    $region231: #{tpu_custom_call.1} parent=1 // pred_check_branch
      %492 = sbr.rel (0) target = $region233
    $region232: #{tpu_custom_call.1} parent=1 // pred_region
      %494 = dma.done [#allocation34], 16
    $region233: #{tpu_custom_call.1} parent=1 // pred_fallthru
      _
    // Predicated region
    $region234: #{tpu_custom_call.1} parent=1 // pred_check
      _
    $region235: #{tpu_custom_call.1} parent=1 // pred_check_branch
      %496 = sbr.rel (0) target = $region237
    $region236: #{tpu_custom_call.1} parent=1 // pred_region
      %498 = dma.done [#allocation37], 256
    $region237: #{tpu_custom_call.1} parent=1 // pred_fallthru
      _
    // Predicated region
    $region238: #{tpu_custom_call.1} parent=1 // pred_check
      _
    $region239: #{tpu_custom_call.1} parent=1 // pred_check_branch
      %500 = sbr.rel (0) target = $region241
    $region240: #{tpu_custom_call.1} parent=1 // pred_region
      %502 = dma.done [#allocation37], 16
    $region241: #{tpu_custom_call.1} parent=1 // pred_fallthru
      _
    // Predicated region
    $region242: #{tpu_custom_call.1} parent=1 // pred_check
      _
    $region243: #{tpu_custom_call.1} parent=1 // pred_check_branch
      %504 = sbr.rel (0) target = $region245
    $region244: #{tpu_custom_call.1} parent=1 // pred_region
      %506 = dma.done [#allocation40], 256
    $region245: #{tpu_custom_call.1} parent=1 // pred_fallthru
      _
    // Predicated region
    $region246: #{tpu_custom_call.1} parent=1 // pred_check
      _
    $region247: #{tpu_custom_call.1} parent=1 // pred_check_branch
      %508 = sbr.rel (0) target = $region249
    $region248: #{tpu_custom_call.1} parent=1 // pred_region
      %510 = dma.done [#allocation40], 16
    $region249: #{tpu_custom_call.1} parent=1 // pred_fallthru
      _
    %v512 = vld [vmem:[#allocation3] sm:$0x3]
    %v513 = vld [vmem:[#allocation3 + $0x2] sm:$0x3]
    %v514 = vld [vmem:[#allocation3 + $0x4] sm:$0x3]
    %v515 = vld [vmem:[#allocation3 + $0x6] sm:$0x3]
    %v516 = vld [vmem:[#allocation3 + $0x8] sm:$0x3]
    %v517 = vld [vmem:[#allocation3 + $0xa] sm:$0x3]
    %v518 = vld [vmem:[#allocation3 + $0xc] sm:$0x3]
    %v519 = vld [vmem:[#allocation3 + $0xe] sm:$0x3]
    %v520 = vld [vmem:[%s3] sm:$0x3]
    %v521 = vld [vmem:[%s3 + $0x2] sm:$0x3]
    %v522 = vld [vmem:[%s3 + $0x4] sm:$0x3]
    %v523 = vld [vmem:[%s3 + $0x6] sm:$0x3]
    %v524 = vld [vmem:[%s3 + $0x8] sm:$0x3]
    %v525 = vld [vmem:[%s3 + $0xa] sm:$0x3]
    %v526 = vld [vmem:[%s3 + $0xc] sm:$0x3]
    %v527 = vld [vmem:[%s3 + $0xe] sm:$0x3]
    %536 = vst [vmem:[#allocation1] ss:$4 sm:$0xff] %v512
    %s537 = scalar_lea.vmem [#allocation1], 1
    %538 = vst [vmem:[%s537] ss:$4 sm:$0xff] %v513
    %s539 = scalar_lea.vmem [#allocation1], 2
    %540 = vst [vmem:[%s539] ss:$4 sm:$0xff] %v514
    %s541 = scalar_lea.vmem [#allocation1], 3
    %542 = vst [vmem:[%s541] ss:$4 sm:$0xff] %v515
    %s543 = scalar_lea.vmem [#allocation1], 32
    %544 = vst [vmem:[%s543] ss:$4 sm:$0xff] %v516
    %s545 = scalar_lea.vmem [#allocation1], 33
    %546 = vst [vmem:[%s545] ss:$4 sm:$0xff] %v517
    %s547 = scalar_lea.vmem [#allocation1], 34
    %548 = vst [vmem:[%s547] ss:$4 sm:$0xff] %v518
    %s549 = scalar_lea.vmem [#allocation1], 35
    %550 = vst [vmem:[%s549] ss:$4 sm:$0xff] %v519
    %v551 = vld.sshfl [vmem:[#allocation1] sm:$0xff pattern:$0x73625140]
    %v552 = vld.sshfl [vmem:[#allocation1 + $0x20] sm:$0xff pattern:$0x73625140]
    %v555 = vpack.c.bf16 %v552, %v551
    %v556 = vld [vmem:[%s7] sm:$0xf]
    %v557 = vld [vmem:[%s7 + $0x4] sm:$0xf]
    %v558 = vld [vmem:[%s7 + $0x8] sm:$0xf]
    %v559 = vld [vmem:[#allocation8] sm:$0x1]
    %v561 = vperm.slane %v559, 0
    %v566 = vunpack.c.l.b16 %v556
    %v567 = vunpack.c.l.b16 %v557
    %v568 = vunpack.c.l.b16 %v558
    %v569 = vpack.c.b16 %v567, %v566
    %v570 = vpack.c.b16 %v568, %v568
    %vm572 = vcmask 195584
    %v574 = vsel %vm572, %v555, 0
    %vm576 = vcmask 1043456
    %v578 = vsel %vm576, %v570, 0
    %580 = vmatpush.bf16.msra.mxu0 0
    %581 = vmatpush.bf16.msra.mxu0 0
    %582 = vmatpush.bf16.msra.mxu0 0
    %583 = vmatpush.bf16.msra.mxu0 0
    %584 = vmatpush.bf16.msra.mxu0 0
    %585 = vmatpush.bf16.msra.mxu0 0
    %586 = vmatpush.bf16.msra.mxu0 %v578
    %587 = vmatpush.bf16.msra.mxu0 %v569
    %588 = vmatmul.bf16.gmra.mxu0 %v574
    %v589 = vpop.f32.mrf.mxu0
    %v590 = vadd.f32 %v561, %v589
    %v591 = vpop.f32.mrf.mxu0
    %v592 = vadd.f32 %v561, %v591
    %593 = vdwg.mxu0
    %v594 = vld [vmem:[#allocation9] sm:$0x1]
    %v595 = vld [vmem:[#allocation11] sm:$0x1]
    %vm596 = vcmask 130048
    %v597 = vsel %vm596, %v590, 0.0
    %598 = vadd.xlane.f32.xlu0 %v597
    %v599 = vpop.xlane.xlu0 %598
    %v600 = vsel %vm596, %v592, 0.0
    %601 = vadd.xlane.f32.xlu0 %v600
    %v602 = vpop.xlane.xlu0 %601
    %v603 = vrcp.pop 16.0
    %v604 = vmul.f32 16.0, %v603
    %v605 = vsub.f32 1.0, %v604
    %v606 = vmul.f32 %v603, %v605
    %v607 = vadd.f32 %v603, %v606
    %vm608 = vweird.f32 %v603
    %v609 = vsel %vm608, %v603, %v607
    %v610 = vmul.f32 %v599, %v609
    %v611 = vmul.f32 %v602, %v609
    %v612 = vsub.f32 %v590, %v610
    %v613 = vsub.f32 %v592, %v611
    %v614 = vmul.f32 %v612, %v612
    %v615 = vmul.f32 %v613, %v613
    %v616 = vsel %vm596, %v614, 0.0
    %617 = vadd.xlane.f32.xlu0 %v616
    %v618 = vpop.xlane.xlu0 %617
    %v619 = vsel %vm596, %v615, 0.0
    %620 = vadd.xlane.f32.xlu0 %v619
    %v621 = vpop.xlane.xlu0 %620
    %v622 = vmul.f32 %v618, %v609
    %v623 = vmul.f32 %v621, %v609
    %v624 = vadd.f32 %v622, 1e-05
    %v625 = vadd.f32 %v623, 1e-05
    %v626 = vrsqrt.pop %v624
    %v627 = vmul.f32 %v626, %v624
    %v628 = vmul.f32 %v627, %v626
    %v629 = vmul.f32 0.5, %v628
    %v630 = vsub.f32 1.5, %v629
    %v631 = vmul.f32 %v626, %v630
    %vm632 = vweird.f32 %v624
    %vm633 = vweird.f32 %v626
    %vm634 = vmor %vm632, %vm633
    %v635 = vsel %vm634, %v626, %v631
    %v636 = vrsqrt.pop %v625
    %v637 = vmul.f32 %v636, %v625
    %v638 = vmul.f32 %v637, %v636
    %v639 = vmul.f32 0.5, %v638
    %v640 = vsub.f32 1.5, %v639
    %v641 = vmul.f32 %v636, %v640
    %vm642 = vweird.f32 %v625
    %vm643 = vweird.f32 %v636
    %vm644 = vmor %vm642, %vm643
    %v645 = vsel %vm644, %v636, %v641
    %v646 = vmul.f32 %v612, %v635
    %v647 = vmul.f32 %v613, %v645
    %v649 = vperm.slane %v594, 0
    %v651 = vmul.f32 %v646, %v649
    %v652 = vmul.f32 %v647, %v649
    %v654 = vperm.slane %v595, 0
    %v656 = vadd.f32 %v651, %v654
    %v657 = vadd.f32 %v652, %v654
    %666 = vst [vmem:[#allocation1] ss:$4 sm:$0xff] %v520
    %s667 = scalar_lea.vmem [#allocation1], 1
    %668 = vst [vmem:[%s667] ss:$4 sm:$0xff] %v521
    %s669 = scalar_lea.vmem [#allocation1], 2
    %670 = vst [vmem:[%s669] ss:$4 sm:$0xff] %v522
    %s671 = scalar_lea.vmem [#allocation1], 3
    %672 = vst [vmem:[%s671] ss:$4 sm:$0xff] %v523
    %s673 = scalar_lea.vmem [#allocation1], 32
    %674 = vst [vmem:[%s673] ss:$4 sm:$0xff] %v524
    %s675 = scalar_lea.vmem [#allocation1], 33
    %676 = vst [vmem:[%s675] ss:$4 sm:$0xff] %v525
    %s677 = scalar_lea.vmem [#allocation1], 34
    %678 = vst [vmem:[%s677] ss:$4 sm:$0xff] %v526
    %s679 = scalar_lea.vmem [#allocation1], 35
    %680 = vst [vmem:[%s679] ss:$4 sm:$0xff] %v527
    %v681 = vld.sshfl [vmem:[#allocation1] sm:$0xff pattern:$0x73625140]
    %v682 = vld.sshfl [vmem:[#allocation1 + $0x20] sm:$0xff pattern:$0x73625140]
    %v685 = vpack.c.bf16 %v682, %v681
    %v686 = vld [vmem:[#allocation12] sm:$0x3]
    %v687 = vld [vmem:[#allocation14] sm:$0x1]
    %v689 = vperm.slane %v687, 0
    %vm691 = vcmask 31744
    %v693 = vsel %vm691, %v685, 0
    %vm695 = vcmask 1041408
    %v697 = vsel %vm695, %v686, 0
    %699 = vmatpush.bf16.msra.mxu0 0
    %700 = vmatpush.bf16.msra.mxu0 0
    %701 = vmatpush.bf16.msra.mxu0 0
    %702 = vmatpush.bf16.msra.mxu0 0
    %703 = vmatpush.bf16.msra.mxu0 0
    %704 = vmatpush.bf16.msra.mxu0 0
    %705 = vmatpush.bf16.msra.mxu0 0
    %706 = vmatpush.bf16.msra.mxu0 %v697
    %707 = vmatmul.bf16.gmra.mxu0 %v693
    %v708 = vpop.f32.mrf.mxu0
    %v709 = vadd.f32 %v689, %v708
    %v710 = vpop.f32.mrf.mxu0
    %v711 = vadd.f32 %v689, %v710
    %712 = vdwg.mxu0
    %v713 = vld [vmem:[#allocation15] sm:$0x1]
    %v714 = vld [vmem:[#allocation17] sm:$0x1]
    %v715 = vsel %vm596, %v709, 0.0
    %716 = vadd.xlane.f32.xlu0 %v715
    %v717 = vpop.xlane.xlu0 %716
    %v718 = vsel %vm596, %v711, 0.0
    %719 = vadd.xlane.f32.xlu0 %v718
    %v720 = vpop.xlane.xlu0 %719
    %v721 = vmul.f32 %v717, %v609
    %v722 = vmul.f32 %v720, %v609
    %v723 = vsub.f32 %v709, %v721
    %v724 = vsub.f32 %v711, %v722
    %v725 = vmul.f32 %v723, %v723
    %v726 = vmul.f32 %v724, %v724
    %v727 = vsel %vm596, %v725, 0.0
    %728 = vadd.xlane.f32.xlu0 %v727
    %v729 = vpop.xlane.xlu0 %728
    %v730 = vsel %vm596, %v726, 0.0
    %731 = vadd.xlane.f32.xlu0 %v730
    %v732 = vpop.xlane.xlu0 %731
    %v733 = vmul.f32 %v729, %v609
    %v734 = vmul.f32 %v732, %v609
    %v735 = vadd.f32 %v733, 1e-05
    %v736 = vadd.f32 %v734, 1e-05
    %v737 = vrsqrt.pop %v735
    %v738 = vmul.f32 %v737, %v735
    %v739 = vmul.f32 %v738, %v737
    %v740 = vmul.f32 0.5, %v739
    %v741 = vsub.f32 1.5, %v740
    %v742 = vmul.f32 %v737, %v741
    %vm743 = vweird.f32 %v735
    %vm744 = vweird.f32 %v737
    %vm745 = vmor %vm743, %vm744
    %v746 = vsel %vm745, %v737, %v742
    %v747 = vrsqrt.pop %v736
    %v748 = vmul.f32 %v747, %v736
    %v749 = vmul.f32 %v748, %v747
    %v750 = vmul.f32 0.5, %v749
    %v751 = vsub.f32 1.5, %v750
    %v752 = vmul.f32 %v747, %v751
    %vm753 = vweird.f32 %v736
    %vm754 = vweird.f32 %v747
    %vm755 = vmor %vm753, %vm754
    %v756 = vsel %vm755, %v747, %v752
    %v757 = vmul.f32 %v723, %v746
    %v758 = vmul.f32 %v724, %v756
    %v760 = vperm.slane %v713, 0
    %v762 = vmul.f32 %v757, %v760
    %v763 = vmul.f32 %v758, %v760
    %v765 = vperm.slane %v714, 0
    %v767 = vadd.f32 %v762, %v765
    %v768 = vadd.f32 %v763, %v765
    %v769 = vmax.f32 %v656, 0.0
    %v770 = vmax.f32 %v657, 0.0
    %v771 = vmax.f32 %v767, 0.0
    %v772 = vmax.f32 %v768, 0.0
    %775 = vrot.lane.b32.xlu0 %v771, 16
    %v776 = vpop.permute.xlu0 %775
    %777 = vrot.lane.b32.xlu0 %v772, 16
    %v778 = vpop.permute.xlu0 %777
    %v781 = vsel %vm596, %v769, %v776
    %v782 = vsel %vm596, %v770, %v778
    %v783 = vpack.c.bf16 %v782, %v781
    %v784 = vld [vmem:[%s23] sm:$0xf]
    %v785 = vld [vmem:[%s23 + $0x4] sm:$0xf]
    %v786 = vld [vmem:[%s23 + $0x8] sm:$0xf]
    %v787 = vld [vmem:[%s23 + $0xc] sm:$0xf]
    %v788 = vld [vmem:[#allocation18] sm:$0x1]
    %v790 = vperm.slane %v788, 0
    %v796 = vunpack.c.l.b16 %v784
    %v797 = vunpack.c.l.b16 %v785
    %v798 = vunpack.c.l.b16 %v786
    %v799 = vunpack.c.l.b16 %v787
    %v800 = vpack.c.b16 %v797, %v796
    %v801 = vpack.c.b16 %v799, %v798
    %vm804 = vcmask 261120
    %v806 = vsel %vm804, %v783, 0
    %808 = vmatpush.bf16.msra.mxu0 0
    %809 = vmatpush.bf16.msra.mxu0 0
    %810 = vmatpush.bf16.msra.mxu0 0
    %811 = vmatpush.bf16.msra.mxu0 0
    %812 = vmatpush.bf16.msra.mxu0 0
    %813 = vmatpush.bf16.msra.mxu0 0
    %814 = vmatpush.bf16.msra.mxu0 %v801
    %815 = vmatpush.bf16.msra.mxu0 %v800
    %816 = vmatmul.bf16.gmra.mxu0 %v806
    %v817 = vpop.f32.mrf.mxu0
    %v818 = vadd.f32 %v790, %v817
    %v819 = vpop.f32.mrf.mxu0
    %v820 = vadd.f32 %v790, %v819
    %821 = vdwg.mxu0
    %v822 = vld [vmem:[#allocation20] sm:$0x1]
    %v823 = vld [vmem:[#allocation21] sm:$0x1]
    %v824 = vsel %vm804, %v818, 0.0
    %825 = vadd.xlane.f32.xlu0 %v824
    %v826 = vpop.xlane.xlu0 %825
    %v827 = vsel %vm804, %v820, 0.0
    %828 = vadd.xlane.f32.xlu0 %v827
    %v829 = vpop.xlane.xlu0 %828
    %v830 = vrcp.pop 32.0
    %v831 = vmul.f32 32.0, %v830
    %v832 = vsub.f32 1.0, %v831
    %v833 = vmul.f32 %v830, %v832
    %v834 = vadd.f32 %v830, %v833
    %vm835 = vweird.f32 %v830
    %v836 = vsel %vm835, %v830, %v834
    %v837 = vmul.f32 %v826, %v836
    %v838 = vmul.f32 %v829, %v836
    %v839 = vsub.f32 %v818, %v837
    %v840 = vsub.f32 %v820, %v838
    %v841 = vmul.f32 %v839, %v839
    %v842 = vmul.f32 %v840, %v840
    %v843 = vsel %vm804, %v841, 0.0
    %844 = vadd.xlane.f32.xlu0 %v843
    %v845 = vpop.xlane.xlu0 %844
    %v846 = vsel %vm804, %v842, 0.0
    %847 = vadd.xlane.f32.xlu0 %v846
    %v848 = vpop.xlane.xlu0 %847
    %v849 = vmul.f32 %v845, %v836
    %v850 = vmul.f32 %v848, %v836
    %v851 = vadd.f32 %v849, 1e-05
    %v852 = vadd.f32 %v850, 1e-05
    %v853 = vrsqrt.pop %v851
    %v854 = vmul.f32 %v853, %v851
    %v855 = vmul.f32 %v854, %v853
    %v856 = vmul.f32 0.5, %v855
    %v857 = vsub.f32 1.5, %v856
    %v858 = vmul.f32 %v853, %v857
    %vm859 = vweird.f32 %v851
    %vm860 = vweird.f32 %v853
    %vm861 = vmor %vm859, %vm860
    %v862 = vsel %vm861, %v853, %v858
    %v863 = vrsqrt.pop %v852
    %v864 = vmul.f32 %v863, %v852
    %v865 = vmul.f32 %v864, %v863
    %v866 = vmul.f32 0.5, %v865
    %v867 = vsub.f32 1.5, %v866
    %v868 = vmul.f32 %v863, %v867
    %vm869 = vweird.f32 %v852
    %vm870 = vweird.f32 %v863
    %vm871 = vmor %vm869, %vm870
    %v872 = vsel %vm871, %v863, %v868
    %v873 = vmul.f32 %v839, %v862
    %v874 = vmul.f32 %v840, %v872
    %v876 = vperm.slane %v822, 0
    %v878 = vmul.f32 %v873, %v876
    %v879 = vmul.f32 %v874, %v876
    %v881 = vperm.slane %v823, 0
    %v883 = vadd.f32 %v878, %v881
    %v884 = vadd.f32 %v879, %v881
    %v885 = vld [vmem:[%s31] sm:$0xf]
    %v886 = vld [vmem:[%s31 + $0x4] sm:$0xf]
    %v887 = vld [vmem:[%s31 + $0x8] sm:$0xf]
    %v888 = vld [vmem:[%s31 + $0xc] sm:$0xf]
    %v889 = vld [vmem:[#allocation23] sm:$0xf]
    %v890 = vld [vmem:[#allocation23 + $0x4] sm:$0xf]
    %v891 = vld [vmem:[#allocation23 + $0x8] sm:$0xf]
    %v892 = vld [vmem:[#allocation23 + $0xc] sm:$0xf]
    %v893 = vld [vmem:[#allocation24] sm:$0x1]
    %v894 = vld [vmem:[#allocation26] sm:$0x1]
    %v895 = vpack.c.bf16 %v884, %v883
    %v897 = vperm.slane %v893, 0
    %v903 = vunpack.c.l.b16 %v885
    %v904 = vunpack.c.l.b16 %v886
    %v905 = vunpack.c.l.b16 %v887
    %v906 = vunpack.c.l.b16 %v888
    %v907 = vpack.c.b16 %v904, %v903
    %v908 = vpack.c.b16 %v906, %v905
    %v912 = vsel %vm804, %v895, 0
    %914 = vmatpush.bf16.msra.mxu0 0
    %915 = vmatpush.bf16.msra.mxu0 0
    %916 = vmatpush.bf16.msra.mxu0 0
    %917 = vmatpush.bf16.msra.mxu0 0
    %918 = vmatpush.bf16.msra.mxu0 0
    %919 = vmatpush.bf16.msra.mxu0 0
    %920 = vmatpush.bf16.msra.mxu0 %v908
    %921 = vmatpush.bf16.msra.mxu0 %v907
    %922 = vmatmul.bf16.gmra.mxu0 %v912
    %v923 = vpop.f32.mrf.mxu0
    %v924 = vadd.f32 %v897, %v923
    %v925 = vpop.f32.mrf.mxu0
    %v926 = vadd.f32 %v897, %v925
    %927 = vdwg.mxu0
    %v930 = vrot.slane %v924, 2
    %v931 = vrot.slane %v924, 4
    %v932 = vrot.slane %v924, 6
    %v933 = vrot.slane %v926, 2
    %v934 = vrot.slane %v926, 4
    %v935 = vrot.slane %v926, 6
    %v943 = vperm.slane %v894, 0
    %v949 = vunpack.c.l.b16 %v889
    %v950 = vunpack.c.l.b16 %v890
    %v951 = vunpack.c.l.b16 %v891
    %v952 = vunpack.c.l.b16 %v892
    %v953 = vpack.c.b16 %v950, %v949
    %v954 = vpack.c.b16 %v952, %v951
    %v958 = vsel %vm804, 0, 0
    %960 = vmatpush.bf16.msra.mxu0 0
    %961 = vmatpush.bf16.msra.mxu0 0
    %962 = vmatpush.bf16.msra.mxu0 0
    %963 = vmatpush.bf16.msra.mxu0 0
    %964 = vmatpush.bf16.msra.mxu0 0
    %965 = vmatpush.bf16.msra.mxu0 0
    %966 = vmatpush.bf16.msra.mxu0 %v954
    %967 = vmatpush.bf16.msra.mxu0 %v953
    %968 = vmatmul.bf16.gmra.mxu0 %v958
    %v969 = vpop.f32.mrf.mxu0
    %v970 = vadd.f32 %v943, %v969
    %v971 = vpop.f32.mrf.mxu0
    %972 = vdwg.mxu0
    %v973 = vadd.f32 %v924, %v970
    %v974 = vxor.u32 %v973, 2147483648
    %v975 = vmul.f32 %v974, 1.442695
    %v976 = vpow.pop %v975
    %v977 = vadd.f32 %v976, 1.0
    %v978 = vrcp.pop %v977
    %v979 = vmul.f32 %v977, %v978
    %v980 = vsub.f32 1.0, %v979
    %v981 = vmul.f32 %v978, %v980
    %v982 = vadd.f32 %v978, %v981
    %vm983 = vweird.f32 %v977
    %vm984 = vweird.f32 %v978
    %vm985 = vmor %vm983, %vm984
    %v986 = vsel %vm985, %v978, %v982
    %v987 = vand.u32 2147483647, %v977
    %vm988 = vcmp.eq.f32.partialorder %v987, 8.507059e+37
    %v989 = vand.u32 %v977, 2147483648
    %v990 = vor.u32 1.1754944e-38, %v989
    %v991 = vsel %vm988, %v990, %v986
    %v992 = vmul.f32 1.0, %v991
    %994 = vrot.lane.b32.xlu0 %v970, 64
    %v995 = vpop.permute.xlu0 %994
    %v997 = vmul.f32 %v992, %v995
    %999 = vrot.lane.b32.xlu0 %v997, 64
    %v1000 = vpop.permute.xlu0 %999
    %v1002 = vadd.f32 %v924, %v1000
    %v1003 = vtanh.pop %v1002
    %v1004 = vsub.f32 1.0, %v992
    %1006 = vrot.lane.b32.xlu0 %v1003, 96
    %v1007 = vpop.permute.xlu0 %1006
    %v1009 = vmul.f32 %v1004, %v1007
    %v1010 = vmul.f32 %v992, 0.0
    %v1011 = vadd.f32 %v1009, %v1010
    %v1012 = vpack.c.bf16 %v1011, %v1011
    %1014 = vrot.lane.b32.xlu0 %v1012, 96
    %v1015 = vpop.permute.xlu0 %1014
    %v1017 = vsel %vm804, %v1015, 0
    %1019 = vmatpush.bf16.msra.mxu0 0
    %1020 = vmatpush.bf16.msra.mxu0 0
    %1021 = vmatpush.bf16.msra.mxu0 0
    %1022 = vmatpush.bf16.msra.mxu0 0
    %1023 = vmatpush.bf16.msra.mxu0 0
    %1024 = vmatpush.bf16.msra.mxu0 0
    %1025 = vmatpush.bf16.msra.mxu0 %v954
    %1026 = vmatpush.bf16.msra.mxu0 %v953
    %1027 = vmatmul.bf16.gmra.mxu0 %v1017
    %v1028 = vpop.f32.mrf.mxu0
    %v1029 = vadd.f32 %v943, %v1028
    %v1030 = vpop.f32.mrf.mxu0
    %1031 = vdwg.mxu0
    %v1032 = vadd.f32 %v930, %v1029
    %v1033 = vxor.u32 %v1032, 2147483648
    %v1034 = vmul.f32 %v1033, 1.442695
    %v1035 = vpow.pop %v1034
    %v1036 = vadd.f32 %v1035, 1.0
    %v1037 = vrcp.pop %v1036
    %v1038 = vmul.f32 %v1036, %v1037
    %v1039 = vsub.f32 1.0, %v1038
    %v1040 = vmul.f32 %v1037, %v1039
    %v1041 = vadd.f32 %v1037, %v1040
    %vm1042 = vweird.f32 %v1036
    %vm1043 = vweird.f32 %v1037
    %vm1044 = vmor %vm1042, %vm1043
    %v1045 = vsel %vm1044, %v1037, %v1041
    %v1046 = vand.u32 2147483647, %v1036
    %vm1047 = vcmp.eq.f32.partialorder %v1046, 8.507059e+37
    %v1048 = vand.u32 %v1036, 2147483648
    %v1049 = vor.u32 1.1754944e-38, %v1048
    %v1050 = vsel %vm1047, %v1049, %v1045
    %v1051 = vmul.f32 1.0, %v1050
    %1053 = vrot.lane.b32.xlu0 %v1029, 64
    %v1054 = vpop.permute.xlu0 %1053
    %v1056 = vmul.f32 %v1051, %v1054
    %1058 = vrot.lane.b32.xlu0 %v1056, 64
    %v1059 = vpop.permute.xlu0 %1058
    %v1061 = vadd.f32 %v930, %v1059
    %v1062 = vtanh.pop %v1061
    %v1063 = vsub.f32 1.0, %v1051
    %1065 = vrot.lane.b32.xlu0 %v1062, 96
    %v1066 = vpop.permute.xlu0 %1065
    %v1068 = vmul.f32 %v1063, %v1066
    %v1069 = vmul.f32 %v1051, %v1011
    %v1070 = vadd.f32 %v1068, %v1069
    %v1071 = vpack.c.bf16 %v1070, %v1070
    %1073 = vrot.lane.b32.xlu0 %v1071, 96
    %v1074 = vpop.permute.xlu0 %1073
    %v1076 = vsel %vm804, %v1074, 0
    %1078 = vmatpush.bf16.msra.mxu0 0
    %1079 = vmatpush.bf16.msra.mxu0 0
    %1080 = vmatpush.bf16.msra.mxu0 0
    %1081 = vmatpush.bf16.msra.mxu0 0
    %1082 = vmatpush.bf16.msra.mxu0 0
    %1083 = vmatpush.bf16.msra.mxu0 0
    %1084 = vmatpush.bf16.msra.mxu0 %v954
    %1085 = vmatpush.bf16.msra.mxu0 %v953
    %1086 = vmatmul.bf16.gmra.mxu0 %v1076
    %v1087 = vpop.f32.mrf.mxu0
    %v1088 = vadd.f32 %v943, %v1087
    %v1089 = vpop.f32.mrf.mxu0
    %1090 = vdwg.mxu0
    %v1091 = vadd.f32 %v931, %v1088
    %v1092 = vxor.u32 %v1091, 2147483648
    %v1093 = vmul.f32 %v1092, 1.442695
    %v1094 = vpow.pop %v1093
    %v1095 = vadd.f32 %v1094, 1.0
    %v1096 = vrcp.pop %v1095
    %v1097 = vmul.f32 %v1095, %v1096
    %v1098 = vsub.f32 1.0, %v1097
    %v1099 = vmul.f32 %v1096, %v1098
    %v1100 = vadd.f32 %v1096, %v1099
    %vm1101 = vweird.f32 %v1095
    %vm1102 = vweird.f32 %v1096
    %vm1103 = vmor %vm1101, %vm1102
    %v1104 = vsel %vm1103, %v1096, %v1100
    %v1105 = vand.u32 2147483647, %v1095
    %vm1106 = vcmp.eq.f32.partialorder %v1105, 8.507059e+37
    %v1107 = vand.u32 %v1095, 2147483648
    %v1108 = vor.u32 1.1754944e-38, %v1107
    %v1109 = vsel %vm1106, %v1108, %v1104
    %v1110 = vmul.f32 1.0, %v1109
    %1112 = vrot.lane.b32.xlu0 %v1088, 64
    %v1113 = vpop.permute.xlu0 %1112
    %v1115 = vmul.f32 %v1110, %v1113
    %1117 = vrot.lane.b32.xlu0 %v1115, 64
    %v1118 = vpop.permute.xlu0 %1117
    %v1120 = vadd.f32 %v931, %v1118
    %v1121 = vtanh.pop %v1120
    %v1122 = vsub.f32 1.0, %v1110
    %1124 = vrot.lane.b32.xlu0 %v1121, 96
    %v1125 = vpop.permute.xlu0 %1124
    %v1127 = vmul.f32 %v1122, %v1125
    %v1128 = vmul.f32 %v1110, %v1070
    %v1129 = vadd.f32 %v1127, %v1128
    %v1130 = vpack.c.bf16 %v1129, %v1129
    %1132 = vrot.lane.b32.xlu0 %v1130, 96
    %v1133 = vpop.permute.xlu0 %1132
    %v1135 = vsel %vm804, %v1133, 0
    %1137 = vmatpush.bf16.msra.mxu0 0
    %1138 = vmatpush.bf16.msra.mxu0 0
    %1139 = vmatpush.bf16.msra.mxu0 0
    %1140 = vmatpush.bf16.msra.mxu0 0
    %1141 = vmatpush.bf16.msra.mxu0 0
    %1142 = vmatpush.bf16.msra.mxu0 0
    %1143 = vmatpush.bf16.msra.mxu0 %v954
    %1144 = vmatpush.bf16.msra.mxu0 %v953
    %1145 = vmatmul.bf16.gmra.mxu0 %v1135
    %v1146 = vpop.f32.mrf.mxu0
    %v1147 = vadd.f32 %v943, %v1146
    %v1148 = vpop.f32.mrf.mxu0
    %1149 = vdwg.mxu0
    %v1150 = vadd.f32 %v932, %v1147
    %v1151 = vxor.u32 %v1150, 2147483648
    %v1152 = vmul.f32 %v1151, 1.442695
    %v1153 = vpow.pop %v1152
    %v1154 = vadd.f32 %v1153, 1.0
    %v1155 = vrcp.pop %v1154
    %v1156 = vmul.f32 %v1154, %v1155
    %v1157 = vsub.f32 1.0, %v1156
    %v1158 = vmul.f32 %v1155, %v1157
    %v1159 = vadd.f32 %v1155, %v1158
    %vm1160 = vweird.f32 %v1154
    %vm1161 = vweird.f32 %v1155
    %vm1162 = vmor %vm1160, %vm1161
    %v1163 = vsel %vm1162, %v1155, %v1159
    %v1164 = vand.u32 2147483647, %v1154
    %vm1165 = vcmp.eq.f32.partialorder %v1164, 8.507059e+37
    %v1166 = vand.u32 %v1154, 2147483648
    %v1167 = vor.u32 1.1754944e-38, %v1166
    %v1168 = vsel %vm1165, %v1167, %v1163
    %v1169 = vmul.f32 1.0, %v1168
    %1171 = vrot.lane.b32.xlu0 %v1147, 64
    %v1172 = vpop.permute.xlu0 %1171
    %v1174 = vmul.f32 %v1169, %v1172
    %1176 = vrot.lane.b32.xlu0 %v1174, 64
    %v1177 = vpop.permute.xlu0 %1176
    %v1179 = vadd.f32 %v932, %v1177
    %v1180 = vtanh.pop %v1179
    %v1181 = vsub.f32 1.0, %v1169
    %1183 = vrot.lane.b32.xlu0 %v1180, 96
    %v1184 = vpop.permute.xlu0 %1183
    %v1186 = vmul.f32 %v1181, %v1184
    %v1187 = vmul.f32 %v1169, %v1129
    %v1188 = vadd.f32 %v1186, %v1187
    %v1189 = vpack.c.bf16 %v1188, %v1188
    %1191 = vrot.lane.b32.xlu0 %v1189, 96
    %v1192 = vpop.permute.xlu0 %1191
    %v1194 = vsel %vm804, %v1192, 0
    %1196 = vmatpush.bf16.msra.mxu0 0
    %1197 = vmatpush.bf16.msra.mxu0 0
    %1198 = vmatpush.bf16.msra.mxu0 0
    %1199 = vmatpush.bf16.msra.mxu0 0
    %1200 = vmatpush.bf16.msra.mxu0 0
    %1201 = vmatpush.bf16.msra.mxu0 0
    %1202 = vmatpush.bf16.msra.mxu0 %v954
    %1203 = vmatpush.bf16.msra.mxu0 %v953
    %1204 = vmatmul.bf16.gmra.mxu0 %v1194
    %v1205 = vpop.f32.mrf.mxu0
    %v1206 = vadd.f32 %v943, %v1205
    %v1207 = vpop.f32.mrf.mxu0
    %1208 = vdwg.mxu0
    %v1209 = vadd.f32 %v926, %v1206
    %v1210 = vxor.u32 %v1209, 2147483648
    %v1211 = vmul.f32 %v1210, 1.442695
    %v1212 = vpow.pop %v1211
    %v1213 = vadd.f32 %v1212, 1.0
    %v1214 = vrcp.pop %v1213
    %v1215 = vmul.f32 %v1213, %v1214
    %v1216 = vsub.f32 1.0, %v1215
    %v1217 = vmul.f32 %v1214, %v1216
    %v1218 = vadd.f32 %v1214, %v1217
    %vm1219 = vweird.f32 %v1213
    %vm1220 = vweird.f32 %v1214
    %vm1221 = vmor %vm1219, %vm1220
    %v1222 = vsel %vm1221, %v1214, %v1218
    %v1223 = vand.u32 2147483647, %v1213
    %vm1224 = vcmp.eq.f32.partialorder %v1223, 8.507059e+37
    %v1225 = vand.u32 %v1213, 2147483648
    %v1226 = vor.u32 1.1754944e-38, %v1225
    %v1227 = vsel %vm1224, %v1226, %v1222
    %v1228 = vmul.f32 1.0, %v1227
    %1230 = vrot.lane.b32.xlu0 %v1206, 64
    %v1231 = vpop.permute.xlu0 %1230
    %v1233 = vmul.f32 %v1228, %v1231
    %1235 = vrot.lane.b32.xlu0 %v1233, 64
    %v1236 = vpop.permute.xlu0 %1235
    %v1238 = vadd.f32 %v926, %v1236
    %v1239 = vtanh.pop %v1238
    %v1240 = vsub.f32 1.0, %v1228
    %1242 = vrot.lane.b32.xlu0 %v1239, 96
    %v1243 = vpop.permute.xlu0 %1242
    %v1245 = vmul.f32 %v1240, %v1243
    %v1246 = vmul.f32 %v1228, %v1188
    %v1247 = vadd.f32 %v1245, %v1246
    %v1248 = vpack.c.bf16 %v1247, %v1247
    %1250 = vrot.lane.b32.xlu0 %v1248, 96
    %v1251 = vpop.permute.xlu0 %1250
    %v1253 = vsel %vm804, %v1251, 0
    %1255 = vmatpush.bf16.msra.mxu0 0
    %1256 = vmatpush.bf16.msra.mxu0 0
    %1257 = vmatpush.bf16.msra.mxu0 0
    %1258 = vmatpush.bf16.msra.mxu0 0
    %1259 = vmatpush.bf16.msra.mxu0 0
    %1260 = vmatpush.bf16.msra.mxu0 0
    %1261 = vmatpush.bf16.msra.mxu0 %v954
    %1262 = vmatpush.bf16.msra.mxu0 %v953
    %1263 = vmatmul.bf16.gmra.mxu0 %v1253
    %v1264 = vpop.f32.mrf.mxu0
    %v1265 = vadd.f32 %v943, %v1264
    %v1266 = vpop.f32.mrf.mxu0
    %1267 = vdwg.mxu0
    %v1268 = vadd.f32 %v933, %v1265
    %v1269 = vxor.u32 %v1268, 2147483648
    %v1270 = vmul.f32 %v1269, 1.442695
    %v1271 = vpow.pop %v1270
    %v1272 = vadd.f32 %v1271, 1.0
    %v1273 = vrcp.pop %v1272
    %v1274 = vmul.f32 %v1272, %v1273
    %v1275 = vsub.f32 1.0, %v1274
    %v1276 = vmul.f32 %v1273, %v1275
    %v1277 = vadd.f32 %v1273, %v1276
    %vm1278 = vweird.f32 %v1272
    %vm1279 = vweird.f32 %v1273
    %vm1280 = vmor %vm1278, %vm1279
    %v1281 = vsel %vm1280, %v1273, %v1277
    %v1282 = vand.u32 2147483647, %v1272
    %vm1283 = vcmp.eq.f32.partialorder %v1282, 8.507059e+37
    %v1284 = vand.u32 %v1272, 2147483648
    %v1285 = vor.u32 1.1754944e-38, %v1284
    %v1286 = vsel %vm1283, %v1285, %v1281
    %v1287 = vmul.f32 1.0, %v1286
    %1289 = vrot.lane.b32.xlu0 %v1265, 64
    %v1290 = vpop.permute.xlu0 %1289
    %v1292 = vmul.f32 %v1287, %v1290
    %1294 = vrot.lane.b32.xlu0 %v1292, 64
    %v1295 = vpop.permute.xlu0 %1294
    %v1297 = vadd.f32 %v933, %v1295
    %v1298 = vtanh.pop %v1297
    %v1299 = vsub.f32 1.0, %v1287
    %1301 = vrot.lane.b32.xlu0 %v1298, 96
    %v1302 = vpop.permute.xlu0 %1301
    %v1304 = vmul.f32 %v1299, %v1302
    %v1305 = vmul.f32 %v1287, %v1247
    %v1306 = vadd.f32 %v1304, %v1305
    %v1307 = vpack.c.bf16 %v1306, %v1306
    %1309 = vrot.lane.b32.xlu0 %v1307, 96
    %v1310 = vpop.permute.xlu0 %1309
    %v1312 = vsel %vm804, %v1310, 0
    %1314 = vmatpush.bf16.msra.mxu0 0
    %1315 = vmatpush.bf16.msra.mxu0 0
    %1316 = vmatpush.bf16.msra.mxu0 0
    %1317 = vmatpush.bf16.msra.mxu0 0
    %1318 = vmatpush.bf16.msra.mxu0 0
    %1319 = vmatpush.bf16.msra.mxu0 0
    %1320 = vmatpush.bf16.msra.mxu0 %v954
    %1321 = vmatpush.bf16.msra.mxu0 %v953
    %1322 = vmatmul.bf16.gmra.mxu0 %v1312
    %v1323 = vpop.f32.mrf.mxu0
    %v1324 = vadd.f32 %v943, %v1323
    %v1325 = vpop.f32.mrf.mxu0
    %1326 = vdwg.mxu0
    %v1327 = vadd.f32 %v934, %v1324
    %v1328 = vxor.u32 %v1327, 2147483648
    %v1329 = vmul.f32 %v1328, 1.442695
    %v1330 = vpow.pop %v1329
    %v1331 = vadd.f32 %v1330, 1.0
    %v1332 = vrcp.pop %v1331
    %v1333 = vmul.f32 %v1331, %v1332
    %v1334 = vsub.f32 1.0, %v1333
    %v1335 = vmul.f32 %v1332, %v1334
    %v1336 = vadd.f32 %v1332, %v1335
    %vm1337 = vweird.f32 %v1331
    %vm1338 = vweird.f32 %v1332
    %vm1339 = vmor %vm1337, %vm1338
    %v1340 = vsel %vm1339, %v1332, %v1336
    %v1341 = vand.u32 2147483647, %v1331
    %vm1342 = vcmp.eq.f32.partialorder %v1341, 8.507059e+37
    %v1343 = vand.u32 %v1331, 2147483648
    %v1344 = vor.u32 1.1754944e-38, %v1343
    %v1345 = vsel %vm1342, %v1344, %v1340
    %v1346 = vmul.f32 1.0, %v1345
    %1348 = vrot.lane.b32.xlu0 %v1324, 64
    %v1349 = vpop.permute.xlu0 %1348
    %v1351 = vmul.f32 %v1346, %v1349
    %1353 = vrot.lane.b32.xlu0 %v1351, 64
    %v1354 = vpop.permute.xlu0 %1353
    %v1356 = vadd.f32 %v934, %v1354
    %v1357 = vtanh.pop %v1356
    %v1358 = vsub.f32 1.0, %v1346
    %1360 = vrot.lane.b32.xlu0 %v1357, 96
    %v1361 = vpop.permute.xlu0 %1360
    %v1363 = vmul.f32 %v1358, %v1361
    %v1364 = vmul.f32 %v1346, %v1306
    %v1365 = vadd.f32 %v1363, %v1364
    %v1366 = vpack.c.bf16 %v1365, %v1365
    %1368 = vrot.lane.b32.xlu0 %v1366, 96
    %v1369 = vpop.permute.xlu0 %1368
    %v1371 = vsel %vm804, %v1369, 0
    %1373 = vmatpush.bf16.msra.mxu0 0
    %1374 = vmatpush.bf16.msra.mxu0 0
    %1375 = vmatpush.bf16.msra.mxu0 0
    %1376 = vmatpush.bf16.msra.mxu0 0
    %1377 = vmatpush.bf16.msra.mxu0 0
    %1378 = vmatpush.bf16.msra.mxu0 0
    %1379 = vmatpush.bf16.msra.mxu0 %v954
    %1380 = vmatpush.bf16.msra.mxu0 %v953
    %1381 = vmatmul.bf16.gmra.mxu0 %v1371
    %v1382 = vpop.f32.mrf.mxu0
    %v1383 = vadd.f32 %v943, %v1382
    %v1384 = vpop.f32.mrf.mxu0
    %1385 = vdwg.mxu0
    %v1386 = vadd.f32 %v935, %v1383
    %v1387 = vxor.u32 %v1386, 2147483648
    %v1388 = vmul.f32 %v1387, 1.442695
    %v1389 = vpow.pop %v1388
    %v1390 = vadd.f32 %v1389, 1.0
    %v1391 = vrcp.pop %v1390
    %v1392 = vmul.f32 %v1390, %v1391
    %v1393 = vsub.f32 1.0, %v1392
    %v1394 = vmul.f32 %v1391, %v1393
    %v1395 = vadd.f32 %v1391, %v1394
    %vm1396 = vweird.f32 %v1390
    %vm1397 = vweird.f32 %v1391
    %vm1398 = vmor %vm1396, %vm1397
    %v1399 = vsel %vm1398, %v1391, %v1395
    %v1400 = vand.u32 2147483647, %v1390
    %vm1401 = vcmp.eq.f32.partialorder %v1400, 8.507059e+37
    %v1402 = vand.u32 %v1390, 2147483648
    %v1403 = vor.u32 1.1754944e-38, %v1402
    %v1404 = vsel %vm1401, %v1403, %v1399
    %v1405 = vmul.f32 1.0, %v1404
    %1407 = vrot.lane.b32.xlu0 %v1383, 64
    %v1408 = vpop.permute.xlu0 %1407
    %v1410 = vmul.f32 %v1405, %v1408
    %1412 = vrot.lane.b32.xlu0 %v1410, 64
    %v1413 = vpop.permute.xlu0 %1412
    %v1415 = vadd.f32 %v935, %v1413
    %v1416 = vtanh.pop %v1415
    %v1417 = vsub.f32 1.0, %v1405
    %1419 = vrot.lane.b32.xlu0 %v1416, 96
    %v1420 = vpop.permute.xlu0 %1419
    %v1422 = vmul.f32 %v1417, %v1420
    %v1423 = vmul.f32 %v1405, %v1365
    %v1424 = vadd.f32 %v1422, %v1423
    %s1425 = scalar_lea.vmem %s31, 16
    %v1426 = vld [vmem:[%s1425] sm:$0xf]
    %v1427 = vld [vmem:[%s1425 + $0x4] sm:$0xf]
    %v1428 = vld [vmem:[%s1425 + $0x8] sm:$0xf]
    %v1429 = vld [vmem:[%s1425 + $0xc] sm:$0xf]
    %s1430 = scalar_lea.vmem [#allocation23], 16
    %v1431 = vld [vmem:[%s1430] sm:$0xf]
    %v1432 = vld [vmem:[%s1430 + $0x4] sm:$0xf]
    %v1433 = vld [vmem:[%s1430 + $0x8] sm:$0xf]
    %v1434 = vld [vmem:[%s1430 + $0xc] sm:$0xf]
    %s1435 = scalar_lea.vmem [#allocation24], 1
    %v1436 = vld [vmem:[%s1435] sm:$0x1]
    %s1437 = scalar_lea.vmem [#allocation26], 1
    %v1438 = vld [vmem:[%s1437] sm:$0x1]
    %1447 = vst [vmem:[#allocation1] ss:$4 sm:$0xff] %v1011
    %s1448 = scalar_lea.vmem [#allocation1], 1
    %1449 = vst [vmem:[%s1448] ss:$4 sm:$0xff] %v1070
    %s1450 = scalar_lea.vmem [#allocation1], 2
    %1451 = vst [vmem:[%s1450] ss:$4 sm:$0xff] %v1129
    %s1452 = scalar_lea.vmem [#allocation1], 3
    %1453 = vst [vmem:[%s1452] ss:$4 sm:$0xff] %v1188
    %s1454 = scalar_lea.vmem [#allocation1], 32
    %1455 = vst [vmem:[%s1454] ss:$4 sm:$0xff] %v1247
    %s1456 = scalar_lea.vmem [#allocation1], 33
    %1457 = vst [vmem:[%s1456] ss:$4 sm:$0xff] %v1306
    %s1458 = scalar_lea.vmem [#allocation1], 34
    %1459 = vst [vmem:[%s1458] ss:$4 sm:$0xff] %v1365
    %s1460 = scalar_lea.vmem [#allocation1], 35
    %1461 = vst [vmem:[%s1460] ss:$4 sm:$0xff] %v1424
    %v1462 = vld.sshfl [vmem:[#allocation1] sm:$0xff pattern:$0x73625140]
    %v1463 = vld.sshfl [vmem:[#allocation1 + $0x20] sm:$0xff pattern:$0x73625140]
    %v1466 = vpack.c.bf16 %v1463, %v1462
    %v1468 = vperm.slane %v1436, 0
    %1471 = vrot.lane.b32.xlu0 %v1466, 96
    %v1472 = vpop.permute.xlu0 %1471
    %v1477 = vunpack.c.l.b16 %v1426
    %v1478 = vunpack.c.l.b16 %v1427
    %v1479 = vunpack.c.l.b16 %v1428
    %v1480 = vunpack.c.l.b16 %v1429
    %v1481 = vpack.c.b16 %v1478, %v1477
    %v1482 = vpack.c.b16 %v1480, %v1479
    %v1486 = vsel %vm804, %v1472, 0
    %1488 = vmatpush.bf16.msra.mxu0 0
    %1489 = vmatpush.bf16.msra.mxu0 0
    %1490 = vmatpush.bf16.msra.mxu0 0
    %1491 = vmatpush.bf16.msra.mxu0 0
    %1492 = vmatpush.bf16.msra.mxu0 0
    %1493 = vmatpush.bf16.msra.mxu0 0
    %1494 = vmatpush.bf16.msra.mxu0 %v1482
    %1495 = vmatpush.bf16.msra.mxu0 %v1481
    %1496 = vmatmul.bf16.gmra.mxu0 %v1486
    %v1497 = vpop.f32.mrf.mxu0
    %v1498 = vadd.f32 %v1468, %v1497
    %v1499 = vpop.f32.mrf.mxu0
    %v1500 = vadd.f32 %v1468, %v1499
    %1501 = vdwg.mxu0
    %v1504 = vrot.slane %v1498, 2
    %v1505 = vrot.slane %v1498, 4
    %v1506 = vrot.slane %v1498, 6
    %v1507 = vrot.slane %v1500, 2
    %v1508 = vrot.slane %v1500, 4
    %v1509 = vrot.slane %v1500, 6
    %v1517 = vperm.slane %v1438, 0
    %v1523 = vunpack.c.l.b16 %v1431
    %v1524 = vunpack.c.l.b16 %v1432
    %v1525 = vunpack.c.l.b16 %v1433
    %v1526 = vunpack.c.l.b16 %v1434
    %v1527 = vpack.c.b16 %v1524, %v1523
    %v1528 = vpack.c.b16 %v1526, %v1525
    %1531 = vmatpush.bf16.msra.mxu0 0
    %1532 = vmatpush.bf16.msra.mxu0 0
    %1533 = vmatpush.bf16.msra.mxu0 0
    %1534 = vmatpush.bf16.msra.mxu0 0
    %1535 = vmatpush.bf16.msra.mxu0 0
    %1536 = vmatpush.bf16.msra.mxu0 0
    %1537 = vmatpush.bf16.msra.mxu0 %v1528
    %1538 = vmatpush.bf16.msra.mxu0 %v1527
    %1539 = vmatmul.bf16.gmra.mxu0 %v958
    %v1540 = vpop.f32.mrf.mxu0
    %v1541 = vadd.f32 %v1517, %v1540
    %v1542 = vpop.f32.mrf.mxu0
    %1543 = vdwg.mxu0
    %v1544 = vadd.f32 %v1498, %v1541
    %v1545 = vxor.u32 %v1544, 2147483648
    %v1546 = vmul.f32 %v1545, 1.442695
    %v1547 = vpow.pop %v1546
    %v1548 = vadd.f32 %v1547, 1.0
    %v1549 = vrcp.pop %v1548
    %v1550 = vmul.f32 %v1548, %v1549
    %v1551 = vsub.f32 1.0, %v1550
    %v1552 = vmul.f32 %v1549, %v1551
    %v1553 = vadd.f32 %v1549, %v1552
    %vm1554 = vweird.f32 %v1548
    %vm1555 = vweird.f32 %v1549
    %vm1556 = vmor %vm1554, %vm1555
    %v1557 = vsel %vm1556, %v1549, %v1553
    %v1558 = vand.u32 2147483647, %v1548
    %vm1559 = vcmp.eq.f32.partialorder %v1558, 8.507059e+37
    %v1560 = vand.u32 %v1548, 2147483648
    %v1561 = vor.u32 1.1754944e-38, %v1560
    %v1562 = vsel %vm1559, %v1561, %v1557
    %v1563 = vmul.f32 1.0, %v1562
    %1565 = vrot.lane.b32.xlu0 %v1541, 64
    %v1566 = vpop.permute.xlu0 %1565
    %v1568 = vmul.f32 %v1563, %v1566
    %1570 = vrot.lane.b32.xlu0 %v1568, 64
    %v1571 = vpop.permute.xlu0 %1570
    %v1573 = vadd.f32 %v1498, %v1571
    %v1574 = vtanh.pop %v1573
    %v1575 = vsub.f32 1.0, %v1563
    %1577 = vrot.lane.b32.xlu0 %v1574, 96
    %v1578 = vpop.permute.xlu0 %1577
    %v1580 = vmul.f32 %v1575, %v1578
    %v1581 = vmul.f32 %v1563, 0.0
    %v1582 = vadd.f32 %v1580, %v1581
    %v1583 = vpack.c.bf16 %v1582, %v1582
    %1585 = vrot.lane.b32.xlu0 %v1583, 96
    %v1586 = vpop.permute.xlu0 %1585
    %v1588 = vsel %vm804, %v1586, 0
    %1590 = vmatpush.bf16.msra.mxu0 0
    %1591 = vmatpush.bf16.msra.mxu0 0
    %1592 = vmatpush.bf16.msra.mxu0 0
    %1593 = vmatpush.bf16.msra.mxu0 0
    %1594 = vmatpush.bf16.msra.mxu0 0
    %1595 = vmatpush.bf16.msra.mxu0 0
    %1596 = vmatpush.bf16.msra.mxu0 %v1528
    %1597 = vmatpush.bf16.msra.mxu0 %v1527
    %1598 = vmatmul.bf16.gmra.mxu0 %v1588
    %v1599 = vpop.f32.mrf.mxu0
    %v1600 = vadd.f32 %v1517, %v1599
    %v1601 = vpop.f32.mrf.mxu0
    %1602 = vdwg.mxu0
    %v1603 = vadd.f32 %v1504, %v1600
    %v1604 = vxor.u32 %v1603, 2147483648
    %v1605 = vmul.f32 %v1604, 1.442695
    %v1606 = vpow.pop %v1605
    %v1607 = vadd.f32 %v1606, 1.0
    %v1608 = vrcp.pop %v1607
    %v1609 = vmul.f32 %v1607, %v1608
    %v1610 = vsub.f32 1.0, %v1609
    %v1611 = vmul.f32 %v1608, %v1610
    %v1612 = vadd.f32 %v1608, %v1611
    %vm1613 = vweird.f32 %v1607
    %vm1614 = vweird.f32 %v1608
    %vm1615 = vmor %vm1613, %vm1614
    %v1616 = vsel %vm1615, %v1608, %v1612
    %v1617 = vand.u32 2147483647, %v1607
    %vm1618 = vcmp.eq.f32.partialorder %v1617, 8.507059e+37
    %v1619 = vand.u32 %v1607, 2147483648
    %v1620 = vor.u32 1.1754944e-38, %v1619
    %v1621 = vsel %vm1618, %v1620, %v1616
    %v1622 = vmul.f32 1.0, %v1621
    %1624 = vrot.lane.b32.xlu0 %v1600, 64
    %v1625 = vpop.permute.xlu0 %1624
    %v1627 = vmul.f32 %v1622, %v1625
    %1629 = vrot.lane.b32.xlu0 %v1627, 64
    %v1630 = vpop.permute.xlu0 %1629
    %v1632 = vadd.f32 %v1504, %v1630
    %v1633 = vtanh.pop %v1632
    %v1634 = vsub.f32 1.0, %v1622
    %1636 = vrot.lane.b32.xlu0 %v1633, 96
    %v1637 = vpop.permute.xlu0 %1636
    %v1639 = vmul.f32 %v1634, %v1637
    %v1640 = vmul.f32 %v1622, %v1582
    %v1641 = vadd.f32 %v1639, %v1640
    %v1642 = vpack.c.bf16 %v1641, %v1641
    %1644 = vrot.lane.b32.xlu0 %v1642, 96
    %v1645 = vpop.permute.xlu0 %1644
    %v1647 = vsel %vm804, %v1645, 0
    %1649 = vmatpush.bf16.msra.mxu0 0
    %1650 = vmatpush.bf16.msra.mxu0 0
    %1651 = vmatpush.bf16.msra.mxu0 0
    %1652 = vmatpush.bf16.msra.mxu0 0
    %1653 = vmatpush.bf16.msra.mxu0 0
    %1654 = vmatpush.bf16.msra.mxu0 0
    %1655 = vmatpush.bf16.msra.mxu0 %v1528
    %1656 = vmatpush.bf16.msra.mxu0 %v1527
    %1657 = vmatmul.bf16.gmra.mxu0 %v1647
    %v1658 = vpop.f32.mrf.mxu0
    %v1659 = vadd.f32 %v1517, %v1658
    %v1660 = vpop.f32.mrf.mxu0
    %1661 = vdwg.mxu0
    %v1662 = vadd.f32 %v1505, %v1659
    %v1663 = vxor.u32 %v1662, 2147483648
    %v1664 = vmul.f32 %v1663, 1.442695
    %v1665 = vpow.pop %v1664
    %v1666 = vadd.f32 %v1665, 1.0
    %v1667 = vrcp.pop %v1666
    %v1668 = vmul.f32 %v1666, %v1667
    %v1669 = vsub.f32 1.0, %v1668
    %v1670 = vmul.f32 %v1667, %v1669
    %v1671 = vadd.f32 %v1667, %v1670
    %vm1672 = vweird.f32 %v1666
    %vm1673 = vweird.f32 %v1667
    %vm1674 = vmor %vm1672, %vm1673
    %v1675 = vsel %vm1674, %v1667, %v1671
    %v1676 = vand.u32 2147483647, %v1666
    %vm1677 = vcmp.eq.f32.partialorder %v1676, 8.507059e+37
    %v1678 = vand.u32 %v1666, 2147483648
    %v1679 = vor.u32 1.1754944e-38, %v1678
    %v1680 = vsel %vm1677, %v1679, %v1675
    %v1681 = vmul.f32 1.0, %v1680
    %1683 = vrot.lane.b32.xlu0 %v1659, 64
    %v1684 = vpop.permute.xlu0 %1683
    %v1686 = vmul.f32 %v1681, %v1684
    %1688 = vrot.lane.b32.xlu0 %v1686, 64
    %v1689 = vpop.permute.xlu0 %1688
    %v1691 = vadd.f32 %v1505, %v1689
    %v1692 = vtanh.pop %v1691
    %v1693 = vsub.f32 1.0, %v1681
    %1695 = vrot.lane.b32.xlu0 %v1692, 96
    %v1696 = vpop.permute.xlu0 %1695
    %v1698 = vmul.f32 %v1693, %v1696
    %v1699 = vmul.f32 %v1681, %v1641
    %v1700 = vadd.f32 %v1698, %v1699
    %v1701 = vpack.c.bf16 %v1700, %v1700
    %1703 = vrot.lane.b32.xlu0 %v1701, 96
    %v1704 = vpop.permute.xlu0 %1703
    %v1706 = vsel %vm804, %v1704, 0
    %1708 = vmatpush.bf16.msra.mxu0 0
    %1709 = vmatpush.bf16.msra.mxu0 0
    %1710 = vmatpush.bf16.msra.mxu0 0
    %1711 = vmatpush.bf16.msra.mxu0 0
    %1712 = vmatpush.bf16.msra.mxu0 0
    %1713 = vmatpush.bf16.msra.mxu0 0
    %1714 = vmatpush.bf16.msra.mxu0 %v1528
    %1715 = vmatpush.bf16.msra.mxu0 %v1527
    %1716 = vmatmul.bf16.gmra.mxu0 %v1706
    %v1717 = vpop.f32.mrf.mxu0
    %v1718 = vadd.f32 %v1517, %v1717
    %v1719 = vpop.f32.mrf.mxu0
    %1720 = vdwg.mxu0
    %v1721 = vadd.f32 %v1506, %v1718
    %v1722 = vxor.u32 %v1721, 2147483648
    %v1723 = vmul.f32 %v1722, 1.442695
    %v1724 = vpow.pop %v1723
    %v1725 = vadd.f32 %v1724, 1.0
    %v1726 = vrcp.pop %v1725
    %v1727 = vmul.f32 %v1725, %v1726
    %v1728 = vsub.f32 1.0, %v1727
    %v1729 = vmul.f32 %v1726, %v1728
    %v1730 = vadd.f32 %v1726, %v1729
    %vm1731 = vweird.f32 %v1725
    %vm1732 = vweird.f32 %v1726
    %vm1733 = vmor %vm1731, %vm1732
    %v1734 = vsel %vm1733, %v1726, %v1730
    %v1735 = vand.u32 2147483647, %v1725
    %vm1736 = vcmp.eq.f32.partialorder %v1735, 8.507059e+37
    %v1737 = vand.u32 %v1725, 2147483648
    %v1738 = vor.u32 1.1754944e-38, %v1737
    %v1739 = vsel %vm1736, %v1738, %v1734
    %v1740 = vmul.f32 1.0, %v1739
    %1742 = vrot.lane.b32.xlu0 %v1718, 64
    %v1743 = vpop.permute.xlu0 %1742
    %v1745 = vmul.f32 %v1740, %v1743
    %1747 = vrot.lane.b32.xlu0 %v1745, 64
    %v1748 = vpop.permute.xlu0 %1747
    %v1750 = vadd.f32 %v1506, %v1748
    %v1751 = vtanh.pop %v1750
    %v1752 = vsub.f32 1.0, %v1740
    %1754 = vrot.lane.b32.xlu0 %v1751, 96
    %v1755 = vpop.permute.xlu0 %1754
    %v1757 = vmul.f32 %v1752, %v1755
    %v1758 = vmul.f32 %v1740, %v1700
    %v1759 = vadd.f32 %v1757, %v1758
    %v1760 = vpack.c.bf16 %v1759, %v1759
    %1762 = vrot.lane.b32.xlu0 %v1760, 96
    %v1763 = vpop.permute.xlu0 %1762
    %v1765 = vsel %vm804, %v1763, 0
    %1767 = vmatpush.bf16.msra.mxu0 0
    %1768 = vmatpush.bf16.msra.mxu0 0
    %1769 = vmatpush.bf16.msra.mxu0 0
    %1770 = vmatpush.bf16.msra.mxu0 0
    %1771 = vmatpush.bf16.msra.mxu0 0
    %1772 = vmatpush.bf16.msra.mxu0 0
    %1773 = vmatpush.bf16.msra.mxu0 %v1528
    %1774 = vmatpush.bf16.msra.mxu0 %v1527
    %1775 = vmatmul.bf16.gmra.mxu0 %v1765
    %v1776 = vpop.f32.mrf.mxu0
    %v1777 = vadd.f32 %v1517, %v1776
    %v1778 = vpop.f32.mrf.mxu0
    %1779 = vdwg.mxu0
    %v1780 = vadd.f32 %v1500, %v1777
    %v1781 = vxor.u32 %v1780, 2147483648
    %v1782 = vmul.f32 %v1781, 1.442695
    %v1783 = vpow.pop %v1782
    %v1784 = vadd.f32 %v1783, 1.0
    %v1785 = vrcp.pop %v1784
    %v1786 = vmul.f32 %v1784, %v1785
    %v1787 = vsub.f32 1.0, %v1786
    %v1788 = vmul.f32 %v1785, %v1787
    %v1789 = vadd.f32 %v1785, %v1788
    %vm1790 = vweird.f32 %v1784
    %vm1791 = vweird.f32 %v1785
    %vm1792 = vmor %vm1790, %vm1791
    %v1793 = vsel %vm1792, %v1785, %v1789
    %v1794 = vand.u32 2147483647, %v1784
    %vm1795 = vcmp.eq.f32.partialorder %v1794, 8.507059e+37
    %v1796 = vand.u32 %v1784, 2147483648
    %v1797 = vor.u32 1.1754944e-38, %v1796
    %v1798 = vsel %vm1795, %v1797, %v1793
    %v1799 = vmul.f32 1.0, %v1798
    %1801 = vrot.lane.b32.xlu0 %v1777, 64
    %v1802 = vpop.permute.xlu0 %1801
    %v1804 = vmul.f32 %v1799, %v1802
    %1806 = vrot.lane.b32.xlu0 %v1804, 64
    %v1807 = vpop.permute.xlu0 %1806
    %v1809 = vadd.f32 %v1500, %v1807
    %v1810 = vtanh.pop %v1809
    %v1811 = vsub.f32 1.0, %v1799
    %1813 = vrot.lane.b32.xlu0 %v1810, 96
    %v1814 = vpop.permute.xlu0 %1813
    %v1816 = vmul.f32 %v1811, %v1814
    %v1817 = vmul.f32 %v1799, %v1759
    %v1818 = vadd.f32 %v1816, %v1817
    %v1819 = vpack.c.bf16 %v1818, %v1818
    %1821 = vrot.lane.b32.xlu0 %v1819, 96
    %v1822 = vpop.permute.xlu0 %1821
    %v1824 = vsel %vm804, %v1822, 0
    %1826 = vmatpush.bf16.msra.mxu0 0
    %1827 = vmatpush.bf16.msra.mxu0 0
    %1828 = vmatpush.bf16.msra.mxu0 0
    %1829 = vmatpush.bf16.msra.mxu0 0
    %1830 = vmatpush.bf16.msra.mxu0 0
    %1831 = vmatpush.bf16.msra.mxu0 0
    %1832 = vmatpush.bf16.msra.mxu0 %v1528
    %1833 = vmatpush.bf16.msra.mxu0 %v1527
    %1834 = vmatmul.bf16.gmra.mxu0 %v1824
    %v1835 = vpop.f32.mrf.mxu0
    %v1836 = vadd.f32 %v1517, %v1835
    %v1837 = vpop.f32.mrf.mxu0
    %1838 = vdwg.mxu0
    %v1839 = vadd.f32 %v1507, %v1836
    %v1840 = vxor.u32 %v1839, 2147483648
    %v1841 = vmul.f32 %v1840, 1.442695
    %v1842 = vpow.pop %v1841
    %v1843 = vadd.f32 %v1842, 1.0
    %v1844 = vrcp.pop %v1843
    %v1845 = vmul.f32 %v1843, %v1844
    %v1846 = vsub.f32 1.0, %v1845
    %v1847 = vmul.f32 %v1844, %v1846
    %v1848 = vadd.f32 %v1844, %v1847
    %vm1849 = vweird.f32 %v1843
    %vm1850 = vweird.f32 %v1844
    %vm1851 = vmor %vm1849, %vm1850
    %v1852 = vsel %vm1851, %v1844, %v1848
    %v1853 = vand.u32 2147483647, %v1843
    %vm1854 = vcmp.eq.f32.partialorder %v1853, 8.507059e+37
    %v1855 = vand.u32 %v1843, 2147483648
    %v1856 = vor.u32 1.1754944e-38, %v1855
    %v1857 = vsel %vm1854, %v1856, %v1852
    %v1858 = vmul.f32 1.0, %v1857
    %1860 = vrot.lane.b32.xlu0 %v1836, 64
    %v1861 = vpop.permute.xlu0 %1860
    %v1863 = vmul.f32 %v1858, %v1861
    %1865 = vrot.lane.b32.xlu0 %v1863, 64
    %v1866 = vpop.permute.xlu0 %1865
    %v1868 = vadd.f32 %v1507, %v1866
    %v1869 = vtanh.pop %v1868
    %v1870 = vsub.f32 1.0, %v1858
    %1872 = vrot.lane.b32.xlu0 %v1869, 96
    %v1873 = vpop.permute.xlu0 %1872
    %v1875 = vmul.f32 %v1870, %v1873
    %v1876 = vmul.f32 %v1858, %v1818
    %v1877 = vadd.f32 %v1875, %v1876
    %v1878 = vpack.c.bf16 %v1877, %v1877
    %1880 = vrot.lane.b32.xlu0 %v1878, 96
    %v1881 = vpop.permute.xlu0 %1880
    %v1883 = vsel %vm804, %v1881, 0
    %1885 = vmatpush.bf16.msra.mxu0 0
    %1886 = vmatpush.bf16.msra.mxu0 0
    %1887 = vmatpush.bf16.msra.mxu0 0
    %1888 = vmatpush.bf16.msra.mxu0 0
    %1889 = vmatpush.bf16.msra.mxu0 0
    %1890 = vmatpush.bf16.msra.mxu0 0
    %1891 = vmatpush.bf16.msra.mxu0 %v1528
    %1892 = vmatpush.bf16.msra.mxu0 %v1527
    %1893 = vmatmul.bf16.gmra.mxu0 %v1883
    %v1894 = vpop.f32.mrf.mxu0
    %v1895 = vadd.f32 %v1517, %v1894
    %v1896 = vpop.f32.mrf.mxu0
    %1897 = vdwg.mxu0
    %v1898 = vadd.f32 %v1508, %v1895
    %v1899 = vxor.u32 %v1898, 2147483648
    %v1900 = vmul.f32 %v1899, 1.442695
    %v1901 = vpow.pop %v1900
    %v1902 = vadd.f32 %v1901, 1.0
    %v1903 = vrcp.pop %v1902
    %v1904 = vmul.f32 %v1902, %v1903
    %v1905 = vsub.f32 1.0, %v1904
    %v1906 = vmul.f32 %v1903, %v1905
    %v1907 = vadd.f32 %v1903, %v1906
    %vm1908 = vweird.f32 %v1902
    %vm1909 = vweird.f32 %v1903
    %vm1910 = vmor %vm1908, %vm1909
    %v1911 = vsel %vm1910, %v1903, %v1907
    %v1912 = vand.u32 2147483647, %v1902
    %vm1913 = vcmp.eq.f32.partialorder %v1912, 8.507059e+37
    %v1914 = vand.u32 %v1902, 2147483648
    %v1915 = vor.u32 1.1754944e-38, %v1914
    %v1916 = vsel %vm1913, %v1915, %v1911
    %v1917 = vmul.f32 1.0, %v1916
    %1919 = vrot.lane.b32.xlu0 %v1895, 64
    %v1920 = vpop.permute.xlu0 %1919
    %v1922 = vmul.f32 %v1917, %v1920
    %1924 = vrot.lane.b32.xlu0 %v1922, 64
    %v1925 = vpop.permute.xlu0 %1924
    %v1927 = vadd.f32 %v1508, %v1925
    %v1928 = vtanh.pop %v1927
    %v1929 = vsub.f32 1.0, %v1917
    %1931 = vrot.lane.b32.xlu0 %v1928, 96
    %v1932 = vpop.permute.xlu0 %1931
    %v1934 = vmul.f32 %v1929, %v1932
    %v1935 = vmul.f32 %v1917, %v1877
    %v1936 = vadd.f32 %v1934, %v1935
    %v1937 = vpack.c.bf16 %v1936, %v1936
    %1939 = vrot.lane.b32.xlu0 %v1937, 96
    %v1940 = vpop.permute.xlu0 %1939
    %v1942 = vsel %vm804, %v1940, 0
    %1944 = vmatpush.bf16.msra.mxu0 0
    %1945 = vmatpush.bf16.msra.mxu0 0
    %1946 = vmatpush.bf16.msra.mxu0 0
    %1947 = vmatpush.bf16.msra.mxu0 0
    %1948 = vmatpush.bf16.msra.mxu0 0
    %1949 = vmatpush.bf16.msra.mxu0 0
    %1950 = vmatpush.bf16.msra.mxu0 %v1528
    %1951 = vmatpush.bf16.msra.mxu0 %v1527
    %1952 = vmatmul.bf16.gmra.mxu0 %v1942
    %v1953 = vpop.f32.mrf.mxu0
    %v1954 = vadd.f32 %v1517, %v1953
    %v1955 = vpop.f32.mrf.mxu0
    %1956 = vdwg.mxu0
    %v1957 = vadd.f32 %v1509, %v1954
    %v1958 = vxor.u32 %v1957, 2147483648
    %v1959 = vmul.f32 %v1958, 1.442695
    %v1960 = vpow.pop %v1959
    %v1961 = vadd.f32 %v1960, 1.0
    %v1962 = vrcp.pop %v1961
    %v1963 = vmul.f32 %v1961, %v1962
    %v1964 = vsub.f32 1.0, %v1963
    %v1965 = vmul.f32 %v1962, %v1964
    %v1966 = vadd.f32 %v1962, %v1965
    %vm1967 = vweird.f32 %v1961
    %vm1968 = vweird.f32 %v1962
    %vm1969 = vmor %vm1967, %vm1968
    %v1970 = vsel %vm1969, %v1962, %v1966
    %v1971 = vand.u32 2147483647, %v1961
    %vm1972 = vcmp.eq.f32.partialorder %v1971, 8.507059e+37
    %v1973 = vand.u32 %v1961, 2147483648
    %v1974 = vor.u32 1.1754944e-38, %v1973
    %v1975 = vsel %vm1972, %v1974, %v1970
    %v1976 = vmul.f32 1.0, %v1975
    %1978 = vrot.lane.b32.xlu0 %v1954, 64
    %v1979 = vpop.permute.xlu0 %1978
    %v1981 = vmul.f32 %v1976, %v1979
    %1983 = vrot.lane.b32.xlu0 %v1981, 64
    %v1984 = vpop.permute.xlu0 %1983
    %v1986 = vadd.f32 %v1509, %v1984
    %v1987 = vtanh.pop %v1986
    %v1988 = vsub.f32 1.0, %v1976
    %1990 = vrot.lane.b32.xlu0 %v1987, 96
    %v1991 = vpop.permute.xlu0 %1990
    %v1993 = vmul.f32 %v1988, %v1991
    %v1994 = vmul.f32 %v1976, %v1936
    %v1995 = vadd.f32 %v1993, %v1994
    %v1997 = vrot.slane %v1582, 1
    %v1998 = vrot.slane %v1582, 2
    %v1999 = vrot.slane %v1582, 3
    %vm2000 = vcmask 1040384
    %v2001 = vsel %vm2000, %v1582, %v1997
    %vm2002 = vcmask 1042434
    %v2003 = vsel %vm2002, %v1998, %v1999
    %v2004 = vsel %vm695, %v2001, %v2003
    %vm2005 = vcmask 1041409
    %v2006 = vsel %vm2005, %v1582, %v1997
    %vm2007 = vcmask 1043459
    %v2008 = vsel %vm2007, %v1998, %v1999
    %vm2009 = vcmask 1042433
    %v2010 = vsel %vm2009, %v2006, %v2008
    %v2011 = vrot.slane %v2010, 1
    %v2015 = vrot.slane %v1641, 1
    %v2016 = vrot.slane %v1641, 2
    %v2017 = vrot.slane %v1641, 3
    %v2018 = vsel %vm2000, %v1641, %v2015
    %v2019 = vsel %vm2002, %v2016, %v2017
    %v2020 = vsel %vm695, %v2018, %v2019
    %v2021 = vsel %vm2005, %v1641, %v2015
    %v2022 = vsel %vm2007, %v2016, %v2017
    %v2023 = vsel %vm2009, %v2021, %v2022
    %v2024 = vrot.slane %v2023, 1
    %v2026 = vrot.slane %v1700, 1
    %v2027 = vrot.slane %v1700, 2
    %v2028 = vrot.slane %v1700, 3
    %v2029 = vsel %vm2000, %v1700, %v2026
    %v2030 = vsel %vm2002, %v2027, %v2028
    %v2031 = vsel %vm695, %v2029, %v2030
    %v2032 = vsel %vm2005, %v1700, %v2026
    %v2033 = vsel %vm2007, %v2027, %v2028
    %v2034 = vsel %vm2009, %v2032, %v2033
    %v2035 = vrot.slane %v2034, 1
    %v2037 = vrot.slane %v1759, 1
    %v2038 = vrot.slane %v1759, 2
    %v2039 = vrot.slane %v1759, 3
    %v2040 = vsel %vm2000, %v1759, %v2037
    %v2041 = vsel %vm2002, %v2038, %v2039
    %v2042 = vsel %vm695, %v2040, %v2041
    %v2043 = vsel %vm2005, %v1759, %v2037
    %v2044 = vsel %vm2007, %v2038, %v2039
    %v2045 = vsel %vm2009, %v2043, %v2044
    %v2046 = vrot.slane %v2045, 1
    %v2048 = vrot.slane %v1818, 1
    %v2049 = vrot.slane %v1818, 2
    %v2050 = vrot.slane %v1818, 3
    %v2051 = vsel %vm2000, %v1818, %v2048
    %v2052 = vsel %vm2002, %v2049, %v2050
    %v2053 = vsel %vm695, %v2051, %v2052
    %v2054 = vsel %vm2005, %v1818, %v2048
    %v2055 = vsel %vm2007, %v2049, %v2050
    %v2056 = vsel %vm2009, %v2054, %v2055
    %v2057 = vrot.slane %v2056, 1
    %v2059 = vrot.slane %v1877, 1
    %v2060 = vrot.slane %v1877, 2
    %v2061 = vrot.slane %v1877, 3
    %v2062 = vsel %vm2000, %v1877, %v2059
    %v2063 = vsel %vm2002, %v2060, %v2061
    %v2064 = vsel %vm695, %v2062, %v2063
    %v2065 = vsel %vm2005, %v1877, %v2059
    %v2066 = vsel %vm2007, %v2060, %v2061
    %v2067 = vsel %vm2009, %v2065, %v2066
    %v2068 = vrot.slane %v2067, 1
    %v2070 = vrot.slane %v1936, 1
    %v2071 = vrot.slane %v1936, 2
    %v2072 = vrot.slane %v1936, 3
    %v2073 = vsel %vm2000, %v1936, %v2070
    %v2074 = vsel %vm2002, %v2071, %v2072
    %v2075 = vsel %vm695, %v2073, %v2074
    %v2076 = vsel %vm2005, %v1936, %v2070
    %v2077 = vsel %vm2007, %v2071, %v2072
    %v2078 = vsel %vm2009, %v2076, %v2077
    %v2079 = vrot.slane %v2078, 1
    %v2081 = vrot.slane %v1995, 1
    %v2082 = vrot.slane %v1995, 2
    %v2083 = vrot.slane %v1995, 3
    %v2084 = vsel %vm2000, %v1995, %v2081
    %v2085 = vsel %vm2002, %v2082, %v2083
    %v2086 = vsel %vm695, %v2084, %v2085
    %v2087 = vsel %vm2005, %v1995, %v2081
    %v2088 = vsel %vm2007, %v2082, %v2083
    %v2089 = vsel %vm2009, %v2087, %v2088
    %v2090 = vrot.slane %v2089, 1
    %v2091 = vperm.slane %v2020, 0
    %v2092 = vperm.slane %v2024, 0
    %v2095 = vperm.slane %v2031, 0
    %v2096 = vperm.slane %v2035, 0
    %v2099 = vperm.slane %v2042, 0
    %v2100 = vperm.slane %v2046, 0
    %v2103 = vperm.slane %v2053, 0
    %v2104 = vperm.slane %v2057, 0
    %v2107 = vperm.slane %v2064, 0
    %v2108 = vperm.slane %v2068, 0
    %v2111 = vperm.slane %v2075, 0
    %v2112 = vperm.slane %v2079, 0
    %v2115 = vperm.slane %v2086, 0
    %v2116 = vperm.slane %v2090, 0
    %v2119 = vsel %vm2000, %v2004, %v2091
    %v2120 = vsel %vm2000, %v2011, %v2092
    %v2121 = vsel %vm695, %v2119, %v2095
    %v2122 = vsel %vm695, %v2120, %v2096
    %vm2123 = vcmask 1042432
    %v2124 = vsel %vm2123, %v2121, %v2099
    %v2125 = vsel %vm2123, %v2122, %v2100
    %v2126 = vsel %vm576, %v2124, %v2103
    %v2127 = vsel %vm576, %v2125, %v2104
    %vm2128 = vcmask 1044480
    %v2129 = vsel %vm2128, %v2126, %v2107
    %v2130 = vsel %vm2128, %v2127, %v2108
    %vm2131 = vcmask 1045504
    %v2132 = vsel %vm2131, %v2129, %v2111
    %v2133 = vsel %vm2131, %v2130, %v2112
    %vm2134 = vcmask 1046528
    %v2135 = vsel %vm2134, %v2132, %v2115
    %v2136 = vsel %vm2134, %v2133, %v2116
    %v2137 = vld [vmem:[#allocation6] sm:$0x3]
    %v2138 = vsub.f32 1.0, %v2137
    %v2139 = vmul.f32 %v2138, -10000.0
    %v2141 = vrot.slane %v2139, 1
    %v2142 = vpack.c.bf16 %v2136, %v2135
    %v2143 = vld [vmem:[#allocation27] sm:$0xf]
    %v2144 = vld [vmem:[#allocation27 + $0x4] sm:$0xf]
    %v2145 = vld [vmem:[#allocation27 + $0x8] sm:$0xf]
    %v2146 = vld [vmem:[#allocation27 + $0xc] sm:$0xf]
    %v2147 = vld [vmem:[#allocation29] sm:$0x1]
    %v2149 = vperm.slane %v2147, 0
    %2152 = vrot.lane.b32.xlu0 %v2142, 96
    %v2153 = vpop.permute.xlu0 %2152
    %v2158 = vunpack.c.l.b16 %v2143
    %v2159 = vunpack.c.l.b16 %v2144
    %v2160 = vunpack.c.l.b16 %v2145
    %v2161 = vunpack.c.l.b16 %v2146
    %v2162 = vpack.c.b16 %v2159, %v2158
    %v2163 = vpack.c.b16 %v2161, %v2160
    %v2167 = vsel %vm804, %v2153, 0
    %2169 = vmatpush.bf16.msra.mxu0 0
    %2170 = vmatpush.bf16.msra.mxu0 0
    %2171 = vmatpush.bf16.msra.mxu0 0
    %2172 = vmatpush.bf16.msra.mxu0 0
    %2173 = vmatpush.bf16.msra.mxu0 0
    %2174 = vmatpush.bf16.msra.mxu0 0
    %2175 = vmatpush.bf16.msra.mxu0 %v2163
    %2176 = vmatpush.bf16.msra.mxu0 %v2162
    %2177 = vmatmul.bf16.gmra.mxu0 %v2167
    %v2178 = vpop.f32.mrf.mxu0
    %v2179 = vadd.f32 %v2149, %v2178
    %v2180 = vpop.f32.mrf.mxu0
    %v2181 = vadd.f32 %v2149, %v2180
    %2182 = vdwg.mxu0
    %v2183 = vpack.c.bf16 %v2179, %v2179
    %v2184 = vpack.c.bf16 %v2181, %v2181
    %v2186 = vunpack.c.l.b16 %v2183
    %v2187 = vpack.c.b16 %v2186, %v2186
    %2188 = vrot.lane.b32.xlu0 %v2187, 96
    %v2189 = vpop.permute.xlu0 %2188
    %vm2190 = vcmask 64512
    %v2192 = vsel %vm2190, %v2183, 0
    %v2195 = vsel %vm2190, %v2189, 0
    %2197 = vmatpush.bf16.xpose.msra.mxu0 0
    %2198 = vmatpush.bf16.xpose.msra.mxu0 0
    %2199 = vmatpush.bf16.xpose.msra.mxu0 0
    %2200 = vmatpush.bf16.xpose.msra.mxu0 0
    %2201 = vmatpush.bf16.xpose.msra.mxu0 0
    %2202 = vmatpush.bf16.xpose.msra.mxu0 0
    %2203 = vmatpush.bf16.xpose.msra.mxu0 0
    %2204 = vmatpush.bf16.xpose.msra.mxu0 %v2195
    %2205 = vmatmul.bf16.gmra.mxu0 %v2192
    %v2206 = vpop.f32.mrf.mxu0
    %v2207 = vadd.f32 0.0, %v2206
    %v2208 = vpop.f32.mrf.mxu0
    %2209 = vdwg.mxu0
    %v2211 = vunpack.c.l.b16 %v2184
    %v2212 = vpack.c.b16 %v2211, %v2211
    %2213 = vrot.lane.b32.xlu0 %v2212, 96
    %v2214 = vpop.permute.xlu0 %2213
    %v2216 = vsel %vm2190, %v2184, 0
    %v2219 = vsel %vm2190, %v2214, 0
    %2221 = vmatpush.bf16.xpose.msra.mxu0 0
    %2222 = vmatpush.bf16.xpose.msra.mxu0 0
    %2223 = vmatpush.bf16.xpose.msra.mxu0 0
    %2224 = vmatpush.bf16.xpose.msra.mxu0 0
    %2225 = vmatpush.bf16.xpose.msra.mxu0 0
    %2226 = vmatpush.bf16.xpose.msra.mxu0 0
    %2227 = vmatpush.bf16.xpose.msra.mxu0 0
    %2228 = vmatpush.bf16.xpose.msra.mxu0 %v2219
    %2229 = vmatmul.bf16.gmra.mxu0 %v2216
    %v2230 = vpop.f32.mrf.mxu0
    %v2231 = vadd.f32 0.0, %v2230
    %v2232 = vpop.f32.mrf.mxu0
    %2233 = vdwg.mxu0
    %v2234 = vmul.f32 %v2207, 0.35355338
    %v2235 = vmul.f32 %v2231, 0.35355338
    %v2236 = vperm.slane %v2139, 0
    %v2237 = vperm.slane %v2141, 0
    %v2240 = vadd.f32 %v2234, %v2236
    %v2241 = vadd.f32 %v2235, %v2237
    %v2242 = vsel %vm2190, %v2240, -inf
    %2243 = vmax.xlane.f32.xlu0 %v2242
    %v2244 = vpop.xlane.xlu0 %2243
    %v2245 = vsel %vm2190, %v2241, -inf
    %2246 = vmax.xlane.f32.xlu0 %v2245
    %v2247 = vpop.xlane.xlu0 %2246
    %v2248 = vsub.f32 %v2240, %v2244
    %v2249 = vsub.f32 %v2241, %v2247
    %v2250 = vmul.f32 %v2248, 1.442695
    %v2251 = vpow.pop %v2250
    %v2252 = vmul.f32 %v2249, 1.442695
    %v2253 = vpow.pop %v2252
    %v2254 = vsel %vm2190, %v2251, 0.0
    %2255 = vadd.xlane.f32.xlu0 %v2254
    %v2256 = vpop.xlane.xlu0 %2255
    %v2257 = vsel %vm2190, %v2253, 0.0
    %2258 = vadd.xlane.f32.xlu0 %v2257
    %v2259 = vpop.xlane.xlu0 %2258
    %v2260 = vrcp.pop %v2256
    %v2261 = vrcp.pop %v2259
    %v2262 = vmul.f32 %v2251, %v2260
    %v2263 = vmul.f32 %v2253, %v2261
    %v2264 = vpack.c.bf16 %v2262, %v2262
    %v2265 = vpack.c.bf16 %v2263, %v2263
    %2266 = vrot.lane.b32.xlu0 %v2187, 64
    %v2267 = vpop.permute.xlu0 %2266
    %v2269 = vsel %vm2190, %v2264, 0
    %v2272 = vsel %vm576, %v2267, 0
    %2274 = vmatpush.bf16.msra.mxu0 0
    %2275 = vmatpush.bf16.msra.mxu0 0
    %2276 = vmatpush.bf16.msra.mxu0 0
    %2277 = vmatpush.bf16.msra.mxu0 0
    %2278 = vmatpush.bf16.msra.mxu0 0
    %2279 = vmatpush.bf16.msra.mxu0 0
    %2280 = vmatpush.bf16.msra.mxu0 0
    %2281 = vmatpush.bf16.msra.mxu0 %v2272
    %2282 = vmatmul.bf16.gmra.mxu0 %v2269
    %v2283 = vpop.f32.mrf.mxu0
    %v2284 = vadd.f32 0.0, %v2283
    %v2285 = vpop.f32.mrf.mxu0
    %2286 = vdwg.mxu0
    %2287 = vrot.lane.b32.xlu0 %v2212, 64
    %v2288 = vpop.permute.xlu0 %2287
    %v2290 = vsel %vm2190, %v2265, 0
    %v2293 = vsel %vm576, %v2288, 0
    %2295 = vmatpush.bf16.msra.mxu0 0
    %2296 = vmatpush.bf16.msra.mxu0 0
    %2297 = vmatpush.bf16.msra.mxu0 0
    %2298 = vmatpush.bf16.msra.mxu0 0
    %2299 = vmatpush.bf16.msra.mxu0 0
    %2300 = vmatpush.bf16.msra.mxu0 0
    %2301 = vmatpush.bf16.msra.mxu0 0
    %2302 = vmatpush.bf16.msra.mxu0 %v2293
    %2303 = vmatmul.bf16.gmra.mxu0 %v2290
    %v2304 = vpop.f32.mrf.mxu0
    %v2305 = vadd.f32 0.0, %v2304
    %v2306 = vpop.f32.mrf.mxu0
    %2307 = vdwg.mxu0
    %2308 = vrot.lane.b32.xlu0 %v2187, 120
    %v2309 = vpop.permute.xlu0 %2308
    %2310 = vrot.lane.b32.xlu0 %v2187, 88
    %v2311 = vpop.permute.xlu0 %2310
    %v2313 = vsel %vm2190, %v2309, 0
    %v2316 = vsel %vm2190, %v2311, 0
    %2318 = vmatpush.bf16.xpose.msra.mxu0 0
    %2319 = vmatpush.bf16.xpose.msra.mxu0 0
    %2320 = vmatpush.bf16.xpose.msra.mxu0 0
    %2321 = vmatpush.bf16.xpose.msra.mxu0 0
    %2322 = vmatpush.bf16.xpose.msra.mxu0 0
    %2323 = vmatpush.bf16.xpose.msra.mxu0 0
    %2324 = vmatpush.bf16.xpose.msra.mxu0 0
    %2325 = vmatpush.bf16.xpose.msra.mxu0 %v2316
    %2326 = vmatmul.bf16.gmra.mxu0 %v2313
    %v2327 = vpop.f32.mrf.mxu0
    %v2328 = vadd.f32 0.0, %v2327
    %v2329 = vpop.f32.mrf.mxu0
    %2330 = vdwg.mxu0
    %2331 = vrot.lane.b32.xlu0 %v2212, 120
    %v2332 = vpop.permute.xlu0 %2331
    %2333 = vrot.lane.b32.xlu0 %v2212, 88
    %v2334 = vpop.permute.xlu0 %2333
    %v2336 = vsel %vm2190, %v2332, 0
    %v2339 = vsel %vm2190, %v2334, 0
    %2341 = vmatpush.bf16.xpose.msra.mxu0 0
    %2342 = vmatpush.bf16.xpose.msra.mxu0 0
    %2343 = vmatpush.bf16.xpose.msra.mxu0 0
    %2344 = vmatpush.bf16.xpose.msra.mxu0 0
    %2345 = vmatpush.bf16.xpose.msra.mxu0 0
    %2346 = vmatpush.bf16.xpose.msra.mxu0 0
    %2347 = vmatpush.bf16.xpose.msra.mxu0 0
    %2348 = vmatpush.bf16.xpose.msra.mxu0 %v2339
    %2349 = vmatmul.bf16.gmra.mxu0 %v2336
    %v2350 = vpop.f32.mrf.mxu0
    %v2351 = vadd.f32 0.0, %v2350
    %v2352 = vpop.f32.mrf.mxu0
    %2353 = vdwg.mxu0
    %v2354 = vmul.f32 %v2328, 0.35355338
    %v2355 = vmul.f32 %v2351, 0.35355338
    %v2356 = vadd.f32 %v2354, %v2236
    %v2357 = vadd.f32 %v2355, %v2237
    %v2358 = vsel %vm2190, %v2356, -inf
    %2359 = vmax.xlane.f32.xlu0 %v2358
    %v2360 = vpop.xlane.xlu0 %2359
    %v2361 = vsel %vm2190, %v2357, -inf
    %2362 = vmax.xlane.f32.xlu0 %v2361
    %v2363 = vpop.xlane.xlu0 %2362
    %v2364 = vsub.f32 %v2356, %v2360
    %v2365 = vsub.f32 %v2357, %v2363
    %v2366 = vmul.f32 %v2364, 1.442695
    %v2367 = vpow.pop %v2366
    %v2368 = vmul.f32 %v2365, 1.442695
    %v2369 = vpow.pop %v2368
    %v2370 = vsel %vm2190, %v2367, 0.0
    %2371 = vadd.xlane.f32.xlu0 %v2370
    %v2372 = vpop.xlane.xlu0 %2371
    %v2373 = vsel %vm2190, %v2369, 0.0
    %2374 = vadd.xlane.f32.xlu0 %v2373
    %v2375 = vpop.xlane.xlu0 %2374
    %v2376 = vrcp.pop %v2372
    %v2377 = vrcp.pop %v2375
    %v2378 = vmul.f32 %v2367, %v2376
    %v2379 = vmul.f32 %v2369, %v2377
    %v2380 = vpack.c.bf16 %v2378, %v2378
    %v2381 = vpack.c.bf16 %v2379, %v2379
    %2382 = vrot.lane.b32.xlu0 %v2187, 56
    %v2383 = vpop.permute.xlu0 %2382
    %v2385 = vsel %vm2190, %v2380, 0
    %v2388 = vsel %vm576, %v2383, 0
    %2390 = vmatpush.bf16.msra.mxu0 0
    %2391 = vmatpush.bf16.msra.mxu0 0
    %2392 = vmatpush.bf16.msra.mxu0 0
    %2393 = vmatpush.bf16.msra.mxu0 0
    %2394 = vmatpush.bf16.msra.mxu0 0
    %2395 = vmatpush.bf16.msra.mxu0 0
    %2396 = vmatpush.bf16.msra.mxu0 0
    %2397 = vmatpush.bf16.msra.mxu0 %v2388
    %2398 = vmatmul.bf16.gmra.mxu0 %v2385
    %v2399 = vpop.f32.mrf.mxu0
    %v2400 = vadd.f32 0.0, %v2399
    %v2401 = vpop.f32.mrf.mxu0
    %2402 = vdwg.mxu0
    %2403 = vrot.lane.b32.xlu0 %v2212, 56
    %v2404 = vpop.permute.xlu0 %2403
    %v2406 = vsel %vm2190, %v2381, 0
    %v2409 = vsel %vm576, %v2404, 0
    %2411 = vmatpush.bf16.msra.mxu0 0
    %2412 = vmatpush.bf16.msra.mxu0 0
    %2413 = vmatpush.bf16.msra.mxu0 0
    %2414 = vmatpush.bf16.msra.mxu0 0
    %2415 = vmatpush.bf16.msra.mxu0 0
    %2416 = vmatpush.bf16.msra.mxu0 0
    %2417 = vmatpush.bf16.msra.mxu0 0
    %2418 = vmatpush.bf16.msra.mxu0 %v2409
    %2419 = vmatmul.bf16.gmra.mxu0 %v2406
    %v2420 = vpop.f32.mrf.mxu0
    %v2421 = vadd.f32 0.0, %v2420
    %v2422 = vpop.f32.mrf.mxu0
    %2423 = vdwg.mxu0
    %2424 = vrot.lane.b32.xlu0 %v2187, 112
    %v2425 = vpop.permute.xlu0 %2424
    %2426 = vrot.lane.b32.xlu0 %v2187, 80
    %v2427 = vpop.permute.xlu0 %2426
    %v2429 = vsel %vm2190, %v2425, 0
    %v2432 = vsel %vm2190, %v2427, 0
    %2434 = vmatpush.bf16.xpose.msra.mxu0 0
    %2435 = vmatpush.bf16.xpose.msra.mxu0 0
    %2436 = vmatpush.bf16.xpose.msra.mxu0 0
    %2437 = vmatpush.bf16.xpose.msra.mxu0 0
    %2438 = vmatpush.bf16.xpose.msra.mxu0 0
    %2439 = vmatpush.bf16.xpose.msra.mxu0 0
    %2440 = vmatpush.bf16.xpose.msra.mxu0 0
    %2441 = vmatpush.bf16.xpose.msra.mxu0 %v2432
    %2442 = vmatmul.bf16.gmra.mxu0 %v2429
    %v2443 = vpop.f32.mrf.mxu0
    %v2444 = vadd.f32 0.0, %v2443
    %v2445 = vpop.f32.mrf.mxu0
    %2446 = vdwg.mxu0
    %2447 = vrot.lane.b32.xlu0 %v2212, 112
    %v2448 = vpop.permute.xlu0 %2447
    %2449 = vrot.lane.b32.xlu0 %v2212, 80
    %v2450 = vpop.permute.xlu0 %2449
    %v2452 = vsel %vm2190, %v2448, 0
    %v2455 = vsel %vm2190, %v2450, 0
    %2457 = vmatpush.bf16.xpose.msra.mxu0 0
    %2458 = vmatpush.bf16.xpose.msra.mxu0 0
    %2459 = vmatpush.bf16.xpose.msra.mxu0 0
    %2460 = vmatpush.bf16.xpose.msra.mxu0 0
    %2461 = vmatpush.bf16.xpose.msra.mxu0 0
    %2462 = vmatpush.bf16.xpose.msra.mxu0 0
    %2463 = vmatpush.bf16.xpose.msra.mxu0 0
    %2464 = vmatpush.bf16.xpose.msra.mxu0 %v2455
    %2465 = vmatmul.bf16.gmra.mxu0 %v2452
    %v2466 = vpop.f32.mrf.mxu0
    %v2467 = vadd.f32 0.0, %v2466
    %v2468 = vpop.f32.mrf.mxu0
    %2469 = vdwg.mxu0
    %v2470 = vmul.f32 %v2444, 0.35355338
    %v2471 = vmul.f32 %v2467, 0.35355338
    %v2472 = vadd.f32 %v2470, %v2236
    %v2473 = vadd.f32 %v2471, %v2237
    %v2474 = vsel %vm2190, %v2472, -inf
    %2475 = vmax.xlane.f32.xlu0 %v2474
    %v2476 = vpop.xlane.xlu0 %2475
    %v2477 = vsel %vm2190, %v2473, -inf
    %2478 = vmax.xlane.f32.xlu0 %v2477
    %v2479 = vpop.xlane.xlu0 %2478
    %v2480 = vsub.f32 %v2472, %v2476
    %v2481 = vsub.f32 %v2473, %v2479
    %v2482 = vmul.f32 %v2480, 1.442695
    %v2483 = vpow.pop %v2482
    %v2484 = vmul.f32 %v2481, 1.442695
    %v2485 = vpow.pop %v2484
    %v2486 = vsel %vm2190, %v2483, 0.0
    %2487 = vadd.xlane.f32.xlu0 %v2486
    %v2488 = vpop.xlane.xlu0 %2487
    %v2489 = vsel %vm2190, %v2485, 0.0
    %2490 = vadd.xlane.f32.xlu0 %v2489
    %v2491 = vpop.xlane.xlu0 %2490
    %v2492 = vrcp.pop %v2488
    %v2493 = vrcp.pop %v2491
    %v2494 = vmul.f32 %v2483, %v2492
    %v2495 = vmul.f32 %v2485, %v2493
    %v2496 = vpack.c.bf16 %v2494, %v2494
    %v2497 = vpack.c.bf16 %v2495, %v2495
    %2498 = vrot.lane.b32.xlu0 %v2187, 48
    %v2499 = vpop.permute.xlu0 %2498
    %v2501 = vsel %vm2190, %v2496, 0
    %v2504 = vsel %vm576, %v2499, 0
    %2506 = vmatpush.bf16.msra.mxu0 0
    %2507 = vmatpush.bf16.msra.mxu0 0
    %2508 = vmatpush.bf16.msra.mxu0 0
    %2509 = vmatpush.bf16.msra.mxu0 0
    %2510 = vmatpush.bf16.msra.mxu0 0
    %2511 = vmatpush.bf16.msra.mxu0 0
    %2512 = vmatpush.bf16.msra.mxu0 0
    %2513 = vmatpush.bf16.msra.mxu0 %v2504
    %2514 = vmatmul.bf16.gmra.mxu0 %v2501
    %v2515 = vpop.f32.mrf.mxu0
    %v2516 = vadd.f32 0.0, %v2515
    %v2517 = vpop.f32.mrf.mxu0
    %2518 = vdwg.mxu0
    %2519 = vrot.lane.b32.xlu0 %v2212, 48
    %v2520 = vpop.permute.xlu0 %2519
    %v2522 = vsel %vm2190, %v2497, 0
    %v2525 = vsel %vm576, %v2520, 0
    %2527 = vmatpush.bf16.msra.mxu0 0
    %2528 = vmatpush.bf16.msra.mxu0 0
    %2529 = vmatpush.bf16.msra.mxu0 0
    %2530 = vmatpush.bf16.msra.mxu0 0
    %2531 = vmatpush.bf16.msra.mxu0 0
    %2532 = vmatpush.bf16.msra.mxu0 0
    %2533 = vmatpush.bf16.msra.mxu0 0
    %2534 = vmatpush.bf16.msra.mxu0 %v2525
    %2535 = vmatmul.bf16.gmra.mxu0 %v2522
    %v2536 = vpop.f32.mrf.mxu0
    %v2537 = vadd.f32 0.0, %v2536
    %v2538 = vpop.f32.mrf.mxu0
    %2539 = vdwg.mxu0
    %2540 = vrot.lane.b32.xlu0 %v2187, 104
    %v2541 = vpop.permute.xlu0 %2540
    %2542 = vrot.lane.b32.xlu0 %v2187, 72
    %v2543 = vpop.permute.xlu0 %2542
    %v2545 = vsel %vm2190, %v2541, 0
    %v2548 = vsel %vm2190, %v2543, 0
    %2550 = vmatpush.bf16.xpose.msra.mxu0 0
    %2551 = vmatpush.bf16.xpose.msra.mxu0 0
    %2552 = vmatpush.bf16.xpose.msra.mxu0 0
    %2553 = vmatpush.bf16.xpose.msra.mxu0 0
    %2554 = vmatpush.bf16.xpose.msra.mxu0 0
    %2555 = vmatpush.bf16.xpose.msra.mxu0 0
    %2556 = vmatpush.bf16.xpose.msra.mxu0 0
    %2557 = vmatpush.bf16.xpose.msra.mxu0 %v2548
    %2558 = vmatmul.bf16.gmra.mxu0 %v2545
    %v2559 = vpop.f32.mrf.mxu0
    %v2560 = vadd.f32 0.0, %v2559
    %v2561 = vpop.f32.mrf.mxu0
    %2562 = vdwg.mxu0
    %2563 = vrot.lane.b32.xlu0 %v2212, 104
    %v2564 = vpop.permute.xlu0 %2563
    %2565 = vrot.lane.b32.xlu0 %v2212, 72
    %v2566 = vpop.permute.xlu0 %2565
    %v2568 = vsel %vm2190, %v2564, 0
    %v2571 = vsel %vm2190, %v2566, 0
    %2573 = vmatpush.bf16.xpose.msra.mxu0 0
    %2574 = vmatpush.bf16.xpose.msra.mxu0 0
    %2575 = vmatpush.bf16.xpose.msra.mxu0 0
    %2576 = vmatpush.bf16.xpose.msra.mxu0 0
    %2577 = vmatpush.bf16.xpose.msra.mxu0 0
    %2578 = vmatpush.bf16.xpose.msra.mxu0 0
    %2579 = vmatpush.bf16.xpose.msra.mxu0 0
    %2580 = vmatpush.bf16.xpose.msra.mxu0 %v2571
    %2581 = vmatmul.bf16.gmra.mxu0 %v2568
    %v2582 = vpop.f32.mrf.mxu0
    %v2583 = vadd.f32 0.0, %v2582
    %v2584 = vpop.f32.mrf.mxu0
    %2585 = vdwg.mxu0
    %v2586 = vmul.f32 %v2560, 0.35355338
    %v2587 = vmul.f32 %v2583, 0.35355338
    %v2588 = vadd.f32 %v2586, %v2236
    %v2589 = vadd.f32 %v2587, %v2237
    %v2590 = vsel %vm2190, %v2588, -inf
    %2591 = vmax.xlane.f32.xlu0 %v2590
    %v2592 = vpop.xlane.xlu0 %2591
    %v2593 = vsel %vm2190, %v2589, -inf
    %2594 = vmax.xlane.f32.xlu0 %v2593
    %v2595 = vpop.xlane.xlu0 %2594
    %v2596 = vsub.f32 %v2588, %v2592
    %v2597 = vsub.f32 %v2589, %v2595
    %v2598 = vmul.f32 %v2596, 1.442695
    %v2599 = vpow.pop %v2598
    %v2600 = vmul.f32 %v2597, 1.442695
    %v2601 = vpow.pop %v2600
    %v2602 = vsel %vm2190, %v2599, 0.0
    %2603 = vadd.xlane.f32.xlu0 %v2602
    %v2604 = vpop.xlane.xlu0 %2603
    %v2605 = vsel %vm2190, %v2601, 0.0
    %2606 = vadd.xlane.f32.xlu0 %v2605
    %v2607 = vpop.xlane.xlu0 %2606
    %v2608 = vrcp.pop %v2604
    %v2609 = vrcp.pop %v2607
    %v2610 = vmul.f32 %v2599, %v2608
    %v2611 = vmul.f32 %v2601, %v2609
    %v2612 = vpack.c.bf16 %v2610, %v2610
    %v2613 = vpack.c.bf16 %v2611, %v2611
    %2614 = vrot.lane.b32.xlu0 %v2187, 40
    %v2615 = vpop.permute.xlu0 %2614
    %v2617 = vsel %vm2190, %v2612, 0
    %v2620 = vsel %vm576, %v2615, 0
    %2622 = vmatpush.bf16.msra.mxu0 0
    %2623 = vmatpush.bf16.msra.mxu0 0
    %2624 = vmatpush.bf16.msra.mxu0 0
    %2625 = vmatpush.bf16.msra.mxu0 0
    %2626 = vmatpush.bf16.msra.mxu0 0
    %2627 = vmatpush.bf16.msra.mxu0 0
    %2628 = vmatpush.bf16.msra.mxu0 0
    %2629 = vmatpush.bf16.msra.mxu0 %v2620
    %2630 = vmatmul.bf16.gmra.mxu0 %v2617
    %v2631 = vpop.f32.mrf.mxu0
    %v2632 = vadd.f32 0.0, %v2631
    %v2633 = vpop.f32.mrf.mxu0
    %2634 = vdwg.mxu0
    %2635 = vrot.lane.b32.xlu0 %v2212, 40
    %v2636 = vpop.permute.xlu0 %2635
    %v2638 = vsel %vm2190, %v2613, 0
    %v2641 = vsel %vm576, %v2636, 0
    %2643 = vmatpush.bf16.msra.mxu0 0
    %2644 = vmatpush.bf16.msra.mxu0 0
    %2645 = vmatpush.bf16.msra.mxu0 0
    %2646 = vmatpush.bf16.msra.mxu0 0
    %2647 = vmatpush.bf16.msra.mxu0 0
    %2648 = vmatpush.bf16.msra.mxu0 0
    %2649 = vmatpush.bf16.msra.mxu0 0
    %2650 = vmatpush.bf16.msra.mxu0 %v2641
    %2651 = vmatmul.bf16.gmra.mxu0 %v2638
    %v2652 = vpop.f32.mrf.mxu0
    %v2653 = vadd.f32 0.0, %v2652
    %v2654 = vpop.f32.mrf.mxu0
    %2655 = vdwg.mxu0
    %2658 = vrot.lane.b32.xlu0 %v2400, 8
    %v2659 = vpop.permute.xlu0 %2658
    %2660 = vrot.lane.b32.xlu0 %v2421, 8
    %v2661 = vpop.permute.xlu0 %2660
    %2666 = vrot.lane.b32.xlu0 %v2516, 16
    %v2667 = vpop.permute.xlu0 %2666
    %2668 = vrot.lane.b32.xlu0 %v2537, 16
    %v2669 = vpop.permute.xlu0 %2668
    %2674 = vrot.lane.b32.xlu0 %v2632, 24
    %v2675 = vpop.permute.xlu0 %2674
    %2676 = vrot.lane.b32.xlu0 %v2653, 24
    %v2677 = vpop.permute.xlu0 %2676
    %v2680 = vsel %vm2190, %v2284, %v2659
    %v2681 = vsel %vm2190, %v2305, %v2661
    %v2682 = vsel %vm596, %v2680, %v2667
    %v2683 = vsel %vm596, %v2681, %v2669
    %v2684 = vsel %vm572, %v2682, %v2675
    %v2685 = vsel %vm572, %v2683, %v2677
    %v2686 = vpack.c.bf16 %v2685, %v2684
    %v2687 = vld [vmem:[#allocation30] sm:$0xf]
    %v2688 = vld [vmem:[#allocation30 + $0x4] sm:$0xf]
    %v2689 = vld [vmem:[#allocation30 + $0x8] sm:$0xf]
    %v2690 = vld [vmem:[#allocation30 + $0xc] sm:$0xf]
    %v2691 = vld [vmem:[#allocation32] sm:$0x1]
    %v2693 = vperm.slane %v2691, 0
    %v2699 = vunpack.c.l.b16 %v2687
    %v2700 = vunpack.c.l.b16 %v2688
    %v2701 = vunpack.c.l.b16 %v2689
    %v2702 = vunpack.c.l.b16 %v2690
    %v2703 = vpack.c.b16 %v2700, %v2699
    %v2704 = vpack.c.b16 %v2702, %v2701
    %v2708 = vsel %vm804, %v2686, 0
    %2710 = vmatpush.bf16.msra.mxu0 0
    %2711 = vmatpush.bf16.msra.mxu0 0
    %2712 = vmatpush.bf16.msra.mxu0 0
    %2713 = vmatpush.bf16.msra.mxu0 0
    %2714 = vmatpush.bf16.msra.mxu0 0
    %2715 = vmatpush.bf16.msra.mxu0 0
    %2716 = vmatpush.bf16.msra.mxu0 %v2704
    %2717 = vmatpush.bf16.msra.mxu0 %v2703
    %2718 = vmatmul.bf16.gmra.mxu0 %v2708
    %v2719 = vpop.f32.mrf.mxu0
    %v2720 = vadd.f32 %v2693, %v2719
    %v2721 = vpop.f32.mrf.mxu0
    %v2722 = vadd.f32 %v2693, %v2721
    %2723 = vdwg.mxu0
    %2726 = vrot.lane.b32.xlu0 %v2135, 96
    %v2727 = vpop.permute.xlu0 %2726
    %2728 = vrot.lane.b32.xlu0 %v2136, 96
    %v2729 = vpop.permute.xlu0 %2728
    %v2732 = vadd.f32 %v2720, %v2727
    %v2733 = vadd.f32 %v2722, %v2729
    %v2734 = vld [vmem:[#allocation33] sm:$0x1]
    %v2735 = vld [vmem:[#allocation35] sm:$0x1]
    %v2736 = vsel %vm804, %v2732, 0.0
    %2737 = vadd.xlane.f32.xlu0 %v2736
    %v2738 = vpop.xlane.xlu0 %2737
    %v2739 = vsel %vm804, %v2733, 0.0
    %2740 = vadd.xlane.f32.xlu0 %v2739
    %v2741 = vpop.xlane.xlu0 %2740
    %v2742 = vmul.f32 %v2738, %v836
    %v2743 = vmul.f32 %v2741, %v836
    %v2744 = vsub.f32 %v2732, %v2742
    %v2745 = vsub.f32 %v2733, %v2743
    %v2746 = vmul.f32 %v2744, %v2744
    %v2747 = vmul.f32 %v2745, %v2745
    %v2748 = vsel %vm804, %v2746, 0.0
    %2749 = vadd.xlane.f32.xlu0 %v2748
    %v2750 = vpop.xlane.xlu0 %2749
    %v2751 = vsel %vm804, %v2747, 0.0
    %2752 = vadd.xlane.f32.xlu0 %v2751
    %v2753 = vpop.xlane.xlu0 %2752
    %v2754 = vmul.f32 %v2750, %v836
    %v2755 = vmul.f32 %v2753, %v836
    %v2756 = vadd.f32 %v2754, 1e-12
    %v2757 = vadd.f32 %v2755, 1e-12
    %v2758 = vrsqrt.pop %v2756
    %v2759 = vmul.f32 %v2758, %v2756
    %v2760 = vmul.f32 %v2759, %v2758
    %v2761 = vmul.f32 0.5, %v2760
    %v2762 = vsub.f32 1.5, %v2761
    %v2763 = vmul.f32 %v2758, %v2762
    %vm2764 = vweird.f32 %v2756
    %vm2765 = vweird.f32 %v2758
    %vm2766 = vmor %vm2764, %vm2765
    %v2767 = vsel %vm2766, %v2758, %v2763
    %v2768 = vrsqrt.pop %v2757
    %v2769 = vmul.f32 %v2768, %v2757
    %v2770 = vmul.f32 %v2769, %v2768
    %v2771 = vmul.f32 0.5, %v2770
    %v2772 = vsub.f32 1.5, %v2771
    %v2773 = vmul.f32 %v2768, %v2772
    %vm2774 = vweird.f32 %v2757
    %vm2775 = vweird.f32 %v2768
    %vm2776 = vmor %vm2774, %vm2775
    %v2777 = vsel %vm2776, %v2768, %v2773
    %v2778 = vmul.f32 %v2744, %v2767
    %v2779 = vmul.f32 %v2745, %v2777
    %v2781 = vperm.slane %v2734, 0
    %v2783 = vmul.f32 %v2778, %v2781
    %v2784 = vmul.f32 %v2779, %v2781
    %v2786 = vperm.slane %v2735, 0
    %v2788 = vadd.f32 %v2783, %v2786
    %v2789 = vadd.f32 %v2784, %v2786
    %v2790 = vpack.c.bf16 %v2789, %v2788
    %v2791 = vld [vmem:[#allocation36] sm:$0xf]
    %v2792 = vld [vmem:[#allocation36 + $0x4] sm:$0xf]
    %v2793 = vld [vmem:[#allocation36 + $0x8] sm:$0xf]
    %v2794 = vld [vmem:[#allocation36 + $0xc] sm:$0xf]
    %v2795 = vld [vmem:[#allocation38] sm:$0x1]
    %v2797 = vperm.slane %v2795, 0
    %v2803 = vunpack.c.l.b16 %v2791
    %v2804 = vunpack.c.l.b16 %v2792
    %v2805 = vunpack.c.l.b16 %v2793
    %v2806 = vunpack.c.l.b16 %v2794
    %v2807 = vpack.c.b16 %v2804, %v2803
    %v2808 = vpack.c.b16 %v2806, %v2805
    %v2812 = vsel %vm804, %v2790, 0
    %2814 = vmatpush.bf16.msra.mxu0 0
    %2815 = vmatpush.bf16.msra.mxu0 0
    %2816 = vmatpush.bf16.msra.mxu0 0
    %2817 = vmatpush.bf16.msra.mxu0 0
    %2818 = vmatpush.bf16.msra.mxu0 0
    %2819 = vmatpush.bf16.msra.mxu0 0
    %2820 = vmatpush.bf16.msra.mxu0 %v2808
    %2821 = vmatpush.bf16.msra.mxu0 %v2807
    %2822 = vmatmul.bf16.gmra.mxu0 %v2812
    %v2823 = vpop.f32.mrf.mxu0
    %v2824 = vadd.f32 %v2797, %v2823
    %v2825 = vpop.f32.mrf.mxu0
    %v2826 = vadd.f32 %v2797, %v2825
    %2827 = vdwg.mxu0
    %v2828 = vmul.f32 %v2824, 0.5
    %v2829 = vmul.f32 %v2826, 0.5
    %v2830 = vmul.f32 %v2824, 0.70710677
    %v2831 = vmul.f32 %v2826, 0.70710677
    %v2832 = vmul.f32 %v2830, %v2830
    %v2833 = vmin.f32 16.0, %v2832
    %v2834 = vmul.f32 %v2833, 2.1237322e-06
    %v2835 = vadd.f32 %v2834, 0.00028619796
    %v2836 = vmul.f32 %v2833, %v2835
    %v2837 = vadd.f32 %v2836, 0.0036580483
    %v2838 = vmul.f32 %v2833, %v2837
    %v2839 = vadd.f32 %v2838, 0.05243302
    %v2840 = vmul.f32 %v2833, %v2839
    %v2841 = vadd.f32 %v2840, 0.18741608
    %v2842 = vmul.f32 %v2833, %v2841
    %v2843 = vadd.f32 %v2842, 1.1283791
    %v2844 = vmul.f32 %v2830, %v2843
    %v2845 = vmul.f32 %v2833, 3.8918573e-05
    %v2846 = vadd.f32 %v2845, 0.001143296
    %v2847 = vmul.f32 %v2833, %v2846
    %v2848 = vadd.f32 %v2847, 0.014752088
    %v2849 = vmul.f32 %v2833, %v2848
    %v2850 = vadd.f32 %v2849, 0.112945676
    %v2851 = vmul.f32 %v2833, %v2850
    %v2852 = vadd.f32 %v2851, 0.4994258
    %v2853 = vmul.f32 %v2833, %v2852
    %v2854 = vadd.f32 %v2853, 1.0
    %v2855 = vrcp.pop %v2854
    %v2856 = vmul.f32 %v2854, %v2855
    %v2857 = vsub.f32 1.0, %v2856
    %v2858 = vmul.f32 %v2855, %v2857
    %v2859 = vadd.f32 %v2855, %v2858
    %vm2860 = vweird.f32 %v2854
    %vm2861 = vweird.f32 %v2855
    %vm2862 = vmor %vm2860, %vm2861
    %v2863 = vsel %vm2862, %v2855, %v2859
    %v2864 = vand.u32 2147483647, %v2854
    %vm2865 = vcmp.eq.f32.partialorder %v2864, 8.507059e+37
    %v2866 = vand.u32 %v2854, 2147483648
    %v2867 = vor.u32 1.1754944e-38, %v2866
    %v2868 = vsel %vm2865, %v2867, %v2863
    %v2869 = vmul.f32 %v2844, %v2868
    %v2870 = vmin.f32 %v2869, 1.0
    %v2871 = vmax.f32 %v2870, -1.0
    %v2872 = vmul.f32 %v2831, %v2831
    %v2873 = vmin.f32 16.0, %v2872
    %v2874 = vmul.f32 %v2873, 2.1237322e-06
    %v2875 = vadd.f32 %v2874, 0.00028619796
    %v2876 = vmul.f32 %v2873, %v2875
    %v2877 = vadd.f32 %v2876, 0.0036580483
    %v2878 = vmul.f32 %v2873, %v2877
    %v2879 = vadd.f32 %v2878, 0.05243302
    %v2880 = vmul.f32 %v2873, %v2879
    %v2881 = vadd.f32 %v2880, 0.18741608
    %v2882 = vmul.f32 %v2873, %v2881
    %v2883 = vadd.f32 %v2882, 1.1283791
    %v2884 = vmul.f32 %v2831, %v2883
    %v2885 = vmul.f32 %v2873, 3.8918573e-05
    %v2886 = vadd.f32 %v2885, 0.001143296
    %v2887 = vmul.f32 %v2873, %v2886
    %v2888 = vadd.f32 %v2887, 0.014752088
    %v2889 = vmul.f32 %v2873, %v2888
    %v2890 = vadd.f32 %v2889, 0.112945676
    %v2891 = vmul.f32 %v2873, %v2890
    %v2892 = vadd.f32 %v2891, 0.4994258
    %v2893 = vmul.f32 %v2873, %v2892
    %v2894 = vadd.f32 %v2893, 1.0
    %v2895 = vrcp.pop %v2894
    %v2896 = vmul.f32 %v2894, %v2895
    %v2897 = vsub.f32 1.0, %v2896
    %v2898 = vmul.f32 %v2895, %v2897
    %v2899 = vadd.f32 %v2895, %v2898
    %vm2900 = vweird.f32 %v2894
    %vm2901 = vweird.f32 %v2895
    %vm2902 = vmor %vm2900, %vm2901
    %v2903 = vsel %vm2902, %v2895, %v2899
    %v2904 = vand.u32 2147483647, %v2894
    %vm2905 = vcmp.eq.f32.partialorder %v2904, 8.507059e+37
    %v2906 = vand.u32 %v2894, 2147483648
    %v2907 = vor.u32 1.1754944e-38, %v2906
    %v2908 = vsel %vm2905, %v2907, %v2903
    %v2909 = vmul.f32 %v2884, %v2908
    %v2910 = vmin.f32 %v2909, 1.0
    %v2911 = vmax.f32 %v2910, -1.0
    %v2912 = vadd.f32 %v2871, 1.0
    %v2913 = vadd.f32 %v2911, 1.0
    %v2914 = vmul.f32 %v2828, %v2912
    %v2915 = vmul.f32 %v2829, %v2913
    %v2916 = vpack.c.bf16 %v2915, %v2914
    %v2917 = vld [vmem:[#allocation39] sm:$0xf]
    %v2918 = vld [vmem:[#allocation39 + $0x4] sm:$0xf]
    %v2919 = vld [vmem:[#allocation39 + $0x8] sm:$0xf]
    %v2920 = vld [vmem:[#allocation39 + $0xc] sm:$0xf]
    %v2921 = vld [vmem:[#allocation41] sm:$0x1]
    %v2923 = vperm.slane %v2921, 0
    %v2929 = vunpack.c.l.b16 %v2917
    %v2930 = vunpack.c.l.b16 %v2918
    %v2931 = vunpack.c.l.b16 %v2919
    %v2932 = vunpack.c.l.b16 %v2920
    %v2933 = vpack.c.b16 %v2930, %v2929
    %v2934 = vpack.c.b16 %v2932, %v2931
    %v2938 = vsel %vm804, %v2916, 0
    %2940 = vmatpush.bf16.msra.mxu0 0
    %2941 = vmatpush.bf16.msra.mxu0 0
    %2942 = vmatpush.bf16.msra.mxu0 0
    %2943 = vmatpush.bf16.msra.mxu0 0
    %2944 = vmatpush.bf16.msra.mxu0 0
    %2945 = vmatpush.bf16.msra.mxu0 0
    %2946 = vmatpush.bf16.msra.mxu0 %v2934
    %2947 = vmatpush.bf16.msra.mxu0 %v2933
    %2948 = vmatmul.bf16.gmra.mxu0 %v2938
    %v2949 = vpop.f32.mrf.mxu0
    %v2950 = vadd.f32 %v2923, %v2949
    %v2951 = vpop.f32.mrf.mxu0
    %v2952 = vadd.f32 %v2923, %v2951
    %2953 = vdwg.mxu0
    %v2954 = vadd.f32 %v2950, %v2788
    %v2955 = vadd.f32 %v2952, %v2789
    %v2956 = vld [vmem:[%s59] sm:$0x1]
    %v2957 = vld [vmem:[%s61] sm:$0x1]
    %v2958 = vsel %vm804, %v2954, 0.0
    %2959 = vadd.xlane.f32.xlu0 %v2958
    %v2960 = vpop.xlane.xlu0 %2959
    %v2961 = vsel %vm804, %v2955, 0.0
    %2962 = vadd.xlane.f32.xlu0 %v2961
    %v2963 = vpop.xlane.xlu0 %2962
    %v2964 = vmul.f32 %v2960, %v836
    %v2965 = vmul.f32 %v2963, %v836
    %v2966 = vsub.f32 %v2954, %v2964
    %v2967 = vsub.f32 %v2955, %v2965
    %v2968 = vmul.f32 %v2966, %v2966
    %v2969 = vmul.f32 %v2967, %v2967
    %v2970 = vsel %vm804, %v2968, 0.0
    %2971 = vadd.xlane.f32.xlu0 %v2970
    %v2972 = vpop.xlane.xlu0 %2971
    %v2973 = vsel %vm804, %v2969, 0.0
    %2974 = vadd.xlane.f32.xlu0 %v2973
    %v2975 = vpop.xlane.xlu0 %2974
    %v2976 = vmul.f32 %v2972, %v836
    %v2977 = vmul.f32 %v2975, %v836
    %v2978 = vadd.f32 %v2976, 1e-12
    %v2979 = vadd.f32 %v2977, 1e-12
    %v2980 = vrsqrt.pop %v2978
    %v2981 = vmul.f32 %v2980, %v2978
    %v2982 = vmul.f32 %v2981, %v2980
    %v2983 = vmul.f32 0.5, %v2982
    %v2984 = vsub.f32 1.5, %v2983
    %v2985 = vmul.f32 %v2980, %v2984
    %vm2986 = vweird.f32 %v2978
    %vm2987 = vweird.f32 %v2980
    %vm2988 = vmor %vm2986, %vm2987
    %v2989 = vsel %vm2988, %v2980, %v2985
    %v2990 = vrsqrt.pop %v2979
    %v2991 = vmul.f32 %v2990, %v2979
    %v2992 = vmul.f32 %v2991, %v2990
    %v2993 = vmul.f32 0.5, %v2992
    %v2994 = vsub.f32 1.5, %v2993
    %v2995 = vmul.f32 %v2990, %v2994
    %vm2996 = vweird.f32 %v2979
    %vm2997 = vweird.f32 %v2990
    %vm2998 = vmor %vm2996, %vm2997
    %v2999 = vsel %vm2998, %v2990, %v2995
    %v3000 = vmul.f32 %v2966, %v2989
    %v3001 = vmul.f32 %v2967, %v2999
    %v3003 = vperm.slane %v2956, 0
    %v3005 = vmul.f32 %v3000, %v3003
    %v3006 = vmul.f32 %v3001, %v3003
    %v3008 = vperm.slane %v2957, 0
    %v3010 = vadd.f32 %v3005, %v3008
    %v3011 = vadd.f32 %v3006, %v3008
    %v3012 = vpack.c.bf16 %v3011, %v3010
    %v3013 = vld [vmem:[%s63] sm:$0xf]
    %v3014 = vld [vmem:[%s63 + $0x4] sm:$0xf]
    %v3015 = vld [vmem:[%s63 + $0x8] sm:$0xf]
    %v3016 = vld [vmem:[%s63 + $0xc] sm:$0xf]
    %v3017 = vld [vmem:[%s65] sm:$0x1]
    %v3019 = vperm.slane %v3017, 0
    %v3025 = vunpack.c.l.b16 %v3013
    %v3026 = vunpack.c.l.b16 %v3014
    %v3027 = vunpack.c.l.b16 %v3015
    %v3028 = vunpack.c.l.b16 %v3016
    %v3029 = vpack.c.b16 %v3026, %v3025
    %v3030 = vpack.c.b16 %v3028, %v3027
    %v3034 = vsel %vm804, %v3012, 0
    %3036 = vmatpush.bf16.msra.mxu0 0
    %3037 = vmatpush.bf16.msra.mxu0 0
    %3038 = vmatpush.bf16.msra.mxu0 0
    %3039 = vmatpush.bf16.msra.mxu0 0
    %3040 = vmatpush.bf16.msra.mxu0 0
    %3041 = vmatpush.bf16.msra.mxu0 0
    %3042 = vmatpush.bf16.msra.mxu0 %v3030
    %3043 = vmatpush.bf16.msra.mxu0 %v3029
    %3044 = vmatmul.bf16.gmra.mxu0 %v3034
    %v3045 = vpop.f32.mrf.mxu0
    %v3046 = vadd.f32 %v3019, %v3045
    %v3047 = vpop.f32.mrf.mxu0
    %v3048 = vadd.f32 %v3019, %v3047
    %3049 = vdwg.mxu0
    %v3050 = vld [vmem:[%s67] sm:$0x1]
    %v3051 = vld [vmem:[%s69] sm:$0x1]
    %v3052 = vsel %vm804, %v3046, 0.0
    %3053 = vadd.xlane.f32.xlu0 %v3052
    %v3054 = vpop.xlane.xlu0 %3053
    %v3055 = vsel %vm804, %v3048, 0.0
    %3056 = vadd.xlane.f32.xlu0 %v3055
    %v3057 = vpop.xlane.xlu0 %3056
    %v3058 = vmul.f32 %v3054, %v836
    %v3059 = vmul.f32 %v3057, %v836
    %v3060 = vsub.f32 %v3046, %v3058
    %v3061 = vsub.f32 %v3048, %v3059
    %v3062 = vmul.f32 %v3060, %v3060
    %v3063 = vmul.f32 %v3061, %v3061
    %v3064 = vsel %vm804, %v3062, 0.0
    %3065 = vadd.xlane.f32.xlu0 %v3064
    %v3066 = vpop.xlane.xlu0 %3065
    %v3067 = vsel %vm804, %v3063, 0.0
    %3068 = vadd.xlane.f32.xlu0 %v3067
    %v3069 = vpop.xlane.xlu0 %3068
    %v3070 = vmul.f32 %v3066, %v836
    %v3071 = vmul.f32 %v3069, %v836
    %v3072 = vadd.f32 %v3070, 1e-05
    %v3073 = vadd.f32 %v3071, 1e-05
    %v3074 = vrsqrt.pop %v3072
    %v3075 = vmul.f32 %v3074, %v3072
    %v3076 = vmul.f32 %v3075, %v3074
    %v3077 = vmul.f32 0.5, %v3076
    %v3078 = vsub.f32 1.5, %v3077
    %v3079 = vmul.f32 %v3074, %v3078
    %vm3080 = vweird.f32 %v3072
    %vm3081 = vweird.f32 %v3074
    %vm3082 = vmor %vm3080, %vm3081
    %v3083 = vsel %vm3082, %v3074, %v3079
    %v3084 = vrsqrt.pop %v3073
    %v3085 = vmul.f32 %v3084, %v3073
    %v3086 = vmul.f32 %v3085, %v3084
    %v3087 = vmul.f32 0.5, %v3086
    %v3088 = vsub.f32 1.5, %v3087
    %v3089 = vmul.f32 %v3084, %v3088
    %vm3090 = vweird.f32 %v3073
    %vm3091 = vweird.f32 %v3084
    %vm3092 = vmor %vm3090, %vm3091
    %v3093 = vsel %vm3092, %v3084, %v3089
    %v3094 = vmul.f32 %v3060, %v3083
    %v3095 = vmul.f32 %v3061, %v3093
    %v3097 = vperm.slane %v3050, 0
    %v3099 = vmul.f32 %v3094, %v3097
    %v3100 = vmul.f32 %v3095, %v3097
    %v3102 = vperm.slane %v3051, 0
    %v3104 = vadd.f32 %v3099, %v3102
    %v3105 = vadd.f32 %v3100, %v3102
    %v3106 = vmax.f32 %v3104, 0.0
    %v3107 = vmax.f32 %v3105, 0.0
    %v3108 = vld [vmem:[%s71] sm:$0x1]
    %v3110 = vperm.slane %v3108, 0
    %v3112 = vmul.f32 %v3106, %v3110
    %v3113 = vmul.f32 %v3107, %v3110
    %v3114 = vsel %vm804, %v3112, 0.0
    %3115 = vadd.xlane.f32.xlu0 %v3114
    %v3116 = vpop.xlane.xlu0 %3115
    %v3117 = vsel %vm804, %v3113, 0.0
    %3118 = vadd.xlane.f32.xlu0 %v3117
    %v3119 = vpop.xlane.xlu0 %3118
    %v3120 = vld [vmem:[#allocation2] sm:$0x1]
    %v3122 = vperm.slane %v3120, 0
    %3123 = vset.pattern.permute.xlu0 0
    %3124 = vperm.xlu0 %3123, %v3122
    %v3125 = vpop.permute.xlu0 %3124
    %v3127 = vadd.f32 %v3116, %v3125
    %v3128 = vadd.f32 %v3119, %v3125
    %v3131 = vlaneseq
    %v3132 = vand.u32 %v3131, 127
    %v3133 = vperm.slane %v3127, %v3132
    %v3134 = vperm.slane %v3128, %v3132
    %v3135 = vsel %vm2005, %v3134, %v3133
    %vm3137 = vcmask 58368
    %3138 = vst.msk [vmem:[#allocation42] sm:$0x3] %vm3137, %v3135
    // Predicated region
    $region250: #{tpu_custom_call.1} parent=1 // pred_check
      _
    $region251: #{tpu_custom_call.1} parent=1 // pred_check_branch
      %3140 = sbr.rel (0) target = $region253
    $region252: #{tpu_custom_call.1} parent=1 // pred_region
      %3142 = vsyncadd [#allocation5], 0
      %s3144 = sshll.u32 [#allocation42], 4
      %s3145 = int_to_ptr.vmem [resolvable:$true] %s3144
      %s3146 = sshll.u32 %s75, 4
      %s3147 = int_to_ptr.hbm [resolvable:$true] %s3146
      %3149 = dma.vmem_to_hbm [thread:$0]  %s3145, 32, %s3147, [#allocation5]
    $region253: #{tpu_custom_call.1} parent=1 // pred_fallthru
      _
    // Predicated region
    $region254: #{tpu_custom_call.1} parent=1 // pred_check
      _
    $region255: #{tpu_custom_call.1} parent=1 // pred_check_branch
      %3151 = sbr.rel (0) target = $region257
    $region256: #{tpu_custom_call.1} parent=1 // pred_region
      %3153 = dma.done [#allocation5], 32
    $region257: #{tpu_custom_call.1} parent=1 // pred_fallthru
      _
    %3154 = vsyncpa [#allocation4], 1
    %3155 = vsyncpa [#allocation7], 1
    %3156 = vsyncpa [#allocation10], 1
    %3157 = vsyncpa [#allocation13], 1
    %3158 = vsyncpa [#allocation16], 1
    %3159 = vsyncpa [#allocation19], 1
    %3160 = vsyncpa [#allocation22], 1
    %3161 = vsyncpa [#allocation25], 1
    %3162 = vsyncpa [#allocation28], 1
    %3163 = vsyncpa [#allocation31], 1
    %3164 = vsyncpa [#allocation34], 1
    %3165 = vsyncpa [#allocation37], 1
    %3166 = vsyncpa [#allocation40], 1
    %3167 = vsyncpa [#allocation5], 1

</llo_original>
